<compile_context>
chip_gen: v7x
topology: tpu7x:2x2x1
jax: 0.10.0
libtpu: 0.0.40
codegen_flags: <defaults>
</compile_context>

<pallas_src>
import numpy as np

import jax
import jax.numpy as jnp
from jax import lax
from jax.experimental import pallas as pl
from jax.experimental.pallas import tpu as pltpu

# ----------------------------- config ---------------------------------------
PATCH = 16
IMG = 32                       # img_size (small demo; real model uses 224)
EMBED = 128                    # embed_dim (real: 768) -- lane dense
DEPTH = 12                     # depth (matches module)
HEADS = 4                      # num_heads (real: 12); head_dim = 32
HEAD_DIM = EMBED // HEADS
MLP_RATIO = 4
HIDDEN = MLP_RATIO * EMBED
NUM_CLASSES = 10               # actual_num_classes (args.num_classes)
HEAD_PAD = 128                 # classifier output padded to a full lane group
EPS = 1e-6
NEG_INF = -1e30
DTYPE = jnp.float32            # residual-stream / statistics dtype
WEIGHT_DTYPE = jnp.bfloat16    # MXU operand dtype (f32 accumulation)

GRID_P = (IMG // PATCH) ** 2   # patches per image (= 4 at demo scale)
SEQ = 2 + GRID_P               # resPrompt + cls + patch tokens
PATCH_DIM = 3 * PATCH * PATCH  # im2col patch vector length (= 768)


# --------------------------- kernel helpers ----------------------------------
def _layernorm(v, g, b):
    mean = jnp.mean(v, axis=-1, keepdims=True)
    var = jnp.mean(jnp.square(v - mean), axis=-1, keepdims=True)
    return (v - mean) * lax.rsqrt(var + EPS) * g + b


# --------------------------- fused ViT kernel --------------------------------
def _vit_kernel(patches_ref, bias_ref, cls_ref, prompt_ref, pos_ref,
                patch_w_ref, patch_b_ref,
                ln1_g_ref, ln1_b_ref, qkv_w_ref, qkv_b_ref,
                proj_w_ref, proj_b_ref, ln2_g_ref, ln2_b_ref,
                fc1_w_ref, fc1_b_ref, fc2_w_ref, fc2_b_ref,
                norm_g_ref, norm_b_ref, head_w_ref, head_b_ref,
                logits_ref, feat_ref, x_scr):
    """Whole forward pass in one kernel invocation (no grid)."""
    B = logits_ref.shape[0]
    M = B * SEQ
    E = EMBED
    Dh = HEAD_DIM
    scale = Dh ** -0.5

    # ---- patch-embed stem + token assembly (fused) ----
    tok = jnp.dot(patches_ref[...].astype(WEIGHT_DTYPE), patch_w_ref[...],
                  preferred_element_type=jnp.float32) + patch_b_ref[...]
    prompt = prompt_ref[...]                           # (1, E)
    cls_pos = cls_ref[...] + pos_ref[pl.ds(0, 1), :]   # (1, E)
    pos_rest = pos_ref[pl.ds(1, GRID_P), :]            # (P, E)
    for b in range(B):                                 # lane-dense row stores
        x_scr[pl.ds(b * SEQ, 1), :] = prompt
        x_scr[pl.ds(b * SEQ + 1, 1), :] = cls_pos
        x_scr[pl.ds(b * SEQ + 2, GRID_P), :] = (
            tok[b * GRID_P:(b + 1) * GRID_P, :] + pos_rest)
    x0 = x_scr[...]                                    # (M, E) f32

    # Block-diagonal additive mask (precomputed on host): tokens attend only
    # within their own image, so the whole batch shares one score matmul.
    attn_bias = bias_ref[...]                          # (M, M) f32

    def dense(v, w, b):
        return jnp.dot(v.astype(WEIGHT_DTYPE), w,
                       preferred_element_type=jnp.float32) + b

    def layer(l, x):
        # ---- attention branch ----
        h = _layernorm(x, ln1_g_ref[l], ln1_b_ref[l])
        qkv = dense(h, qkv_w_ref[l], qkv_b_ref[l])     # (M, 3E) f32
        head_outs = []
        for hh in range(HEADS):
            q_h = qkv[:, hh * Dh:(hh + 1) * Dh].astype(WEIGHT_DTYPE)
            k_h = qkv[:, E + hh * Dh:E + (hh + 1) * Dh].astype(WEIGHT_DTYPE)
            v_h = qkv[:, 2 * E + hh * Dh:
                      2 * E + (hh + 1) * Dh].astype(WEIGHT_DTYPE)
            # q @ k^T without materializing a transpose.
            s = lax.dot_general(q_h, k_h, (((1,), (1,)), ((), ())),
                                preferred_element_type=jnp.float32)
            s = s * scale + attn_bias
            s = s - jnp.max(s, axis=-1, keepdims=True)
            p = jnp.exp(s)
            p = p * pl.reciprocal(jnp.sum(p, axis=-1, keepdims=True),
                                  approx=True)
            head_outs.append(jnp.dot(p.astype(WEIGHT_DTYPE), v_h,
                                     preferred_element_type=jnp.float32))
        attn = jnp.concatenate(head_outs, axis=-1)     # (M, E), in registers
        x = x + dense(attn, proj_w_ref[l], proj_b_ref[l])

        # ---- MLP branch ----
        h2 = _layernorm(x, ln2_g_ref[l], ln2_b_ref[l])
        h2 = dense(h2, fc1_w_ref[l], fc1_b_ref[l])
        h2 = jax.nn.gelu(h2, approximate=True)         # tanh GELU -> EUP
        x = x + dense(h2, fc2_w_ref[l], fc2_b_ref[l])
        return x

    x = lax.fori_loop(0, DEPTH, layer, x0)

    # ---- final LayerNorm + prompt-token classifier head (fused) ----
    feat = _layernorm(x, norm_g_ref[...], norm_b_ref[...])
    feat_ref[...] = feat.astype(feat_ref.dtype)
    logits = dense(feat, head_w_ref[...], head_b_ref[...])   # (M, HEAD_PAD)
    for b in range(B):
        # resPrompt token is row b*SEQ of each sample; lane-dense store.
        logits_ref[pl.ds(b, 1), :] = logits[b * SEQ:b * SEQ + 1, :]


def vit_pallas(patches, attn_bias, params):
    """patches: (B*P, PATCH_DIM) f32 -> (logits (B, HEAD_PAD), feat (B*S, E))."""
    B = patches.shape[0] // GRID_P
    return pl.pallas_call(
        _vit_kernel,
        out_shape=(jax.ShapeDtypeStruct((B, HEAD_PAD), DTYPE),
                   jax.ShapeDtypeStruct((B * SEQ, EMBED), DTYPE)),
        scratch_shapes=[pltpu.VMEM((B * SEQ, EMBED), jnp.float32)],
        compiler_params=pltpu.CompilerParams(
            vmem_limit_bytes=32 * 1024 * 1024),
    )(patches, attn_bias,
      params["cls_token"], params["resprompt_token"], params["pos_embed"],
      params["patch_w"], params["patch_b"],
      params["ln1_g"], params["ln1_b"], params["qkv_w"], params["qkv_b"],
      params["proj_w"], params["proj_b"], params["ln2_g"], params["ln2_b"],
      params["fc1_w"], params["fc1_b"], params["fc2_w"], params["fc2_b"],
      params["norm_g"], params["norm_b"],
      params["head_res_w"], params["head_res_b"])


# --------------------------- params & forward --------------------------------
def init_params(key):
    E, H = EMBED, HIDDEN
    ks = jax.random.split(key, 10)

    def nrm(k, shape, std=0.02, dtype=DTYPE):
        return (std * jax.random.normal(k, shape)).astype(dtype)

    head_w = jnp.zeros((E, HEAD_PAD), WEIGHT_DTYPE)
    head_w = head_w.at[:, :NUM_CLASSES].set(
        nrm(ks[4], (E, NUM_CLASSES), dtype=WEIGHT_DTYPE))

    return {
        # torch Conv2d(3, E, 16, 16).weight is (E, 3, 16, 16); stored here as
        # (3*16*16, E) with (c, kh, kw) flattening order to match NCHW patches.
        "patch_w": nrm(ks[0], (PATCH_DIM, E), dtype=WEIGHT_DTYPE),
        "patch_b": jnp.zeros((1, E), DTYPE),
        "cls_token": nrm(ks[1], (1, E)),
        "resprompt_token": nrm(ks[2], (1, E)),  # TODO(synk): exact resPrompt token count/placement from baselinePromptVisionTransformer source unknown; using 1 prompt token prepended after pos-embed.
        "pos_embed": nrm(ks[3], (1 + GRID_P, E)),
        "norm_g": jnp.ones((1, E), DTYPE),
        "norm_b": jnp.zeros((1, E), DTYPE),
        # classifier padded to a 128-lane output; sliced to NUM_CLASSES outside
        "head_res_w": head_w,
        "head_res_b": jnp.zeros((1, HEAD_PAD), DTYPE),
        # per-layer weights stacked on a leading depth axis, indexed in-kernel
        "ln1_g": jnp.ones((DEPTH, 1, E), DTYPE),
        "ln1_b": jnp.zeros((DEPTH, 1, E), DTYPE),
        "qkv_w": nrm(ks[5], (DEPTH, E, 3 * E), dtype=WEIGHT_DTYPE),
        "qkv_b": jnp.zeros((DEPTH, 1, 3 * E), DTYPE),
        "proj_w": nrm(ks[6], (DEPTH, E, E), dtype=WEIGHT_DTYPE),
        "proj_b": jnp.zeros((DEPTH, 1, E), DTYPE),
        "ln2_g": jnp.ones((DEPTH, 1, E), DTYPE),
        "ln2_b": jnp.zeros((DEPTH, 1, E), DTYPE),
        "fc1_w": nrm(ks[7], (DEPTH, E, H), dtype=WEIGHT_DTYPE),
        "fc1_b": jnp.zeros((DEPTH, 1, H), DTYPE),
        "fc2_w": nrm(ks[8], (DEPTH, H, E), dtype=WEIGHT_DTYPE),
        "fc2_b": jnp.zeros((DEPTH, 1, E), DTYPE),
    }


def _block_diag_bias(B):
    """Additive attention bias: 0 within a sample, -1e30 across samples."""
    M = B * SEQ
    same = (np.arange(M)[:, None] // SEQ) == (np.arange(M)[None, :] // SEQ)
    return jnp.asarray(np.where(same, 0.0, NEG_INF).astype(np.float32))


def forward(x, params):
    """x: (B, 3, H, W) NCHW, num_frames=1, joint space-time attention."""
    B, C, Hh, Ww = x.shape
    gh, gw = Hh // PATCH, Ww // PATCH
    # im2col: (B*gh*gw, C*P*P) with (c, kh, kw) flattening (matches Conv2d).
    patches = x.reshape(B, C, gh, PATCH, gw, PATCH)
    patches = patches.transpose(0, 2, 4, 1, 3, 5).reshape(
        B * gh * gw, C * PATCH * PATCH).astype(DTYPE)

    logits, feat = vit_pallas(patches, _block_diag_bias(B), params)

    x_resPrompt = logits[:, :NUM_CLASSES]               # prompt-head logits
    x_features = feat.reshape(B, SEQ, EMBED)            # normed token features
    # TODO(synk): attention_maps are not materialized; module's forward with
    # return_tokens=False only returns x_resPrompt anyway.
    return x_resPrompt, x_features


if __name__ == "__main__":
    key = jax.random.PRNGKey(0)
    kp, kx = jax.random.split(key)
    params = init_params(kp)
    x = jax.random.normal(kx, (2, 3, IMG, IMG), dtype=DTYPE)

    fwd = jax.jit(lambda x, p: forward(x, p)[0])
    out = fwd(x, params)
    jax.block_until_ready(out)
    assert out.shape == (2, NUM_CLASSES) and out.dtype == DTYPE
    print("KERNEL_OK")
</pallas_src>

<mosaic_0001>
module attributes {stable_mosaic.version = 11 : i64} {
  func.func @_vit_kernel(%arg0: memref<8x768xf32, #tpu.memory_space<vmem>>, %arg1: memref<12x12xf32, #tpu.memory_space<vmem>>, %arg2: memref<1x128xf32, #tpu.memory_space<vmem>>, %arg3: memref<1x128xf32, #tpu.memory_space<vmem>>, %arg4: memref<5x128xf32, #tpu.memory_space<vmem>>, %arg5: memref<768x128xbf16, #tpu.memory_space<vmem>>, %arg6: memref<1x128xf32, #tpu.memory_space<vmem>>, %arg7: memref<12x1x128xf32, #tpu.memory_space<vmem>>, %arg8: memref<12x1x128xf32, #tpu.memory_space<vmem>>, %arg9: memref<12x128x384xbf16, #tpu.memory_space<vmem>>, %arg10: memref<12x1x384xf32, #tpu.memory_space<vmem>>, %arg11: memref<12x128x128xbf16, #tpu.memory_space<vmem>>, %arg12: memref<12x1x128xf32, #tpu.memory_space<vmem>>, %arg13: memref<12x1x128xf32, #tpu.memory_space<vmem>>, %arg14: memref<12x1x128xf32, #tpu.memory_space<vmem>>, %arg15: memref<12x128x512xbf16, #tpu.memory_space<vmem>>, %arg16: memref<12x1x512xf32, #tpu.memory_space<vmem>>, %arg17: memref<12x512x128xbf16, #tpu.memory_space<vmem>>, %arg18: memref<12x1x128xf32, #tpu.memory_space<vmem>>, %arg19: memref<1x128xf32, #tpu.memory_space<vmem>>, %arg20: memref<1x128xf32, #tpu.memory_space<vmem>>, %arg21: memref<128x128xbf16, #tpu.memory_space<vmem>>, %arg22: memref<1x128xf32, #tpu.memory_space<vmem>>, %arg23: memref<2x128xf32, #tpu.memory_space<vmem>>, %arg24: memref<12x128xf32, #tpu.memory_space<vmem>>, %arg25: memref<12x128xf32, #tpu.memory_space<vmem>>) attributes {dimension_semantics = [], scalar_prefetch = 0 : i64, scratch_operands = 1 : i64, tpu.core_type = #tpu.core_type<tc>} {
    %c0 = arith.constant 0 : index
    %c0_0 = arith.constant 0 : index
    %0 = vector.load %arg0[%c0, %c0_0] : memref<8x768xf32, #tpu.memory_space<vmem>>, vector<8x768xf32>
    %1 = arith.truncf %0 : vector<8x768xf32> to vector<8x768xbf16>
    %c0_1 = arith.constant 0 : index
    %c0_2 = arith.constant 0 : index
    %2 = vector.load %arg5[%c0_1, %c0_2] : memref<768x128xbf16, #tpu.memory_space<vmem>>, vector<768x128xbf16>
    %cst = arith.constant dense<0.000000e+00> : vector<8x128xf32>
    %3 = tpu.matmul %1, %2, %cst {dimension_numbers = #tpu.dot_dimension_numbers<[1], [0], [0], [1], [0, 0, 1, 1], [], []>} : vector<8x768xbf16>, vector<768x128xbf16>, vector<8x128xf32> -> vector<8x128xf32>
    %c0_3 = arith.constant 0 : index
    %c0_4 = arith.constant 0 : index
    %4 = vector.load %arg6[%c0_3, %c0_4] : memref<1x128xf32, #tpu.memory_space<vmem>>, vector<1x128xf32>
    %5 = vector.broadcast %4 : vector<1x128xf32> to vector<8x128xf32>
    %6 = arith.addf %3, %5 : vector<8x128xf32>
    %c0_5 = arith.constant 0 : index
    %c0_6 = arith.constant 0 : index
    %7 = vector.load %arg3[%c0_5, %c0_6] : memref<1x128xf32, #tpu.memory_space<vmem>>, vector<1x128xf32>
    %c0_7 = arith.constant 0 : index
    %c0_8 = arith.constant 0 : index
    %8 = vector.load %arg2[%c0_7, %c0_8] : memref<1x128xf32, #tpu.memory_space<vmem>>, vector<1x128xf32>
    %c0_9 = arith.constant 0 : index
    %c0_10 = arith.constant 0 : index
    %9 = vector.load %arg4[%c0_9, %c0_10] : memref<5x128xf32, #tpu.memory_space<vmem>>, vector<1x128xf32>
    %10 = arith.addf %8, %9 : vector<1x128xf32>
    %c1 = arith.constant 1 : index
    %c0_11 = arith.constant 0 : index
    %11 = vector.load %arg4[%c1, %c0_11] : memref<5x128xf32, #tpu.memory_space<vmem>>, vector<4x128xf32>
    %c0_12 = arith.constant 0 : index
    %c0_13 = arith.constant 0 : index
    %12 = vector.load %arg25[%c0_12, %c0_13] : memref<12x128xf32, #tpu.memory_space<vmem>>, vector<1x128xf32>
    tpu.vector_store %arg25[%c0_12, %c0_13], %7 {strides = array<i32>} : memref<12x128xf32, #tpu.memory_space<vmem>>, vector<1x128xf32>,
    %c1_14 = arith.constant 1 : index
    %c0_15 = arith.constant 0 : index
    %13 = vector.load %arg25[%c1_14, %c0_15] : memref<12x128xf32, #tpu.memory_space<vmem>>, vector<1x128xf32>
    tpu.vector_store %arg25[%c1_14, %c0_15], %10 {strides = array<i32>} : memref<12x128xf32, #tpu.memory_space<vmem>>, vector<1x128xf32>,
    %14 = vector.extract_strided_slice %6 {offsets = [0, 0], sizes = [4, 128], strides = [1, 1]} : vector<8x128xf32> to vector<4x128xf32>
    %15 = arith.addf %14, %11 : vector<4x128xf32>
    %c2 = arith.constant 2 : index
    %c0_16 = arith.constant 0 : index
    %16 = vector.load %arg25[%c2, %c0_16] : memref<12x128xf32, #tpu.memory_space<vmem>>, vector<4x128xf32>
    tpu.vector_store %arg25[%c2, %c0_16], %15 {strides = array<i32>} : memref<12x128xf32, #tpu.memory_space<vmem>>, vector<4x128xf32>,
    %c6 = arith.constant 6 : index
    %c0_17 = arith.constant 0 : index
    %17 = vector.load %arg25[%c6, %c0_17] : memref<12x128xf32, #tpu.memory_space<vmem>>, vector<1x128xf32>
    tpu.vector_store %arg25[%c6, %c0_17], %7 {strides = array<i32>} : memref<12x128xf32, #tpu.memory_space<vmem>>, vector<1x128xf32>,
    %c7 = arith.constant 7 : index
    %c0_18 = arith.constant 0 : index
    %18 = vector.load %arg25[%c7, %c0_18] : memref<12x128xf32, #tpu.memory_space<vmem>>, vector<1x128xf32>
    tpu.vector_store %arg25[%c7, %c0_18], %10 {strides = array<i32>} : memref<12x128xf32, #tpu.memory_space<vmem>>, vector<1x128xf32>,
    %19 = vector.extract_strided_slice %6 {offsets = [4, 0], sizes = [4, 128], strides = [1, 1]} : vector<8x128xf32> to vector<4x128xf32>
    %20 = arith.addf %19, %11 : vector<4x128xf32>
    %c8 = arith.constant 8 : index
    %c0_19 = arith.constant 0 : index
    %21 = vector.load %arg25[%c8, %c0_19] : memref<12x128xf32, #tpu.memory_space<vmem>>, vector<4x128xf32>
    tpu.vector_store %arg25[%c8, %c0_19], %20 {strides = array<i32>} : memref<12x128xf32, #tpu.memory_space<vmem>>, vector<4x128xf32>,
    %c0_20 = arith.constant 0 : index
    %c0_21 = arith.constant 0 : index
    %22 = vector.load %arg25[%c0_20, %c0_21] : memref<12x128xf32, #tpu.memory_space<vmem>>, vector<12x128xf32>
    %c0_22 = arith.constant 0 : index
    %c0_23 = arith.constant 0 : index
    %23 = vector.load %arg1[%c0_22, %c0_23] : memref<12x12xf32, #tpu.memory_space<vmem>>, vector<12x12xf32>
    %c0_i32 = arith.constant 0 : i32
    %c12_i32 = arith.constant 12 : i32
    %24 = arith.addi %c0_i32, %c12_i32 : i32
    %c1_i32 = arith.constant 1 : i32
    %25 = scf.for %arg26 = %c0_i32 to %24 step %c1_i32 iter_args(%arg27 = %22) -> (vector<12x128xf32>)  : i32 {
      %61 = arith.index_cast %arg26 : i32 to index
      %c0_45 = arith.constant 0 : index
      %c0_46 = arith.constant 0 : index
      %62 = vector.load %arg7[%61, %c0_45, %c0_46] : memref<12x1x128xf32, #tpu.memory_space<vmem>>, vector<1x1x128xf32>
      %63 = vector.shape_cast %62 : vector<1x1x128xf32> to vector<1x128xf32>
      %64 = arith.index_cast %arg26 : i32 to index
      %c0_47 = arith.constant 0 : index
      %c0_48 = arith.constant 0 : index
      %65 = vector.load %arg8[%64, %c0_47, %c0_48] : memref<12x1x128xf32, #tpu.memory_space<vmem>>, vector<1x1x128xf32>
      %66 = vector.shape_cast %65 : vector<1x1x128xf32> to vector<1x128xf32>
      %cst_49 = arith.constant dense<0.000000e+00> : vector<12xf32>
      %67 = vector.multi_reduction <add>, %arg27, %cst_49 [1] : vector<12x128xf32> to vector<12xf32>
      %68 = vector.shape_cast %67 : vector<12xf32> to vector<12x1xf32>
      %cst_50 = arith.constant 1.280000e+02 : f32
      %69 = vector.broadcast %cst_50 : f32 to vector<12x1xf32>
      %70 = arith.divf %68, %69 : vector<12x1xf32>
      %71 = vector.broadcast %70 : vector<12x1xf32> to vector<12x128xf32>
      %72 = arith.subf %arg27, %71 : vector<12x128xf32>
      %73 = arith.mulf %72, %72 : vector<12x128xf32>
      %cst_51 = arith.constant dense<0.000000e+00> : vector<12xf32>
      %74 = vector.multi_reduction <add>, %73, %cst_51 [1] : vector<12x128xf32> to vector<12xf32>
      %75 = vector.shape_cast %74 : vector<12xf32> to vector<12x1xf32>
      %cst_52 = arith.constant 1.280000e+02 : f32
      %76 = vector.broadcast %cst_52 : f32 to vector<12x1xf32>
      %77 = arith.divf %75, %76 : vector<12x1xf32>
      %78 = vector.broadcast %70 : vector<12x1xf32> to vector<12x128xf32>
      %79 = arith.subf %arg27, %78 : vector<12x128xf32>
      %cst_53 = arith.constant 9.99999997E-7 : f32
      %80 = vector.broadcast %cst_53 : f32 to vector<12x1xf32>
      %81 = arith.addf %77, %80 : vector<12x1xf32>
      %82 = math.rsqrt %81 : vector<12x1xf32>
      %83 = vector.broadcast %82 : vector<12x1xf32> to vector<12x128xf32>
      %84 = arith.mulf %79, %83 : vector<12x128xf32>
      %85 = vector.broadcast %63 : vector<1x128xf32> to vector<12x128xf32>
      %86 = arith.mulf %84, %85 : vector<12x128xf32>
      %87 = vector.broadcast %66 : vector<1x128xf32> to vector<12x128xf32>
      %88 = arith.addf %86, %87 : vector<12x128xf32>
      %89 = arith.index_cast %arg26 : i32 to index
      %c0_54 = arith.constant 0 : index
      %c0_55 = arith.constant 0 : index
      %90 = vector.load %arg9[%89, %c0_54, %c0_55] : memref<12x128x384xbf16, #tpu.memory_space<vmem>>, vector<1x128x384xbf16>
      %91 = vector.shape_cast %90 : vector<1x128x384xbf16> to vector<128x384xbf16>
      %92 = arith.index_cast %arg26 : i32 to index
      %c0_56 = arith.constant 0 : index
      %c0_57 = arith.constant 0 : index
      %93 = vector.load %arg10[%92, %c0_56, %c0_57] : memref<12x1x384xf32, #tpu.memory_space<vmem>>, vector<1x1x384xf32>
      %94 = vector.shape_cast %93 : vector<1x1x384xf32> to vector<1x384xf32>
      %95 = arith.truncf %88 : vector<12x128xf32> to vector<12x128xbf16>
      %cst_58 = arith.constant dense<0.000000e+00> : vector<12x384xf32>
      %96 = tpu.matmul %95, %91, %cst_58 {dimension_numbers = #tpu.dot_dimension_numbers<[1], [0], [0], [1], [0, 0, 1, 1], [], []>} : vector<12x128xbf16>, vector<128x384xbf16>, vector<12x384xf32> -> vector<12x384xf32>
      %97 = vector.broadcast %94 : vector<1x384xf32> to vector<12x384xf32>
      %98 = arith.addf %96, %97 : vector<12x384xf32>
      %99 = vector.extract_strided_slice %98 {offsets = [0, 0], sizes = [12, 32], strides = [1, 1]} : vector<12x384xf32> to vector<12x32xf32>
      %100 = arith.truncf %99 : vector<12x32xf32> to vector<12x32xbf16>
      %101 = vector.extract_strided_slice %98 {offsets = [0, 128], sizes = [12, 32], strides = [1, 1]} : vector<12x384xf32> to vector<12x32xf32>
      %102 = arith.truncf %101 : vector<12x32xf32> to vector<12x32xbf16>
      %103 = vector.extract_strided_slice %98 {offsets = [0, 256], sizes = [12, 32], strides = [1, 1]} : vector<12x384xf32> to vector<12x32xf32>
      %104 = arith.truncf %103 : vector<12x32xf32> to vector<12x32xbf16>
      %cst_59 = arith.constant dense<0.000000e+00> : vector<12x12xf32>
      %105 = tpu.matmul %100, %102, %cst_59 {dimension_numbers = #tpu.dot_dimension_numbers<[1], [1], [0], [0], [0, 0, 1, 0], [], []>} : vector<12x32xbf16>, vector<12x32xbf16>, vector<12x12xf32> -> vector<12x12xf32>
      %cst_60 = arith.constant 0.176776692 : f32
      %106 = vector.broadcast %cst_60 : f32 to vector<12x12xf32>
      %107 = arith.mulf %105, %106 : vector<12x12xf32>
      %108 = arith.addf %107, %23 : vector<12x12xf32>
      %cst_61 = arith.constant dense<0xFF800000> : vector<12xf32>
      %109 = vector.multi_reduction <maximumf>, %108, %cst_61 [1] : vector<12x12xf32> to vector<12xf32>
      %110 = vector.shape_cast %109 : vector<12xf32> to vector<12x1xf32>
      %111 = vector.broadcast %110 : vector<12x1xf32> to vector<12x12xf32>
      %112 = arith.subf %108, %111 : vector<12x12xf32>
      %113 = math.exp %112 : vector<12x12xf32>
      %cst_62 = arith.constant dense<0.000000e+00> : vector<12xf32>
      %114 = vector.multi_reduction <add>, %113, %cst_62 [1] : vector<12x12xf32> to vector<12xf32>
      %115 = vector.shape_cast %114 : vector<12xf32> to vector<12x1xf32>
      %116 = tpu.reciprocal %115 {approx = true} : vector<12x1xf32> -> vector<12x1xf32>
      %117 = vector.broadcast %116 : vector<12x1xf32> to vector<12x12xf32>
      %118 = arith.mulf %113, %117 : vector<12x12xf32>
      %119 = arith.truncf %118 : vector<12x12xf32> to vector<12x12xbf16>
      %cst_63 = arith.constant dense<0.000000e+00> : vector<12x32xf32>
      %120 = tpu.matmul %119, %104, %cst_63 {dimension_numbers = #tpu.dot_dimension_numbers<[1], [0], [0], [1], [0, 0, 1, 1], [], []>} : vector<12x12xbf16>, vector<12x32xbf16>, vector<12x32xf32> -> vector<12x32xf32>
      %121 = vector.extract_strided_slice %98 {offsets = [0, 32], sizes = [12, 32], strides = [1, 1]} : vector<12x384xf32> to vector<12x32xf32>
      %122 = arith.truncf %121 : vector<12x32xf32> to vector<12x32xbf16>
      %123 = vector.extract_strided_slice %98 {offsets = [0, 160], sizes = [12, 32], strides = [1, 1]} : vector<12x384xf32> to vector<12x32xf32>
      %124 = arith.truncf %123 : vector<12x32xf32> to vector<12x32xbf16>
      %125 = vector.extract_strided_slice %98 {offsets = [0, 288], sizes = [12, 32], strides = [1, 1]} : vector<12x384xf32> to vector<12x32xf32>
      %126 = arith.truncf %125 : vector<12x32xf32> to vector<12x32xbf16>
      %cst_64 = arith.constant dense<0.000000e+00> : vector<12x12xf32>
      %127 = tpu.matmul %122, %124, %cst_64 {dimension_numbers = #tpu.dot_dimension_numbers<[1], [1], [0], [0], [0, 0, 1, 0], [], []>} : vector<12x32xbf16>, vector<12x32xbf16>, vector<12x12xf32> -> vector<12x12xf32>
      %cst_65 = arith.constant 0.176776692 : f32
      %128 = vector.broadcast %cst_65 : f32 to vector<12x12xf32>
      %129 = arith.mulf %127, %128 : vector<12x12xf32>
      %130 = arith.addf %129, %23 : vector<12x12xf32>
      %cst_66 = arith.constant dense<0xFF800000> : vector<12xf32>
      %131 = vector.multi_reduction <maximumf>, %130, %cst_66 [1] : vector<12x12xf32> to vector<12xf32>
      %132 = vector.shape_cast %131 : vector<12xf32> to vector<12x1xf32>
      %133 = vector.broadcast %132 : vector<12x1xf32> to vector<12x12xf32>
      %134 = arith.subf %130, %133 : vector<12x12xf32>
      %135 = math.exp %134 : vector<12x12xf32>
      %cst_67 = arith.constant dense<0.000000e+00> : vector<12xf32>
      %136 = vector.multi_reduction <add>, %135, %cst_67 [1] : vector<12x12xf32> to vector<12xf32>
      %137 = vector.shape_cast %136 : vector<12xf32> to vector<12x1xf32>
      %138 = tpu.reciprocal %137 {approx = true} : vector<12x1xf32> -> vector<12x1xf32>
      %139 = vector.broadcast %138 : vector<12x1xf32> to vector<12x12xf32>
      %140 = arith.mulf %135, %139 : vector<12x12xf32>
      %141 = arith.truncf %140 : vector<12x12xf32> to vector<12x12xbf16>
      %cst_68 = arith.constant dense<0.000000e+00> : vector<12x32xf32>
      %142 = tpu.matmul %141, %126, %cst_68 {dimension_numbers = #tpu.dot_dimension_numbers<[1], [0], [0], [1], [0, 0, 1, 1], [], []>} : vector<12x12xbf16>, vector<12x32xbf16>, vector<12x32xf32> -> vector<12x32xf32>
      %143 = vector.extract_strided_slice %98 {offsets = [0, 64], sizes = [12, 32], strides = [1, 1]} : vector<12x384xf32> to vector<12x32xf32>
      %144 = arith.truncf %143 : vector<12x32xf32> to vector<12x32xbf16>
      %145 = vector.extract_strided_slice %98 {offsets = [0, 192], sizes = [12, 32], strides = [1, 1]} : vector<12x384xf32> to vector<12x32xf32>
      %146 = arith.truncf %145 : vector<12x32xf32> to vector<12x32xbf16>
      %147 = vector.extract_strided_slice %98 {offsets = [0, 320], sizes = [12, 32], strides = [1, 1]} : vector<12x384xf32> to vector<12x32xf32>
      %148 = arith.truncf %147 : vector<12x32xf32> to vector<12x32xbf16>
      %cst_69 = arith.constant dense<0.000000e+00> : vector<12x12xf32>
      %149 = tpu.matmul %144, %146, %cst_69 {dimension_numbers = #tpu.dot_dimension_numbers<[1], [1], [0], [0], [0, 0, 1, 0], [], []>} : vector<12x32xbf16>, vector<12x32xbf16>, vector<12x12xf32> -> vector<12x12xf32>
      %cst_70 = arith.constant 0.176776692 : f32
      %150 = vector.broadcast %cst_70 : f32 to vector<12x12xf32>
      %151 = arith.mulf %149, %150 : vector<12x12xf32>
      %152 = arith.addf %151, %23 : vector<12x12xf32>
      %cst_71 = arith.constant dense<0xFF800000> : vector<12xf32>
      %153 = vector.multi_reduction <maximumf>, %152, %cst_71 [1] : vector<12x12xf32> to vector<12xf32>
      %154 = vector.shape_cast %153 : vector<12xf32> to vector<12x1xf32>
      %155 = vector.broadcast %154 : vector<12x1xf32> to vector<12x12xf32>
      %156 = arith.subf %152, %155 : vector<12x12xf32>
      %157 = math.exp %156 : vector<12x12xf32>
      %cst_72 = arith.constant dense<0.000000e+00> : vector<12xf32>
      %158 = vector.multi_reduction <add>, %157, %cst_72 [1] : vector<12x12xf32> to vector<12xf32>
      %159 = vector.shape_cast %158 : vector<12xf32> to vector<12x1xf32>
      %160 = tpu.reciprocal %159 {approx = true} : vector<12x1xf32> -> vector<12x1xf32>
      %161 = vector.broadcast %160 : vector<12x1xf32> to vector<12x12xf32>
      %162 = arith.mulf %157, %161 : vector<12x12xf32>
      %163 = arith.truncf %162 : vector<12x12xf32> to vector<12x12xbf16>
      %cst_73 = arith.constant dense<0.000000e+00> : vector<12x32xf32>
      %164 = tpu.matmul %163, %148, %cst_73 {dimension_numbers = #tpu.dot_dimension_numbers<[1], [0], [0], [1], [0, 0, 1, 1], [], []>} : vector<12x12xbf16>, vector<12x32xbf16>, vector<12x32xf32> -> vector<12x32xf32>
      %165 = vector.extract_strided_slice %98 {offsets = [0, 96], sizes = [12, 32], strides = [1, 1]} : vector<12x384xf32> to vector<12x32xf32>
      %166 = arith.truncf %165 : vector<12x32xf32> to vector<12x32xbf16>
      %167 = vector.extract_strided_slice %98 {offsets = [0, 224], sizes = [12, 32], strides = [1, 1]} : vector<12x384xf32> to vector<12x32xf32>
      %168 = arith.truncf %167 : vector<12x32xf32> to vector<12x32xbf16>
      %169 = vector.extract_strided_slice %98 {offsets = [0, 352], sizes = [12, 32], strides = [1, 1]} : vector<12x384xf32> to vector<12x32xf32>
      %170 = arith.truncf %169 : vector<12x32xf32> to vector<12x32xbf16>
      %cst_74 = arith.constant dense<0.000000e+00> : vector<12x12xf32>
      %171 = tpu.matmul %166, %168, %cst_74 {dimension_numbers = #tpu.dot_dimension_numbers<[1], [1], [0], [0], [0, 0, 1, 0], [], []>} : vector<12x32xbf16>, vector<12x32xbf16>, vector<12x12xf32> -> vector<12x12xf32>
      %cst_75 = arith.constant 0.176776692 : f32
      %172 = vector.broadcast %cst_75 : f32 to vector<12x12xf32>
      %173 = arith.mulf %171, %172 : vector<12x12xf32>
      %174 = arith.addf %173, %23 : vector<12x12xf32>
      %cst_76 = arith.constant dense<0xFF800000> : vector<12xf32>
      %175 = vector.multi_reduction <maximumf>, %174, %cst_76 [1] : vector<12x12xf32> to vector<12xf32>
      %176 = vector.shape_cast %175 : vector<12xf32> to vector<12x1xf32>
      %177 = vector.broadcast %176 : vector<12x1xf32> to vector<12x12xf32>
      %178 = arith.subf %174, %177 : vector<12x12xf32>
      %179 = math.exp %178 : vector<12x12xf32>
      %cst_77 = arith.constant dense<0.000000e+00> : vector<12xf32>
      %180 = vector.multi_reduction <add>, %179, %cst_77 [1] : vector<12x12xf32> to vector<12xf32>
      %181 = vector.shape_cast %180 : vector<12xf32> to vector<12x1xf32>
      %182 = tpu.reciprocal %181 {approx = true} : vector<12x1xf32> -> vector<12x1xf32>
      %183 = vector.broadcast %182 : vector<12x1xf32> to vector<12x12xf32>
      %184 = arith.mulf %179, %183 : vector<12x12xf32>
      %185 = arith.truncf %184 : vector<12x12xf32> to vector<12x12xbf16>
      %cst_78 = arith.constant dense<0.000000e+00> : vector<12x32xf32>
      %186 = tpu.matmul %185, %170, %cst_78 {dimension_numbers = #tpu.dot_dimension_numbers<[1], [0], [0], [1], [0, 0, 1, 1], [], []>} : vector<12x12xbf16>, vector<12x32xbf16>, vector<12x32xf32> -> vector<12x32xf32>
      %187 = tpu.concatenate %120, %142, %164, %186 in 1 : vector<12x32xf32>, vector<12x32xf32>, vector<12x32xf32>, vector<12x32xf32> -> vector<12x128xf32>
      %188 = arith.index_cast %arg26 : i32 to index
      %c0_79 = arith.constant 0 : index
      %c0_80 = arith.constant 0 : index
      %189 = vector.load %arg11[%188, %c0_79, %c0_80] : memref<12x128x128xbf16, #tpu.memory_space<vmem>>, vector<1x128x128xbf16>
      %190 = vector.shape_cast %189 : vector<1x128x128xbf16> to vector<128x128xbf16>
      %191 = arith.index_cast %arg26 : i32 to index
      %c0_81 = arith.constant 0 : index
      %c0_82 = arith.constant 0 : index
      %192 = vector.load %arg12[%191, %c0_81, %c0_82] : memref<12x1x128xf32, #tpu.memory_space<vmem>>, vector<1x1x128xf32>
      %193 = vector.shape_cast %192 : vector<1x1x128xf32> to vector<1x128xf32>
      %194 = arith.truncf %187 : vector<12x128xf32> to vector<12x128xbf16>
      %cst_83 = arith.constant dense<0.000000e+00> : vector<12x128xf32>
      %195 = tpu.matmul %194, %190, %cst_83 {dimension_numbers = #tpu.dot_dimension_numbers<[1], [0], [0], [1], [0, 0, 1, 1], [], []>} : vector<12x128xbf16>, vector<128x128xbf16>, vector<12x128xf32> -> vector<12x128xf32>
      %196 = vector.broadcast %193 : vector<1x128xf32> to vector<12x128xf32>
      %197 = arith.addf %195, %196 : vector<12x128xf32>
      %198 = arith.addf %arg27, %197 : vector<12x128xf32>
      %199 = arith.index_cast %arg26 : i32 to index
      %c0_84 = arith.constant 0 : index
      %c0_85 = arith.constant 0 : index
      %200 = vector.load %arg13[%199, %c0_84, %c0_85] : memref<12x1x128xf32, #tpu.memory_space<vmem>>, vector<1x1x128xf32>
      %201 = vector.shape_cast %200 : vector<1x1x128xf32> to vector<1x128xf32>
      %202 = arith.index_cast %arg26 : i32 to index
      %c0_86 = arith.constant 0 : index
      %c0_87 = arith.constant 0 : index
      %203 = vector.load %arg14[%202, %c0_86, %c0_87] : memref<12x1x128xf32, #tpu.memory_space<vmem>>, vector<1x1x128xf32>
      %204 = vector.shape_cast %203 : vector<1x1x128xf32> to vector<1x128xf32>
      %cst_88 = arith.constant dense<0.000000e+00> : vector<12xf32>
      %205 = vector.multi_reduction <add>, %198, %cst_88 [1] : vector<12x128xf32> to vector<12xf32>
      %206 = vector.shape_cast %205 : vector<12xf32> to vector<12x1xf32>
      %cst_89 = arith.constant 1.280000e+02 : f32
      %207 = vector.broadcast %cst_89 : f32 to vector<12x1xf32>
      %208 = arith.divf %206, %207 : vector<12x1xf32>
      %209 = vector.broadcast %208 : vector<12x1xf32> to vector<12x128xf32>
      %210 = arith.subf %198, %209 : vector<12x128xf32>
      %211 = arith.mulf %210, %210 : vector<12x128xf32>
      %cst_90 = arith.constant dense<0.000000e+00> : vector<12xf32>
      %212 = vector.multi_reduction <add>, %211, %cst_90 [1] : vector<12x128xf32> to vector<12xf32>
      %213 = vector.shape_cast %212 : vector<12xf32> to vector<12x1xf32>
      %cst_91 = arith.constant 1.280000e+02 : f32
      %214 = vector.broadcast %cst_91 : f32 to vector<12x1xf32>
      %215 = arith.divf %213, %214 : vector<12x1xf32>
      %216 = vector.broadcast %208 : vector<12x1xf32> to vector<12x128xf32>
      %217 = arith.subf %198, %216 : vector<12x128xf32>
      %cst_92 = arith.constant 9.99999997E-7 : f32
      %218 = vector.broadcast %cst_92 : f32 to vector<12x1xf32>
      %219 = arith.addf %215, %218 : vector<12x1xf32>
      %220 = math.rsqrt %219 : vector<12x1xf32>
      %221 = vector.broadcast %220 : vector<12x1xf32> to vector<12x128xf32>
      %222 = arith.mulf %217, %221 : vector<12x128xf32>
      %223 = vector.broadcast %201 : vector<1x128xf32> to vector<12x128xf32>
      %224 = arith.mulf %222, %223 : vector<12x128xf32>
      %225 = vector.broadcast %204 : vector<1x128xf32> to vector<12x128xf32>
      %226 = arith.addf %224, %225 : vector<12x128xf32>
      %227 = arith.index_cast %arg26 : i32 to index
      %c0_93 = arith.constant 0 : index
      %c0_94 = arith.constant 0 : index
      %228 = vector.load %arg15[%227, %c0_93, %c0_94] : memref<12x128x512xbf16, #tpu.memory_space<vmem>>, vector<1x128x512xbf16>
      %229 = vector.shape_cast %228 : vector<1x128x512xbf16> to vector<128x512xbf16>
      %230 = arith.index_cast %arg26 : i32 to index
      %c0_95 = arith.constant 0 : index
      %c0_96 = arith.constant 0 : index
      %231 = vector.load %arg16[%230, %c0_95, %c0_96] : memref<12x1x512xf32, #tpu.memory_space<vmem>>, vector<1x1x512xf32>
      %232 = vector.shape_cast %231 : vector<1x1x512xf32> to vector<1x512xf32>
      %233 = arith.truncf %226 : vector<12x128xf32> to vector<12x128xbf16>
      %cst_97 = arith.constant dense<0.000000e+00> : vector<12x512xf32>
      %234 = tpu.matmul %233, %229, %cst_97 {dimension_numbers = #tpu.dot_dimension_numbers<[1], [0], [0], [1], [0, 0, 1, 1], [], []>} : vector<12x128xbf16>, vector<128x512xbf16>, vector<12x512xf32> -> vector<12x512xf32>
      %235 = vector.broadcast %232 : vector<1x512xf32> to vector<12x512xf32>
      %236 = arith.addf %234, %235 : vector<12x512xf32>
      %237 = arith.mulf %236, %236 : vector<12x512xf32>
      %238 = arith.mulf %236, %237 : vector<12x512xf32>
      %cst_98 = arith.constant 4.471500e-02 : f32
      %239 = vector.broadcast %cst_98 : f32 to vector<12x512xf32>
      %240 = arith.mulf %239, %238 : vector<12x512xf32>
      %241 = arith.addf %236, %240 : vector<12x512xf32>
      %cst_99 = arith.constant 0.797884583 : f32
      %242 = vector.broadcast %cst_99 : f32 to vector<12x512xf32>
      %243 = arith.mulf %242, %241 : vector<12x512xf32>
      %244 = math.tanh %243 : vector<12x512xf32>
      %cst_100 = arith.constant 1.000000e+00 : f32
      %245 = vector.broadcast %cst_100 : f32 to vector<12x512xf32>
      %246 = arith.addf %245, %244 : vector<12x512xf32>
      %cst_101 = arith.constant 5.000000e-01 : f32
      %247 = vector.broadcast %cst_101 : f32 to vector<12x512xf32>
      %248 = arith.mulf %247, %246 : vector<12x512xf32>
      %249 = arith.mulf %236, %248 : vector<12x512xf32>
      %250 = arith.index_cast %arg26 : i32 to index
      %c0_102 = arith.constant 0 : index
      %c0_103 = arith.constant 0 : index
      %251 = vector.load %arg17[%250, %c0_102, %c0_103] : memref<12x512x128xbf16, #tpu.memory_space<vmem>>, vector<1x512x128xbf16>
      %252 = vector.shape_cast %251 : vector<1x512x128xbf16> to vector<512x128xbf16>
      %253 = arith.index_cast %arg26 : i32 to index
      %c0_104 = arith.constant 0 : index
      %c0_105 = arith.constant 0 : index
      %254 = vector.load %arg18[%253, %c0_104, %c0_105] : memref<12x1x128xf32, #tpu.memory_space<vmem>>, vector<1x1x128xf32>
      %255 = vector.shape_cast %254 : vector<1x1x128xf32> to vector<1x128xf32>
      %256 = arith.truncf %249 : vector<12x512xf32> to vector<12x512xbf16>
      %cst_106 = arith.constant dense<0.000000e+00> : vector<12x128xf32>
      %257 = tpu.matmul %256, %252, %cst_106 {dimension_numbers = #tpu.dot_dimension_numbers<[1], [0], [0], [1], [0, 0, 1, 1], [], []>} : vector<12x512xbf16>, vector<512x128xbf16>, vector<12x128xf32> -> vector<12x128xf32>
      %258 = vector.broadcast %255 : vector<1x128xf32> to vector<12x128xf32>
      %259 = arith.addf %257, %258 : vector<12x128xf32>
      %260 = arith.addf %198, %259 : vector<12x128xf32>
      scf.yield %260 : vector<12x128xf32>
    }
    %c12_i32_24 = arith.constant 12 : i32
    %c0_25 = arith.constant 0 : index
    %c0_26 = arith.constant 0 : index
    %26 = vector.load %arg19[%c0_25, %c0_26] : memref<1x128xf32, #tpu.memory_space<vmem>>, vector<1x128xf32>
    %c0_27 = arith.constant 0 : index
    %c0_28 = arith.constant 0 : index
    %27 = vector.load %arg20[%c0_27, %c0_28] : memref<1x128xf32, #tpu.memory_space<vmem>>, vector<1x128xf32>
    %cst_29 = arith.constant dense<0.000000e+00> : vector<12xf32>
    %28 = vector.multi_reduction <add>, %25, %cst_29 [1] : vector<12x128xf32> to vector<12xf32>
    %29 = vector.shape_cast %28 : vector<12xf32> to vector<12x1xf32>
    %cst_30 = arith.constant 1.280000e+02 : f32
    %30 = vector.broadcast %cst_30 : f32 to vector<12x1xf32>
    %31 = arith.divf %29, %30 : vector<12x1xf32>
    %32 = vector.broadcast %31 : vector<12x1xf32> to vector<12x128xf32>
    %33 = arith.subf %25, %32 : vector<12x128xf32>
    %34 = arith.mulf %33, %33 : vector<12x128xf32>
    %cst_31 = arith.constant dense<0.000000e+00> : vector<12xf32>
    %35 = vector.multi_reduction <add>, %34, %cst_31 [1] : vector<12x128xf32> to vector<12xf32>
    %36 = vector.shape_cast %35 : vector<12xf32> to vector<12x1xf32>
    %cst_32 = arith.constant 1.280000e+02 : f32
    %37 = vector.broadcast %cst_32 : f32 to vector<12x1xf32>
    %38 = arith.divf %36, %37 : vector<12x1xf32>
    %39 = vector.broadcast %31 : vector<12x1xf32> to vector<12x128xf32>
    %40 = arith.subf %25, %39 : vector<12x128xf32>
    %cst_33 = arith.constant 9.99999997E-7 : f32
    %41 = vector.broadcast %cst_33 : f32 to vector<12x1xf32>
    %42 = arith.addf %38, %41 : vector<12x1xf32>
    %43 = math.rsqrt %42 : vector<12x1xf32>
    %44 = vector.broadcast %43 : vector<12x1xf32> to vector<12x128xf32>
    %45 = arith.mulf %40, %44 : vector<12x128xf32>
    %46 = vector.broadcast %26 : vector<1x128xf32> to vector<12x128xf32>
    %47 = arith.mulf %45, %46 : vector<12x128xf32>
    %48 = vector.broadcast %27 : vector<1x128xf32> to vector<12x128xf32>
    %49 = arith.addf %47, %48 : vector<12x128xf32>
    %c0_34 = arith.constant 0 : index
    %c0_35 = arith.constant 0 : index
    %50 = vector.load %arg24[%c0_34, %c0_35] : memref<12x128xf32, #tpu.memory_space<vmem>>, vector<12x128xf32>
    tpu.vector_store %arg24[%c0_34, %c0_35], %49 {strides = array<i32>} : memref<12x128xf32, #tpu.memory_space<vmem>>, vector<12x128xf32>,
    %c0_36 = arith.constant 0 : index
    %c0_37 = arith.constant 0 : index
    %51 = vector.load %arg21[%c0_36, %c0_37] : memref<128x128xbf16, #tpu.memory_space<vmem>>, vector<128x128xbf16>
    %c0_38 = arith.constant 0 : index
    %c0_39 = arith.constant 0 : index
    %52 = vector.load %arg22[%c0_38, %c0_39] : memref<1x128xf32, #tpu.memory_space<vmem>>, vector<1x128xf32>
    %53 = arith.truncf %49 : vector<12x128xf32> to vector<12x128xbf16>
    %cst_40 = arith.constant dense<0.000000e+00> : vector<12x128xf32>
    %54 = tpu.matmul %53, %51, %cst_40 {dimension_numbers = #tpu.dot_dimension_numbers<[1], [0], [0], [1], [0, 0, 1, 1], [], []>} : vector<12x128xbf16>, vector<128x128xbf16>, vector<12x128xf32> -> vector<12x128xf32>
    %55 = vector.broadcast %52 : vector<1x128xf32> to vector<12x128xf32>
    %56 = arith.addf %54, %55 : vector<12x128xf32>
    %57 = vector.extract_strided_slice %56 {offsets = [0, 0], sizes = [1, 128], strides = [1, 1]} : vector<12x128xf32> to vector<1x128xf32>
    %c0_41 = arith.constant 0 : index
    %c0_42 = arith.constant 0 : index
    %58 = vector.load %arg23[%c0_41, %c0_42] : memref<2x128xf32, #tpu.memory_space<vmem>>, vector<1x128xf32>
    tpu.vector_store %arg23[%c0_41, %c0_42], %57 {strides = array<i32>} : memref<2x128xf32, #tpu.memory_space<vmem>>, vector<1x128xf32>,
    %59 = vector.extract_strided_slice %56 {offsets = [6, 0], sizes = [1, 128], strides = [1, 1]} : vector<12x128xf32> to vector<1x128xf32>
    %c1_43 = arith.constant 1 : index
    %c0_44 = arith.constant 0 : index
    %60 = vector.load %arg23[%c1_43, %c0_44] : memref<2x128xf32, #tpu.memory_space<vmem>>, vector<1x128xf32>
    tpu.vector_store %arg23[%c1_43, %c0_44], %59 {strides = array<i32>} : memref<2x128xf32, #tpu.memory_space<vmem>>, vector<1x128xf32>,
    return
  }
}

</mosaic_0001>

<llo_original>
// kernel: _lambda_.1
$region0: #{_lambda_.1}
  #allocation0 [shape = 'u32[]', space=smem, size = 0x4, offset = 0x4, fixed_abs, tag = 'smem constant byte address 0x4 - core index']
  #allocation1 [shape = 'u32[144,128]{1,0:T(1,128)}', space=vmem, size = 0x12000, scoped, tag = 'internal scratch']
  #allocation2 [shape = 'f32[12,128]{1,0:T(8,128)}', space=vmem, size = 0x2000, scoped, tag = 'scratch operand']
  %s0 = inlined_call_operand.vmem [shape: f32[8,768], index: 0, kind: input, shape index: {}]
  %s1 = inlined_call_operand.hbm [shape: f32[12,12], index: 1, kind: input, shape index: {}]
  %s2 = inlined_call_operand.hbm [shape: f32[1,128], index: 2, kind: input, shape index: {}]
  %s3 = inlined_call_operand.hbm [shape: f32[1,128], index: 3, kind: input, shape index: {}]
  %s4 = inlined_call_operand.hbm [shape: f32[5,128], index: 4, kind: input, shape index: {}]
  %s5 = inlined_call_operand.hbm [shape: bf16[768,128], index: 5, kind: input, shape index: {}]
  %s6 = inlined_call_operand.hbm [shape: f32[1,128], index: 6, kind: input, shape index: {}]
  %s7 = inlined_call_operand.hbm [shape: f32[12,1,128], index: 7, kind: input, shape index: {}]
  %s8 = inlined_call_operand.hbm [shape: f32[12,1,128], index: 8, kind: input, shape index: {}]
  %s9 = inlined_call_operand.hbm [shape: bf16[12,128,384], index: 9, kind: input, shape index: {}]
  %s10 = inlined_call_operand.hbm [shape: f32[12,1,384], index: 10, kind: input, shape index: {}]
  %s11 = inlined_call_operand.hbm [shape: bf16[12,128,128], index: 11, kind: input, shape index: {}]
  %s12 = inlined_call_operand.hbm [shape: f32[12,1,128], index: 12, kind: input, shape index: {}]
  %s13 = inlined_call_operand.hbm [shape: f32[12,1,128], index: 13, kind: input, shape index: {}]
  %s14 = inlined_call_operand.hbm [shape: f32[12,1,128], index: 14, kind: input, shape index: {}]
  %s15 = inlined_call_operand.hbm [shape: bf16[12,128,512], index: 15, kind: input, shape index: {}]
  %s16 = inlined_call_operand.hbm [shape: f32[12,1,512], index: 16, kind: input, shape index: {}]
  %s17 = inlined_call_operand.hbm [shape: bf16[12,512,128], index: 17, kind: input, shape index: {}]
  %s18 = inlined_call_operand.hbm [shape: f32[12,1,128], index: 18, kind: input, shape index: {}]
  %s19 = inlined_call_operand.hbm [shape: f32[1,128], index: 19, kind: input, shape index: {}]
  %s20 = inlined_call_operand.hbm [shape: f32[1,128], index: 20, kind: input, shape index: {}]
  %s21 = inlined_call_operand.hbm [shape: bf16[128,128], index: 21, kind: input, shape index: {}]
  %s22 = inlined_call_operand.hbm [shape: f32[1,128], index: 22, kind: input, shape index: {}]
  %s23 = inlined_call_operand.hbm [shape: f32[2,128], index: 23, kind: output, shape index: {0}]
  %s24 = inlined_call_operand.hbm [shape: f32[12,128], index: 24, kind: output, shape index: {1}]
  %25 = xla_tuple %s23, %s24
  %s26 = sld [smem:[#allocation0]]
  $region205: #{_lambda_.1} parent=0
    _
  %s28 = ssub.s32 1, %s26
  %s29 = scalar_select 0, %s28, %s26
  $region1: #{_lambda_.1} parent=0
    #allocation3 [shape = 'u8[8192]{0}', space=vmem, size = 0x2000, scoped, tag = 'input window, operand 1, single buffered']
    #allocation4 [shape = 's32[1]{0}', space=sflag, size = 0x4, scoped, tag = 'scoped memory for _lambda_.1']
    #allocation5 [shape = 's32[1]{0}', space=sflag, size = 0x4, scoped, tag = 'scoped memory for _lambda_.1']
    #allocation6 [shape = 'u8[512]{0}', space=vmem, size = 0x400, scoped, tag = 'input window, operand 2, single buffered']
    #allocation7 [shape = 's32[1]{0}', space=sflag, size = 0x4, scoped, tag = 'scoped memory for _lambda_.1']
    #allocation8 [shape = 'u8[512]{0}', space=vmem, size = 0x400, scoped, tag = 'input window, operand 3, single buffered']
    #allocation9 [shape = 'u8[4096]{0}', space=vmem, size = 0x1000, scoped, tag = 'input window, operand 4, single buffered']
    #allocation10 [shape = 's32[1]{0}', space=sflag, size = 0x4, scoped, tag = 'scoped memory for _lambda_.1']
    #allocation11 [shape = 'u8[196608]{0}', space=vmem, size = 0x30000, scoped, tag = 'input window, operand 5, single buffered']
    #allocation12 [shape = 'u8[512]{0}', space=vmem, size = 0x400, scoped, tag = 'input window, operand 6, single buffered']
    #allocation13 [shape = 's32[1]{0}', space=sflag, size = 0x4, scoped, tag = 'scoped memory for _lambda_.1']
    #allocation14 [shape = 'u8[6144]{0}', space=vmem, size = 0x1800, scoped, tag = 'input window, operand 7, single buffered']
    #allocation15 [shape = 'u8[6144]{0}', space=vmem, size = 0x1800, scoped, tag = 'input window, operand 8, single buffered']
    #allocation16 [shape = 's32[1]{0}', space=sflag, size = 0x4, scoped, tag = 'scoped memory for _lambda_.1']
    #allocation17 [shape = 'u8[1179648]{0}', space=vmem, size = 0x120000, scoped, tag = 'input window, operand 9, single buffered']
    #allocation18 [shape = 'u8[18432]{0}', space=vmem, size = 0x4800, scoped, tag = 'input window, operand 10, single buffered']
    #allocation19 [shape = 's32[1]{0}', space=sflag, size = 0x4, scoped, tag = 'scoped memory for _lambda_.1']
    #allocation20 [shape = 'u8[393216]{0}', space=vmem, size = 0x60000, scoped, tag = 'input window, operand 11, single buffered']
    #allocation21 [shape = 'u8[6144]{0}', space=vmem, size = 0x1800, scoped, tag = 'input window, operand 12, single buffered']
    #allocation22 [shape = 's32[1]{0}', space=sflag, size = 0x4, scoped, tag = 'scoped memory for _lambda_.1']
    #allocation23 [shape = 'u8[6144]{0}', space=vmem, size = 0x1800, scoped, tag = 'input window, operand 13, single buffered']
    #allocation24 [shape = 'u8[6144]{0}', space=vmem, size = 0x1800, scoped, tag = 'input window, operand 14, single buffered']
    #allocation25 [shape = 's32[1]{0}', space=sflag, size = 0x4, scoped, tag = 'scoped memory for _lambda_.1']
    #allocation26 [shape = 'u8[1572864]{0}', space=vmem, size = 0x180000, scoped, tag = 'input window, operand 15, single buffered']
    #allocation27 [shape = 'u8[24576]{0}', space=vmem, size = 0x6000, scoped, tag = 'input window, operand 16, single buffered']
    #allocation28 [shape = 's32[1]{0}', space=sflag, size = 0x4, scoped, tag = 'scoped memory for _lambda_.1']
    #allocation29 [shape = 'u8[1572864]{0}', space=vmem, size = 0x180000, scoped, tag = 'input window, operand 17, single buffered']
    #allocation30 [shape = 'u8[6144]{0}', space=vmem, size = 0x1800, scoped, tag = 'input window, operand 18, single buffered']
    #allocation31 [shape = 's32[1]{0}', space=sflag, size = 0x4, scoped, tag = 'scoped memory for _lambda_.1']
    #allocation32 [shape = 'u8[512]{0}', space=vmem, size = 0x400, scoped, tag = 'input window, operand 19, single buffered']
    #allocation33 [shape = 'u8[512]{0}', space=vmem, size = 0x400, scoped, tag = 'input window, operand 20, single buffered']
    #allocation34 [shape = 's32[1]{0}', space=sflag, size = 0x4, scoped, tag = 'scoped memory for _lambda_.1']
    #allocation35 [shape = 'u8[32768]{0}', space=vmem, size = 0x8000, scoped, tag = 'input window, operand 21, single buffered']
    #allocation36 [shape = 'u8[512]{0}', space=vmem, size = 0x400, scoped, tag = 'input window, operand 22, single buffered']
    #allocation37 [shape = 's32[1]{0}', space=sflag, size = 0x4, scoped, tag = 'scoped memory for _lambda_.1']
    #allocation38 [shape = 'u8[1024]{0}', space=vmem, size = 0x400, scoped, tag = 'output window, operand 0, single buffered']
    #allocation39 [shape = 'u8[8192]{0}', space=vmem, size = 0x2000, scoped, tag = 'output window, operand 1, single buffered']
    #allocation40 [shape = 's32[1]{0}', space=sflag, size = 0x4, scoped, tag = 'scoped memory for _lambda_.1']
    %30 = vsyncpa [#allocation4], 0
    %31 = vsyncpa [#allocation7], 0
    %32 = vsyncpa [#allocation10], 0
    %33 = vsyncpa [#allocation13], 0
    %34 = vsyncpa [#allocation16], 0
    %35 = vsyncpa [#allocation19], 0
    %36 = vsyncpa [#allocation22], 0
    %37 = vsyncpa [#allocation25], 0
    %38 = vsyncpa [#allocation28], 0
    %39 = vsyncpa [#allocation31], 0
    %40 = vsyncpa [#allocation34], 0
    %41 = vsyncpa [#allocation37], 0
    %42 = vsyncpa [#allocation5], 0
    %43 = vsyncpa [#allocation40], 0
    // Predicated region
    $region2: #{_lambda_.1} parent=1 // pred_check
      _
    $region3: #{_lambda_.1} parent=1 // pred_check_branch
      %45 = sbr.rel (0) target = $region5
    $region4: #{_lambda_.1} parent=1 // pred_region
      _
    $region5: #{_lambda_.1} parent=1 // pred_fallthru
      _
    // Predicated region
    $region6: #{_lambda_.1} parent=1 // pred_check
      _
    $region7: #{_lambda_.1} parent=1 // pred_check_branch
      %47 = sbr.rel (0) target = $region9
    $region8: #{_lambda_.1} parent=1 // pred_region
      %s49 = ssub.s32 256, 256
      %50 = vsyncadd [#allocation4], %s49
      %s51 = sshll.u32 [#allocation3], 4
      %s52 = int_to_ptr.vmem [resolvable:$true] %s51
      %57 = dma.hbm_to_vmem [thread:$0]  %s1, 256, %s52, [#allocation4], 128, 128, 8
    $region9: #{_lambda_.1} parent=1 // pred_fallthru
      _
    // Predicated region
    $region10: #{_lambda_.1} parent=1 // pred_check
      _
    $region11: #{_lambda_.1} parent=1 // pred_check_branch
      %59 = sbr.rel (0) target = $region13
    $region12: #{_lambda_.1} parent=1 // pred_region
      %s61 = ssub.s32 16, 16
      %62 = vsyncadd [#allocation7], %s61
      %s64 = sshll.u32 [#allocation6], 4
      %s65 = int_to_ptr.vmem [resolvable:$true] %s64
      %67 = dma.hbm_to_vmem [thread:$0]  %s2, 16, %s65, [#allocation7]
    $region13: #{_lambda_.1} parent=1 // pred_fallthru
      _
    // Predicated region
    $region14: #{_lambda_.1} parent=1 // pred_check
      _
    $region15: #{_lambda_.1} parent=1 // pred_check_branch
      %69 = sbr.rel (0) target = $region17
    $region16: #{_lambda_.1} parent=1 // pred_region
      %s71 = ssub.s32 16, 16
      %72 = vsyncadd [#allocation7], %s71
      %s74 = sshll.u32 [#allocation8], 4
      %s75 = int_to_ptr.vmem [resolvable:$true] %s74
      %77 = dma.hbm_to_vmem [thread:$0]  %s3, 16, %s75, [#allocation7]
    $region17: #{_lambda_.1} parent=1 // pred_fallthru
      _
    // Predicated region
    $region18: #{_lambda_.1} parent=1 // pred_check
      _
    $region19: #{_lambda_.1} parent=1 // pred_check_branch
      %79 = sbr.rel (0) target = $region21
    $region20: #{_lambda_.1} parent=1 // pred_region
      %s81 = ssub.s32 128, 128
      %82 = vsyncadd [#allocation10], %s81
      %s84 = sshll.u32 [#allocation9], 4
      %s85 = int_to_ptr.vmem [resolvable:$true] %s84
      %87 = dma.hbm_to_vmem [thread:$0]  %s4, 128, %s85, [#allocation10]
    $region21: #{_lambda_.1} parent=1 // pred_fallthru
      _
    // Predicated region
    $region22: #{_lambda_.1} parent=1 // pred_check
      _
    $region23: #{_lambda_.1} parent=1 // pred_check_branch
      %89 = sbr.rel (0) target = $region25
    $region24: #{_lambda_.1} parent=1 // pred_region
      %s91 = ssub.s32 6144, 6144
      %92 = vsyncadd [#allocation10], %s91
      %s93 = sshll.u32 [#allocation11], 4
      %s94 = int_to_ptr.vmem [resolvable:$true] %s93
      %99 = dma.hbm_to_vmem [thread:$0]  %s5, 6144, %s94, [#allocation10], 64, 64, 4
    $region25: #{_lambda_.1} parent=1 // pred_fallthru
      _
    // Predicated region
    $region26: #{_lambda_.1} parent=1 // pred_check
      _
    $region27: #{_lambda_.1} parent=1 // pred_check_branch
      %101 = sbr.rel (0) target = $region29
    $region28: #{_lambda_.1} parent=1 // pred_region
      %s103 = ssub.s32 16, 16
      %104 = vsyncadd [#allocation13], %s103
      %s106 = sshll.u32 [#allocation12], 4
      %s107 = int_to_ptr.vmem [resolvable:$true] %s106
      %109 = dma.hbm_to_vmem [thread:$0]  %s6, 16, %s107, [#allocation13]
    $region29: #{_lambda_.1} parent=1 // pred_fallthru
      _
    // Predicated region
    $region30: #{_lambda_.1} parent=1 // pred_check
      _
    $region31: #{_lambda_.1} parent=1 // pred_check_branch
      %111 = sbr.rel (0) target = $region33
    $region32: #{_lambda_.1} parent=1 // pred_region
      %s113 = ssub.s32 192, 192
      %114 = vsyncadd [#allocation13], %s113
      %s115 = sshll.u32 [#allocation14], 4
      %s116 = int_to_ptr.vmem [resolvable:$true] %s115
      %121 = dma.hbm_to_vmem [thread:$0]  %s7, 192, %s116, [#allocation13], 16, 16, 1
    $region33: #{_lambda_.1} parent=1 // pred_fallthru
      _
    // Predicated region
    $region34: #{_lambda_.1} parent=1 // pred_check
      _
    $region35: #{_lambda_.1} parent=1 // pred_check_branch
      %123 = sbr.rel (0) target = $region37
    $region36: #{_lambda_.1} parent=1 // pred_region
      %s125 = ssub.s32 192, 192
      %126 = vsyncadd [#allocation16], %s125
      %s127 = sshll.u32 [#allocation15], 4
      %s128 = int_to_ptr.vmem [resolvable:$true] %s127
      %133 = dma.hbm_to_vmem [thread:$0]  %s8, 192, %s128, [#allocation16], 16, 16, 1
    $region37: #{_lambda_.1} parent=1 // pred_fallthru
      _
    // Predicated region
    $region38: #{_lambda_.1} parent=1 // pred_check
      _
    $region39: #{_lambda_.1} parent=1 // pred_check_branch
      %135 = sbr.rel (0) target = $region41
    $region40: #{_lambda_.1} parent=1 // pred_region
      %s137 = ssub.s32 36864, 36864
      %138 = vsyncadd [#allocation16], %s137
      %s139 = sshll.u32 [#allocation17], 4
      %s140 = int_to_ptr.vmem [resolvable:$true] %s139
      %145 = dma.hbm_to_vmem [thread:$0]  %s9, 36864, %s140, [#allocation16], 192, 192, 12
    $region41: #{_lambda_.1} parent=1 // pred_fallthru
      _
    // Predicated region
    $region42: #{_lambda_.1} parent=1 // pred_check
      _
    $region43: #{_lambda_.1} parent=1 // pred_check_branch
      %147 = sbr.rel (0) target = $region45
    $region44: #{_lambda_.1} parent=1 // pred_region
      %s149 = ssub.s32 576, 576
      %150 = vsyncadd [#allocation19], %s149
      %s151 = sshll.u32 [#allocation18], 4
      %s152 = int_to_ptr.vmem [resolvable:$true] %s151
      %157 = dma.hbm_to_vmem [thread:$0]  %s10, 576, %s152, [#allocation19], 48, 48, 3
    $region45: #{_lambda_.1} parent=1 // pred_fallthru
      _
    // Predicated region
    $region46: #{_lambda_.1} parent=1 // pred_check
      _
    $region47: #{_lambda_.1} parent=1 // pred_check_branch
      %159 = sbr.rel (0) target = $region49
    $region48: #{_lambda_.1} parent=1 // pred_region
      %s161 = ssub.s32 12288, 12288
      %162 = vsyncadd [#allocation19], %s161
      %s163 = sshll.u32 [#allocation20], 4
      %s164 = int_to_ptr.vmem [resolvable:$true] %s163
      %169 = dma.hbm_to_vmem [thread:$0]  %s11, 12288, %s164, [#allocation19], 64, 64, 4
    $region49: #{_lambda_.1} parent=1 // pred_fallthru
      _
    // Predicated region
    $region50: #{_lambda_.1} parent=1 // pred_check
      _
    $region51: #{_lambda_.1} parent=1 // pred_check_branch
      %171 = sbr.rel (0) target = $region53
    $region52: #{_lambda_.1} parent=1 // pred_region
      %s173 = ssub.s32 192, 192
      %174 = vsyncadd [#allocation22], %s173
      %s175 = sshll.u32 [#allocation21], 4
      %s176 = int_to_ptr.vmem [resolvable:$true] %s175
      %181 = dma.hbm_to_vmem [thread:$0]  %s12, 192, %s176, [#allocation22], 16, 16, 1
    $region53: #{_lambda_.1} parent=1 // pred_fallthru
      _
    // Predicated region
    $region54: #{_lambda_.1} parent=1 // pred_check
      _
    $region55: #{_lambda_.1} parent=1 // pred_check_branch
      %183 = sbr.rel (0) target = $region57
    $region56: #{_lambda_.1} parent=1 // pred_region
      %s185 = ssub.s32 192, 192
      %186 = vsyncadd [#allocation22], %s185
      %s187 = sshll.u32 [#allocation23], 4
      %s188 = int_to_ptr.vmem [resolvable:$true] %s187
      %193 = dma.hbm_to_vmem [thread:$0]  %s13, 192, %s188, [#allocation22], 16, 16, 1
    $region57: #{_lambda_.1} parent=1 // pred_fallthru
      _
    // Predicated region
    $region58: #{_lambda_.1} parent=1 // pred_check
      _
    $region59: #{_lambda_.1} parent=1 // pred_check_branch
      %195 = sbr.rel (0) target = $region61
    $region60: #{_lambda_.1} parent=1 // pred_region
      %s197 = ssub.s32 192, 192
      %198 = vsyncadd [#allocation25], %s197
      %s199 = sshll.u32 [#allocation24], 4
      %s200 = int_to_ptr.vmem [resolvable:$true] %s199
      %205 = dma.hbm_to_vmem [thread:$0]  %s14, 192, %s200, [#allocation25], 16, 16, 1
    $region61: #{_lambda_.1} parent=1 // pred_fallthru
      _
    // Predicated region
    $region62: #{_lambda_.1} parent=1 // pred_check
      _
    $region63: #{_lambda_.1} parent=1 // pred_check_branch
      %207 = sbr.rel (0) target = $region65
    $region64: #{_lambda_.1} parent=1 // pred_region
      %s209 = ssub.s32 49152, 49152
      %210 = vsyncadd [#allocation25], %s209
      %s211 = sshll.u32 [#allocation26], 4
      %s212 = int_to_ptr.vmem [resolvable:$true] %s211
      %217 = dma.hbm_to_vmem [thread:$0]  %s15, 49152, %s212, [#allocation25], 256, 256, 16
    $region65: #{_lambda_.1} parent=1 // pred_fallthru
      _
    // Predicated region
    $region66: #{_lambda_.1} parent=1 // pred_check
      _
    $region67: #{_lambda_.1} parent=1 // pred_check_branch
      %219 = sbr.rel (0) target = $region69
    $region68: #{_lambda_.1} parent=1 // pred_region
      %s221 = ssub.s32 768, 768
      %222 = vsyncadd [#allocation28], %s221
      %s223 = sshll.u32 [#allocation27], 4
      %s224 = int_to_ptr.vmem [resolvable:$true] %s223
      %229 = dma.hbm_to_vmem [thread:$0]  %s16, 768, %s224, [#allocation28], 64, 64, 4
    $region69: #{_lambda_.1} parent=1 // pred_fallthru
      _
    // Predicated region
    $region70: #{_lambda_.1} parent=1 // pred_check
      _
    $region71: #{_lambda_.1} parent=1 // pred_check_branch
      %231 = sbr.rel (0) target = $region73
    $region72: #{_lambda_.1} parent=1 // pred_region
      %s233 = ssub.s32 49152, 49152
      %234 = vsyncadd [#allocation28], %s233
      %s235 = sshll.u32 [#allocation29], 4
      %s236 = int_to_ptr.vmem [resolvable:$true] %s235
      %241 = dma.hbm_to_vmem [thread:$0]  %s17, 49152, %s236, [#allocation28], 64, 64, 4
    $region73: #{_lambda_.1} parent=1 // pred_fallthru
      _
    // Predicated region
    $region74: #{_lambda_.1} parent=1 // pred_check
      _
    $region75: #{_lambda_.1} parent=1 // pred_check_branch
      %243 = sbr.rel (0) target = $region77
    $region76: #{_lambda_.1} parent=1 // pred_region
      %s245 = ssub.s32 192, 192
      %246 = vsyncadd [#allocation31], %s245
      %s247 = sshll.u32 [#allocation30], 4
      %s248 = int_to_ptr.vmem [resolvable:$true] %s247
      %253 = dma.hbm_to_vmem [thread:$0]  %s18, 192, %s248, [#allocation31], 16, 16, 1
    $region77: #{_lambda_.1} parent=1 // pred_fallthru
      _
    // Predicated region
    $region78: #{_lambda_.1} parent=1 // pred_check
      _
    $region79: #{_lambda_.1} parent=1 // pred_check_branch
      %255 = sbr.rel (0) target = $region81
    $region80: #{_lambda_.1} parent=1 // pred_region
      %s257 = ssub.s32 16, 16
      %258 = vsyncadd [#allocation31], %s257
      %s260 = sshll.u32 [#allocation32], 4
      %s261 = int_to_ptr.vmem [resolvable:$true] %s260
      %263 = dma.hbm_to_vmem [thread:$0]  %s19, 16, %s261, [#allocation31]
    $region81: #{_lambda_.1} parent=1 // pred_fallthru
      _
    // Predicated region
    $region82: #{_lambda_.1} parent=1 // pred_check
      _
    $region83: #{_lambda_.1} parent=1 // pred_check_branch
      %265 = sbr.rel (0) target = $region85
    $region84: #{_lambda_.1} parent=1 // pred_region
      %s267 = ssub.s32 16, 16
      %268 = vsyncadd [#allocation34], %s267
      %s270 = sshll.u32 [#allocation33], 4
      %s271 = int_to_ptr.vmem [resolvable:$true] %s270
      %273 = dma.hbm_to_vmem [thread:$0]  %s20, 16, %s271, [#allocation34]
    $region85: #{_lambda_.1} parent=1 // pred_fallthru
      _
    // Predicated region
    $region86: #{_lambda_.1} parent=1 // pred_check
      _
    $region87: #{_lambda_.1} parent=1 // pred_check_branch
      %275 = sbr.rel (0) target = $region89
    $region88: #{_lambda_.1} parent=1 // pred_region
      %s277 = ssub.s32 1024, 1024
      %278 = vsyncadd [#allocation34], %s277
      %s279 = sshll.u32 [#allocation35], 4
      %s280 = int_to_ptr.vmem [resolvable:$true] %s279
      %285 = dma.hbm_to_vmem [thread:$0]  %s21, 1024, %s280, [#allocation34], 64, 64, 4
    $region89: #{_lambda_.1} parent=1 // pred_fallthru
      _
    // Predicated region
    $region90: #{_lambda_.1} parent=1 // pred_check
      _
    $region91: #{_lambda_.1} parent=1 // pred_check_branch
      %287 = sbr.rel (0) target = $region93
    $region92: #{_lambda_.1} parent=1 // pred_region
      %s289 = ssub.s32 16, 16
      %290 = vsyncadd [#allocation37], %s289
      %s292 = sshll.u32 [#allocation36], 4
      %s293 = int_to_ptr.vmem [resolvable:$true] %s292
      %295 = dma.hbm_to_vmem [thread:$0]  %s22, 16, %s293, [#allocation37]
    $region93: #{_lambda_.1} parent=1 // pred_fallthru
      _
    // Predicated region
    $region94: #{_lambda_.1} parent=1 // pred_check
      _
    $region95: #{_lambda_.1} parent=1 // pred_check_branch
      %297 = sbr.rel (0) target = $region97
    $region96: #{_lambda_.1} parent=1 // pred_region
      %298 = dma.done [#allocation4], 256
    $region97: #{_lambda_.1} parent=1 // pred_fallthru
      _
    // Predicated region
    $region98: #{_lambda_.1} parent=1 // pred_check
      _
    $region99: #{_lambda_.1} parent=1 // pred_check_branch
      %300 = sbr.rel (0) target = $region101
    $region100: #{_lambda_.1} parent=1 // pred_region
      %301 = dma.done [#allocation7], 16
    $region101: #{_lambda_.1} parent=1 // pred_fallthru
      _
    // Predicated region
    $region102: #{_lambda_.1} parent=1 // pred_check
      _
    $region103: #{_lambda_.1} parent=1 // pred_check_branch
      %303 = sbr.rel (0) target = $region105
    $region104: #{_lambda_.1} parent=1 // pred_region
      %304 = dma.done [#allocation7], 16
    $region105: #{_lambda_.1} parent=1 // pred_fallthru
      _
    // Predicated region
    $region106: #{_lambda_.1} parent=1 // pred_check
      _
    $region107: #{_lambda_.1} parent=1 // pred_check_branch
      %306 = sbr.rel (0) target = $region109
    $region108: #{_lambda_.1} parent=1 // pred_region
      %307 = dma.done [#allocation10], 128
    $region109: #{_lambda_.1} parent=1 // pred_fallthru
      _
    // Predicated region
    $region110: #{_lambda_.1} parent=1 // pred_check
      _
    $region111: #{_lambda_.1} parent=1 // pred_check_branch
      %309 = sbr.rel (0) target = $region113
    $region112: #{_lambda_.1} parent=1 // pred_region
      %310 = dma.done [#allocation10], 6144
    $region113: #{_lambda_.1} parent=1 // pred_fallthru
      _
    // Predicated region
    $region114: #{_lambda_.1} parent=1 // pred_check
      _
    $region115: #{_lambda_.1} parent=1 // pred_check_branch
      %312 = sbr.rel (0) target = $region117
    $region116: #{_lambda_.1} parent=1 // pred_region
      %313 = dma.done [#allocation13], 16
    $region117: #{_lambda_.1} parent=1 // pred_fallthru
      _
    // Predicated region
    $region118: #{_lambda_.1} parent=1 // pred_check
      _
    $region119: #{_lambda_.1} parent=1 // pred_check_branch
      %315 = sbr.rel (0) target = $region121
    $region120: #{_lambda_.1} parent=1 // pred_region
      %316 = dma.done [#allocation13], 192
    $region121: #{_lambda_.1} parent=1 // pred_fallthru
      _
    // Predicated region
    $region122: #{_lambda_.1} parent=1 // pred_check
      _
    $region123: #{_lambda_.1} parent=1 // pred_check_branch
      %318 = sbr.rel (0) target = $region125
    $region124: #{_lambda_.1} parent=1 // pred_region
      %319 = dma.done [#allocation16], 192
    $region125: #{_lambda_.1} parent=1 // pred_fallthru
      _
    // Predicated region
    $region126: #{_lambda_.1} parent=1 // pred_check
      _
    $region127: #{_lambda_.1} parent=1 // pred_check_branch
      %321 = sbr.rel (0) target = $region129
    $region128: #{_lambda_.1} parent=1 // pred_region
      %322 = dma.done [#allocation16], 36864
    $region129: #{_lambda_.1} parent=1 // pred_fallthru
      _
    // Predicated region
    $region130: #{_lambda_.1} parent=1 // pred_check
      _
    $region131: #{_lambda_.1} parent=1 // pred_check_branch
      %324 = sbr.rel (0) target = $region133
    $region132: #{_lambda_.1} parent=1 // pred_region
      %325 = dma.done [#allocation19], 576
    $region133: #{_lambda_.1} parent=1 // pred_fallthru
      _
    // Predicated region
    $region134: #{_lambda_.1} parent=1 // pred_check
      _
    $region135: #{_lambda_.1} parent=1 // pred_check_branch
      %327 = sbr.rel (0) target = $region137
    $region136: #{_lambda_.1} parent=1 // pred_region
      %328 = dma.done [#allocation19], 12288
    $region137: #{_lambda_.1} parent=1 // pred_fallthru
      _
    // Predicated region
    $region138: #{_lambda_.1} parent=1 // pred_check
      _
    $region139: #{_lambda_.1} parent=1 // pred_check_branch
      %330 = sbr.rel (0) target = $region141
    $region140: #{_lambda_.1} parent=1 // pred_region
      %331 = dma.done [#allocation22], 192
    $region141: #{_lambda_.1} parent=1 // pred_fallthru
      _
    // Predicated region
    $region142: #{_lambda_.1} parent=1 // pred_check
      _
    $region143: #{_lambda_.1} parent=1 // pred_check_branch
      %333 = sbr.rel (0) target = $region145
    $region144: #{_lambda_.1} parent=1 // pred_region
      %334 = dma.done [#allocation22], 192
    $region145: #{_lambda_.1} parent=1 // pred_fallthru
      _
    // Predicated region
    $region146: #{_lambda_.1} parent=1 // pred_check
      _
    $region147: #{_lambda_.1} parent=1 // pred_check_branch
      %336 = sbr.rel (0) target = $region149
    $region148: #{_lambda_.1} parent=1 // pred_region
      %337 = dma.done [#allocation25], 192
    $region149: #{_lambda_.1} parent=1 // pred_fallthru
      _
    // Predicated region
    $region150: #{_lambda_.1} parent=1 // pred_check
      _
    $region151: #{_lambda_.1} parent=1 // pred_check_branch
      %339 = sbr.rel (0) target = $region153
    $region152: #{_lambda_.1} parent=1 // pred_region
      %340 = dma.done [#allocation25], 49152
    $region153: #{_lambda_.1} parent=1 // pred_fallthru
      _
    // Predicated region
    $region154: #{_lambda_.1} parent=1 // pred_check
      _
    $region155: #{_lambda_.1} parent=1 // pred_check_branch
      %342 = sbr.rel (0) target = $region157
    $region156: #{_lambda_.1} parent=1 // pred_region
      %343 = dma.done [#allocation28], 768
    $region157: #{_lambda_.1} parent=1 // pred_fallthru
      _
    // Predicated region
    $region158: #{_lambda_.1} parent=1 // pred_check
      _
    $region159: #{_lambda_.1} parent=1 // pred_check_branch
      %345 = sbr.rel (0) target = $region161
    $region160: #{_lambda_.1} parent=1 // pred_region
      %346 = dma.done [#allocation28], 49152
    $region161: #{_lambda_.1} parent=1 // pred_fallthru
      _
    // Predicated region
    $region162: #{_lambda_.1} parent=1 // pred_check
      _
    $region163: #{_lambda_.1} parent=1 // pred_check_branch
      %348 = sbr.rel (0) target = $region165
    $region164: #{_lambda_.1} parent=1 // pred_region
      %349 = dma.done [#allocation31], 192
    $region165: #{_lambda_.1} parent=1 // pred_fallthru
      _
    // Predicated region
    $region166: #{_lambda_.1} parent=1 // pred_check
      _
    $region167: #{_lambda_.1} parent=1 // pred_check_branch
      %351 = sbr.rel (0) target = $region169
    $region168: #{_lambda_.1} parent=1 // pred_region
      %352 = dma.done [#allocation31], 16
    $region169: #{_lambda_.1} parent=1 // pred_fallthru
      _
    // Predicated region
    $region170: #{_lambda_.1} parent=1 // pred_check
      _
    $region171: #{_lambda_.1} parent=1 // pred_check_branch
      %354 = sbr.rel (0) target = $region173
    $region172: #{_lambda_.1} parent=1 // pred_region
      %355 = dma.done [#allocation34], 16
    $region173: #{_lambda_.1} parent=1 // pred_fallthru
      _
    // Predicated region
    $region174: #{_lambda_.1} parent=1 // pred_check
      _
    $region175: #{_lambda_.1} parent=1 // pred_check_branch
      %357 = sbr.rel (0) target = $region177
    $region176: #{_lambda_.1} parent=1 // pred_region
      %358 = dma.done [#allocation34], 1024
    $region177: #{_lambda_.1} parent=1 // pred_fallthru
      _
    // Predicated region
    $region178: #{_lambda_.1} parent=1 // pred_check
      _
    $region179: #{_lambda_.1} parent=1 // pred_check_branch
      %360 = sbr.rel (0) target = $region181
    $region180: #{_lambda_.1} parent=1 // pred_region
      %361 = dma.done [#allocation37], 16
    $region181: #{_lambda_.1} parent=1 // pred_fallthru
      _
    %v363 = vld [vmem:[%s0] sm:$0xff]
    %v364 = vld [vmem:[%s0 + $0x8] sm:$0xff]
    %v365 = vld [vmem:[%s0 + $0x10] sm:$0xff]
    %v366 = vld [vmem:[%s0 + $0x18] sm:$0xff]
    %v367 = vld [vmem:[%s0 + $0x20] sm:$0xff]
    %v368 = vld [vmem:[%s0 + $0x28] sm:$0xff]
    %v369 = vpack.c.bf16 %v363, %v363
    %v370 = vpack.c.bf16 %v364, %v364
    %v371 = vpack.c.bf16 %v365, %v365
    %v372 = vpack.c.bf16 %v366, %v366
    %v373 = vpack.c.bf16 %v367, %v367
    %v374 = vpack.c.bf16 %v368, %v368
    %v375 = vld [vmem:[#allocation11] sm:$0xf]
    %v376 = vld [vmem:[#allocation11 + $0x4] sm:$0xf]
    %v377 = vld [vmem:[#allocation11 + $0x8] sm:$0xf]
    %v378 = vld [vmem:[#allocation11 + $0xc] sm:$0xf]
    %v379 = vld [vmem:[#allocation11 + $0x10] sm:$0xf]
    %v380 = vld [vmem:[#allocation11 + $0x14] sm:$0xf]
    %v381 = vld [vmem:[#allocation11 + $0x18] sm:$0xf]
    %v382 = vld [vmem:[#allocation11 + $0x1c] sm:$0xf]
    %v383 = vld [vmem:[#allocation11 + $0x20] sm:$0xf]
    %v384 = vld [vmem:[#allocation11 + $0x24] sm:$0xf]
    %v385 = vld [vmem:[#allocation11 + $0x28] sm:$0xf]
    %v386 = vld [vmem:[#allocation11 + $0x2c] sm:$0xf]
    %v387 = vld [vmem:[#allocation11 + $0x30] sm:$0xf]
    %v388 = vld [vmem:[#allocation11 + $0x34] sm:$0xf]
    %v389 = vld [vmem:[#allocation11 + $0x38] sm:$0xf]
    %v390 = vld [vmem:[#allocation11 + $0x3c] sm:$0xf]
    %v391 = vld [vmem:[#allocation11 + $0x40] sm:$0xf]
    %v392 = vld [vmem:[#allocation11 + $0x44] sm:$0xf]
    %v393 = vld [vmem:[#allocation11 + $0x48] sm:$0xf]
    %v394 = vld [vmem:[#allocation11 + $0x4c] sm:$0xf]
    %v395 = vld [vmem:[#allocation11 + $0x50] sm:$0xf]
    %v396 = vld [vmem:[#allocation11 + $0x54] sm:$0xf]
    %v397 = vld [vmem:[#allocation11 + $0x58] sm:$0xf]
    %v398 = vld [vmem:[#allocation11 + $0x5c] sm:$0xf]
    %v399 = vld [vmem:[#allocation11 + $0x60] sm:$0xf]
    %v400 = vld [vmem:[#allocation11 + $0x64] sm:$0xf]
    %v401 = vld [vmem:[#allocation11 + $0x68] sm:$0xf]
    %v402 = vld [vmem:[#allocation11 + $0x6c] sm:$0xf]
    %v403 = vld [vmem:[#allocation11 + $0x70] sm:$0xf]
    %v404 = vld [vmem:[#allocation11 + $0x74] sm:$0xf]
    %v405 = vld [vmem:[#allocation11 + $0x78] sm:$0xf]
    %v406 = vld [vmem:[#allocation11 + $0x7c] sm:$0xf]
    %v407 = vld [vmem:[#allocation11 + $0x80] sm:$0xf]
    %v408 = vld [vmem:[#allocation11 + $0x84] sm:$0xf]
    %v409 = vld [vmem:[#allocation11 + $0x88] sm:$0xf]
    %v410 = vld [vmem:[#allocation11 + $0x8c] sm:$0xf]
    %v411 = vld [vmem:[#allocation11 + $0x90] sm:$0xf]
    %v412 = vld [vmem:[#allocation11 + $0x94] sm:$0xf]
    %v413 = vld [vmem:[#allocation11 + $0x98] sm:$0xf]
    %v414 = vld [vmem:[#allocation11 + $0x9c] sm:$0xf]
    %v415 = vld [vmem:[#allocation11 + $0xa0] sm:$0xf]
    %v416 = vld [vmem:[#allocation11 + $0xa4] sm:$0xf]
    %v417 = vld [vmem:[#allocation11 + $0xa8] sm:$0xf]
    %v418 = vld [vmem:[#allocation11 + $0xac] sm:$0xf]
    %v419 = vld [vmem:[#allocation11 + $0xb0] sm:$0xf]
    %v420 = vld [vmem:[#allocation11 + $0xb4] sm:$0xf]
    %v421 = vld [vmem:[#allocation11 + $0xb8] sm:$0xf]
    %v422 = vld [vmem:[#allocation11 + $0xbc] sm:$0xf]
    %v423 = vld [vmem:[#allocation11 + $0xc0] sm:$0xf]
    %v424 = vld [vmem:[#allocation11 + $0xc4] sm:$0xf]
    %v425 = vld [vmem:[#allocation11 + $0xc8] sm:$0xf]
    %v426 = vld [vmem:[#allocation11 + $0xcc] sm:$0xf]
    %v427 = vld [vmem:[#allocation11 + $0xd0] sm:$0xf]
    %v428 = vld [vmem:[#allocation11 + $0xd4] sm:$0xf]
    %v429 = vld [vmem:[#allocation11 + $0xd8] sm:$0xf]
    %v430 = vld [vmem:[#allocation11 + $0xdc] sm:$0xf]
    %v431 = vld [vmem:[#allocation11 + $0xe0] sm:$0xf]
    %v432 = vld [vmem:[#allocation11 + $0xe4] sm:$0xf]
    %v433 = vld [vmem:[#allocation11 + $0xe8] sm:$0xf]
    %v434 = vld [vmem:[#allocation11 + $0xec] sm:$0xf]
    %v435 = vld [vmem:[#allocation11 + $0xf0] sm:$0xf]
    %v436 = vld [vmem:[#allocation11 + $0xf4] sm:$0xf]
    %v437 = vld [vmem:[#allocation11 + $0xf8] sm:$0xf]
    %v438 = vld [vmem:[#allocation11 + $0xfc] sm:$0xf]
    %v439 = vld [vmem:[#allocation11 + $0x100] sm:$0xf]
    %v440 = vld [vmem:[#allocation11 + $0x104] sm:$0xf]
    %v441 = vld [vmem:[#allocation11 + $0x108] sm:$0xf]
    %v442 = vld [vmem:[#allocation11 + $0x10c] sm:$0xf]
    %v443 = vld [vmem:[#allocation11 + $0x110] sm:$0xf]
    %v444 = vld [vmem:[#allocation11 + $0x114] sm:$0xf]
    %v445 = vld [vmem:[#allocation11 + $0x118] sm:$0xf]
    %v446 = vld [vmem:[#allocation11 + $0x11c] sm:$0xf]
    %v447 = vld [vmem:[#allocation11 + $0x120] sm:$0xf]
    %v448 = vld [vmem:[#allocation11 + $0x124] sm:$0xf]
    %v449 = vld [vmem:[#allocation11 + $0x128] sm:$0xf]
    %v450 = vld [vmem:[#allocation11 + $0x12c] sm:$0xf]
    %v451 = vld [vmem:[#allocation11 + $0x130] sm:$0xf]
    %v452 = vld [vmem:[#allocation11 + $0x134] sm:$0xf]
    %v453 = vld [vmem:[#allocation11 + $0x138] sm:$0xf]
    %v454 = vld [vmem:[#allocation11 + $0x13c] sm:$0xf]
    %v455 = vld [vmem:[#allocation11 + $0x140] sm:$0xf]
    %v456 = vld [vmem:[#allocation11 + $0x144] sm:$0xf]
    %v457 = vld [vmem:[#allocation11 + $0x148] sm:$0xf]
    %v458 = vld [vmem:[#allocation11 + $0x14c] sm:$0xf]
    %v459 = vld [vmem:[#allocation11 + $0x150] sm:$0xf]
    %v460 = vld [vmem:[#allocation11 + $0x154] sm:$0xf]
    %v461 = vld [vmem:[#allocation11 + $0x158] sm:$0xf]
    %v462 = vld [vmem:[#allocation11 + $0x15c] sm:$0xf]
    %v463 = vld [vmem:[#allocation11 + $0x160] sm:$0xf]
    %v464 = vld [vmem:[#allocation11 + $0x164] sm:$0xf]
    %v465 = vld [vmem:[#allocation11 + $0x168] sm:$0xf]
    %v466 = vld [vmem:[#allocation11 + $0x16c] sm:$0xf]
    %v467 = vld [vmem:[#allocation11 + $0x170] sm:$0xf]
    %v468 = vld [vmem:[#allocation11 + $0x174] sm:$0xf]
    %v469 = vld [vmem:[#allocation11 + $0x178] sm:$0xf]
    %v470 = vld [vmem:[#allocation11 + $0x17c] sm:$0xf]
    %v471 = vld [vmem:[#allocation12] sm:$0x1]
    %v473 = vlaneseq
    %v474 = vshrl.u32 %v473, 7
    %v475 = vsub.s32 0, %v474
    %v476 = vrot.slane %v471, %v475
    %v574 = vunpack.c.l.b16 %v375
    %v575 = vunpack.c.l.b16 %v376
    %v576 = vunpack.c.l.b16 %v377
    %v577 = vunpack.c.l.b16 %v378
    %v578 = vunpack.c.l.b16 %v379
    %v579 = vunpack.c.l.b16 %v380
    %v580 = vunpack.c.l.b16 %v381
    %v581 = vunpack.c.l.b16 %v382
    %v582 = vunpack.c.l.b16 %v383
    %v583 = vunpack.c.l.b16 %v384
    %v584 = vunpack.c.l.b16 %v385
    %v585 = vunpack.c.l.b16 %v386
    %v586 = vunpack.c.l.b16 %v387
    %v587 = vunpack.c.l.b16 %v388
    %v588 = vunpack.c.l.b16 %v389
    %v589 = vunpack.c.l.b16 %v390
    %v590 = vunpack.c.l.b16 %v391
    %v591 = vunpack.c.l.b16 %v392
    %v592 = vunpack.c.l.b16 %v393
    %v593 = vunpack.c.l.b16 %v394
    %v594 = vunpack.c.l.b16 %v395
    %v595 = vunpack.c.l.b16 %v396
    %v596 = vunpack.c.l.b16 %v397
    %v597 = vunpack.c.l.b16 %v398
    %v598 = vunpack.c.l.b16 %v399
    %v599 = vunpack.c.l.b16 %v400
    %v600 = vunpack.c.l.b16 %v401
    %v601 = vunpack.c.l.b16 %v402
    %v602 = vunpack.c.l.b16 %v403
    %v603 = vunpack.c.l.b16 %v404
    %v604 = vunpack.c.l.b16 %v405
    %v605 = vunpack.c.l.b16 %v406
    %v606 = vunpack.c.l.b16 %v407
    %v607 = vunpack.c.l.b16 %v408
    %v608 = vunpack.c.l.b16 %v409
    %v609 = vunpack.c.l.b16 %v410
    %v610 = vunpack.c.l.b16 %v411
    %v611 = vunpack.c.l.b16 %v412
    %v612 = vunpack.c.l.b16 %v413
    %v613 = vunpack.c.l.b16 %v414
    %v614 = vunpack.c.l.b16 %v415
    %v615 = vunpack.c.l.b16 %v416
    %v616 = vunpack.c.l.b16 %v417
    %v617 = vunpack.c.l.b16 %v418
    %v618 = vunpack.c.l.b16 %v419
    %v619 = vunpack.c.l.b16 %v420
    %v620 = vunpack.c.l.b16 %v421
    %v621 = vunpack.c.l.b16 %v422
    %v622 = vunpack.c.l.b16 %v423
    %v623 = vunpack.c.l.b16 %v424
    %v624 = vunpack.c.l.b16 %v425
    %v625 = vunpack.c.l.b16 %v426
    %v626 = vunpack.c.l.b16 %v427
    %v627 = vunpack.c.l.b16 %v428
    %v628 = vunpack.c.l.b16 %v429
    %v629 = vunpack.c.l.b16 %v430
    %v630 = vunpack.c.l.b16 %v431
    %v631 = vunpack.c.l.b16 %v432
    %v632 = vunpack.c.l.b16 %v433
    %v633 = vunpack.c.l.b16 %v434
    %v634 = vunpack.c.l.b16 %v435
    %v635 = vunpack.c.l.b16 %v436
    %v636 = vunpack.c.l.b16 %v437
    %v637 = vunpack.c.l.b16 %v438
    %v638 = vunpack.c.l.b16 %v439
    %v639 = vunpack.c.l.b16 %v440
    %v640 = vunpack.c.l.b16 %v441
    %v641 = vunpack.c.l.b16 %v442
    %v642 = vunpack.c.l.b16 %v443
    %v643 = vunpack.c.l.b16 %v444
    %v644 = vunpack.c.l.b16 %v445
    %v645 = vunpack.c.l.b16 %v446
    %v646 = vunpack.c.l.b16 %v447
    %v647 = vunpack.c.l.b16 %v448
    %v648 = vunpack.c.l.b16 %v449
    %v649 = vunpack.c.l.b16 %v450
    %v650 = vunpack.c.l.b16 %v451
    %v651 = vunpack.c.l.b16 %v452
    %v652 = vunpack.c.l.b16 %v453
    %v653 = vunpack.c.l.b16 %v454
    %v654 = vunpack.c.l.b16 %v455
    %v655 = vunpack.c.l.b16 %v456
    %v656 = vunpack.c.l.b16 %v457
    %v657 = vunpack.c.l.b16 %v458
    %v658 = vunpack.c.l.b16 %v459
    %v659 = vunpack.c.l.b16 %v460
    %v660 = vunpack.c.l.b16 %v461
    %v661 = vunpack.c.l.b16 %v462
    %v662 = vunpack.c.l.b16 %v463
    %v663 = vunpack.c.l.b16 %v464
    %v664 = vunpack.c.l.b16 %v465
    %v665 = vunpack.c.l.b16 %v466
    %v666 = vunpack.c.l.b16 %v467
    %v667 = vunpack.c.l.b16 %v468
    %v668 = vunpack.c.l.b16 %v469
    %v669 = vunpack.c.l.b16 %v470
    %v670 = vpack.c.b16 %v575, %v574
    %v671 = vpack.c.b16 %v577, %v576
    %v672 = vpack.c.b16 %v579, %v578
    %v673 = vpack.c.b16 %v581, %v580
    %v674 = vpack.c.b16 %v583, %v582
    %v675 = vpack.c.b16 %v585, %v584
    %v676 = vpack.c.b16 %v587, %v586
    %v677 = vpack.c.b16 %v589, %v588
    %v678 = vpack.c.b16 %v591, %v590
    %v679 = vpack.c.b16 %v593, %v592
    %v680 = vpack.c.b16 %v595, %v594
    %v681 = vpack.c.b16 %v597, %v596
    %v682 = vpack.c.b16 %v599, %v598
    %v683 = vpack.c.b16 %v601, %v600
    %v684 = vpack.c.b16 %v603, %v602
    %v685 = vpack.c.b16 %v605, %v604
    %v686 = vpack.c.b16 %v607, %v606
    %v687 = vpack.c.b16 %v609, %v608
    %v688 = vpack.c.b16 %v611, %v610
    %v689 = vpack.c.b16 %v613, %v612
    %v690 = vpack.c.b16 %v615, %v614
    %v691 = vpack.c.b16 %v617, %v616
    %v692 = vpack.c.b16 %v619, %v618
    %v693 = vpack.c.b16 %v621, %v620
    %v694 = vpack.c.b16 %v623, %v622
    %v695 = vpack.c.b16 %v625, %v624
    %v696 = vpack.c.b16 %v627, %v626
    %v697 = vpack.c.b16 %v629, %v628
    %v698 = vpack.c.b16 %v631, %v630
    %v699 = vpack.c.b16 %v633, %v632
    %v700 = vpack.c.b16 %v635, %v634
    %v701 = vpack.c.b16 %v637, %v636
    %v702 = vpack.c.b16 %v639, %v638
    %v703 = vpack.c.b16 %v641, %v640
    %v704 = vpack.c.b16 %v643, %v642
    %v705 = vpack.c.b16 %v645, %v644
    %v706 = vpack.c.b16 %v647, %v646
    %v707 = vpack.c.b16 %v649, %v648
    %v708 = vpack.c.b16 %v651, %v650
    %v709 = vpack.c.b16 %v653, %v652
    %v710 = vpack.c.b16 %v655, %v654
    %v711 = vpack.c.b16 %v657, %v656
    %v712 = vpack.c.b16 %v659, %v658
    %v713 = vpack.c.b16 %v661, %v660
    %v714 = vpack.c.b16 %v663, %v662
    %v715 = vpack.c.b16 %v665, %v664
    %v716 = vpack.c.b16 %v667, %v666
    %v717 = vpack.c.b16 %v669, %v668
    %766 = vmatprep.subr.bf16.mxu0 0
    %767 = vmatpush1.bf16.msra.mxu0 %v670
    %768 = vmatprep.subr.bf16.mxu0 0
    %769 = vmatpush1.bf16.msra.mxu0 %v671
    %770 = vmatprep.subr.bf16.mxu0 0
    %771 = vmatpush1.bf16.msra.mxu0 %v672
    %772 = vmatprep.subr.bf16.mxu0 0
    %773 = vmatpush1.bf16.msra.mxu0 %v673
    %774 = vmatprep.subr.bf16.mxu0 0
    %775 = vmatpush1.bf16.msra.mxu0 %v674
    %776 = vmatprep.subr.bf16.mxu0 0
    %777 = vmatpush1.bf16.msra.mxu0 %v675
    %778 = vmatprep.subr.bf16.mxu0 0
    %779 = vmatpush1.bf16.msra.mxu0 %v676
    %780 = vmatprep.subr.bf16.mxu0 0
    %781 = vmatpush1.bf16.msra.mxu0 %v677
    %782 = vmatprep.subr.bf16.mxu0 0
    %783 = vmatpush1.bf16.msra.mxu0 %v678
    %784 = vmatprep.subr.bf16.mxu0 0
    %785 = vmatpush1.bf16.msra.mxu0 %v679
    %786 = vmatprep.subr.bf16.mxu0 0
    %787 = vmatpush1.bf16.msra.mxu0 %v680
    %788 = vmatprep.subr.bf16.mxu0 0
    %789 = vmatpush1.bf16.msra.mxu0 %v681
    %790 = vmatprep.subr.bf16.mxu0 0
    %791 = vmatpush1.bf16.msra.mxu0 %v682
    %792 = vmatprep.subr.bf16.mxu0 0
    %793 = vmatpush1.bf16.msra.mxu0 %v683
    %794 = vmatprep.subr.bf16.mxu0 0
    %795 = vmatpush1.bf16.msra.mxu0 %v684
    %796 = vmatprep.subr.bf16.mxu0 0
    %797 = vmatpush1.bf16.msra.mxu0 %v685
    %798 = vmatprep.mubr.bf16.mxu0 %v370
    %799 = vmatmul.mubr.bf16.gmra.mrb[0].mxu0 %v369
    %v800 = vpop.f32.mrb[0].mxu0
    %v801 = vadd.f32 %v476, %v800
    %v802 = vpop.f32.mrb[0].mxu0
    %v803 = vpop.f32.mrb[0].mxu0
    %v804 = vpop.f32.mrb[0].mxu0
    %805 = vdwg.mxu0
    %806 = vmatprep.subr.bf16.mxu0 0
    %807 = vmatpush1.bf16.msra.mxu0 %v686
    %808 = vmatprep.subr.bf16.mxu0 0
    %809 = vmatpush1.bf16.msra.mxu0 %v687
    %810 = vmatprep.subr.bf16.mxu0 0
    %811 = vmatpush1.bf16.msra.mxu0 %v688
    %812 = vmatprep.subr.bf16.mxu0 0
    %813 = vmatpush1.bf16.msra.mxu0 %v689
    %814 = vmatprep.subr.bf16.mxu0 0
    %815 = vmatpush1.bf16.msra.mxu0 %v690
    %816 = vmatprep.subr.bf16.mxu0 0
    %817 = vmatpush1.bf16.msra.mxu0 %v691
    %818 = vmatprep.subr.bf16.mxu0 0
    %819 = vmatpush1.bf16.msra.mxu0 %v692
    %820 = vmatprep.subr.bf16.mxu0 0
    %821 = vmatpush1.bf16.msra.mxu0 %v693
    %822 = vmatprep.subr.bf16.mxu0 0
    %823 = vmatpush1.bf16.msra.mxu0 %v694
    %824 = vmatprep.subr.bf16.mxu0 0
    %825 = vmatpush1.bf16.msra.mxu0 %v695
    %826 = vmatprep.subr.bf16.mxu0 0
    %827 = vmatpush1.bf16.msra.mxu0 %v696
    %828 = vmatprep.subr.bf16.mxu0 0
    %829 = vmatpush1.bf16.msra.mxu0 %v697
    %830 = vmatprep.subr.bf16.mxu0 0
    %831 = vmatpush1.bf16.msra.mxu0 %v698
    %832 = vmatprep.subr.bf16.mxu0 0
    %833 = vmatpush1.bf16.msra.mxu0 %v699
    %834 = vmatprep.subr.bf16.mxu0 0
    %835 = vmatpush1.bf16.msra.mxu0 %v700
    %836 = vmatprep.subr.bf16.mxu0 0
    %837 = vmatpush1.bf16.msra.mxu0 %v701
    %838 = vmatprep.mubr.bf16.mxu0 %v372
    %839 = vmatmul.mubr.bf16.gmra.mrb[0].mxu0 %v371
    %v840 = vpop.f32.mrb[0].mxu0
    %v841 = vadd.f32 %v801, %v840
    %v842 = vpop.f32.mrb[0].mxu0
    %v843 = vpop.f32.mrb[0].mxu0
    %v844 = vpop.f32.mrb[0].mxu0
    %845 = vdwg.mxu0
    %846 = vmatprep.subr.bf16.mxu0 0
    %847 = vmatpush1.bf16.msra.mxu0 %v702
    %848 = vmatprep.subr.bf16.mxu0 0
    %849 = vmatpush1.bf16.msra.mxu0 %v703
    %850 = vmatprep.subr.bf16.mxu0 0
    %851 = vmatpush1.bf16.msra.mxu0 %v704
    %852 = vmatprep.subr.bf16.mxu0 0
    %853 = vmatpush1.bf16.msra.mxu0 %v705
    %854 = vmatprep.subr.bf16.mxu0 0
    %855 = vmatpush1.bf16.msra.mxu0 %v706
    %856 = vmatprep.subr.bf16.mxu0 0
    %857 = vmatpush1.bf16.msra.mxu0 %v707
    %858 = vmatprep.subr.bf16.mxu0 0
    %859 = vmatpush1.bf16.msra.mxu0 %v708
    %860 = vmatprep.subr.bf16.mxu0 0
    %861 = vmatpush1.bf16.msra.mxu0 %v709
    %862 = vmatprep.subr.bf16.mxu0 0
    %863 = vmatpush1.bf16.msra.mxu0 %v710
    %864 = vmatprep.subr.bf16.mxu0 0
    %865 = vmatpush1.bf16.msra.mxu0 %v711
    %866 = vmatprep.subr.bf16.mxu0 0
    %867 = vmatpush1.bf16.msra.mxu0 %v712
    %868 = vmatprep.subr.bf16.mxu0 0
    %869 = vmatpush1.bf16.msra.mxu0 %v713
    %870 = vmatprep.subr.bf16.mxu0 0
    %871 = vmatpush1.bf16.msra.mxu0 %v714
    %872 = vmatprep.subr.bf16.mxu0 0
    %873 = vmatpush1.bf16.msra.mxu0 %v715
    %874 = vmatprep.subr.bf16.mxu0 0
    %875 = vmatpush1.bf16.msra.mxu0 %v716
    %876 = vmatprep.subr.bf16.mxu0 0
    %877 = vmatpush1.bf16.msra.mxu0 %v717
    %878 = vmatprep.mubr.bf16.mxu0 %v374
    %879 = vmatmul.mubr.bf16.gmra.mrb[0].mxu0 %v373
    %v880 = vpop.f32.mrb[0].mxu0
    %v881 = vadd.f32 %v841, %v880
    %v882 = vpop.f32.mrb[0].mxu0
    %v883 = vpop.f32.mrb[0].mxu0
    %v884 = vpop.f32.mrb[0].mxu0
    %885 = vdwg.mxu0
    %v886 = vld [vmem:[#allocation8] sm:$0x1]
    %v887 = vld [vmem:[#allocation6] sm:$0x1]
    %v888 = vld [vmem:[#allocation9] sm:$0x1]
    %v889 = vadd.f32 %v887, %v888
    %v890 = vld [vmem:[#allocation9 + $0x1] sm:$0xf]
    %891 = vst [vmem:[#allocation2] sm:$0x1] %v886
    %892 = vst [vmem:[#allocation2 + $0x1] sm:$0x1] %v889
    %v893 = vadd.f32 %v881, %v890
    %894 = vst [vmem:[#allocation2 + $0x2] sm:$0xf] %v893
    %895 = vst [vmem:[#allocation2 + $0x6] sm:$0x1] %v886
    %896 = vst [vmem:[#allocation2 + $0x7] sm:$0x1] %v889
    %v898 = vrot.slane %v890, 4
    %v900 = vadd.f32 %v881, %v898
    %901 = vst [vmem:[#allocation2 + $0x4] sm:$0xf0] %v900
    %v902 = vld [vmem:[#allocation2] sm:$0xff]
    %v903 = vld [vmem:[#allocation2 + $0x8] sm:$0xf]
    %v904 = vld [vmem:[#allocation3] sm:$0xff]
    %v905 = vld [vmem:[#allocation3 + $0x8] sm:$0xf]
    loop: start=0, step=1, limit=12
    $region182: #{_lambda_.1} parent=1 // loop_pre_header
      _
    $region183: #{_lambda_.1} parent=1 // loop_header
      %s907 = sphi 0, %s911
      %p908 = scmp.ge.s32.totalorder %s907, 12
      %v912 = vphi %v902, %v2664
      %v913 = vphi %v903, %v2665
    $region184: #{_lambda_.1} parent=1 // loop_header_branch
      %910 = sbr.rel (%p908) target = $region188
    $region185: #{_lambda_.1} parent=1 // loop_body
      %s914 = scalar_lea.vmem [#allocation14], %s907
      %v915 = vld [vmem:[%s914] sm:$0x1]
      %s916 = scalar_lea.vmem [#allocation15], %s907
      %v917 = vld [vmem:[%s916] sm:$0x1]
      %918 = vadd.xlane.f32.xlu0 %v912
      %v919 = vpop.xlane.xlu0 %918
      %vm920 = vcmask 1043456
      %v921 = vsel %vm920, %v913, 0.0
      %922 = vadd.xlane.f32.xlu0 %v921
      %v923 = vpop.xlane.xlu0 %922
      %v924 = vrcp.pop 128.0
      %v925 = vmul.f32 %v919, %v924
      %v926 = vmul.f32 %v923, %v924
      %v927 = vsub.f32 %v912, %v925
      %v928 = vsub.f32 %v913, %v926
      %v929 = vmul.f32 %v927, %v927
      %v930 = vmul.f32 %v928, %v928
      %931 = vadd.xlane.f32.xlu0 %v929
      %v932 = vpop.xlane.xlu0 %931
      %v933 = vsel %vm920, %v930, 0.0
      %934 = vadd.xlane.f32.xlu0 %v933
      %v935 = vpop.xlane.xlu0 %934
      %v936 = vmul.f32 %v932, %v924
      %v937 = vmul.f32 %v935, %v924
      %v938 = vadd.f32 %v936, 1e-06
      %v939 = vadd.f32 %v937, 1e-06
      %v940 = vrsqrt.pop %v938
      %v941 = vrsqrt.pop %v939
      %v942 = vmul.f32 %v927, %v940
      %v943 = vmul.f32 %v928, %v941
      %v945 = vlaneseq
      %v946 = vshrl.u32 %v945, 7
      %v947 = vsub.s32 0, %v946
      %v948 = vrot.slane %v915, %v947
      %v950 = vmul.f32 %v942, %v948
      %v951 = vmul.f32 %v943, %v948
      %v953 = vlaneseq
      %v954 = vshrl.u32 %v953, 7
      %v955 = vsub.s32 0, %v954
      %v956 = vrot.slane %v917, %v955
      %v958 = vadd.f32 %v950, %v956
      %v959 = vadd.f32 %v951, %v956
      %s960 = smul.u32 %s907, 48
      %s961 = smul.addr %s960, 4
      %s962 = scalar_lea.vmem [#allocation17], %s961
      %v963 = vld [vmem:[%s962] sm:$0xff]
      %v964 = vld [vmem:[%s962 + $0x8] sm:$0xf]
      %v965 = vld [vmem:[%s962 + $0xc] sm:$0xff]
      %v966 = vld [vmem:[%s962 + $0x14] sm:$0xf]
      %v967 = vld [vmem:[%s962 + $0x18] sm:$0xff]
      %v968 = vld [vmem:[%s962 + $0x20] sm:$0xf]
      %v969 = vld [vmem:[%s962 + $0x24] sm:$0xff]
      %v970 = vld [vmem:[%s962 + $0x2c] sm:$0xf]
      %v971 = vld [vmem:[%s962 + $0x30] sm:$0xff]
      %v972 = vld [vmem:[%s962 + $0x38] sm:$0xf]
      %v973 = vld [vmem:[%s962 + $0x3c] sm:$0xff]
      %v974 = vld [vmem:[%s962 + $0x44] sm:$0xf]
      %v975 = vld [vmem:[%s962 + $0x48] sm:$0xff]
      %v976 = vld [vmem:[%s962 + $0x50] sm:$0xf]
      %v977 = vld [vmem:[%s962 + $0x54] sm:$0xff]
      %v978 = vld [vmem:[%s962 + $0x5c] sm:$0xf]
      %v979 = vld [vmem:[%s962 + $0x60] sm:$0xff]
      %v980 = vld [vmem:[%s962 + $0x68] sm:$0xf]
      %v981 = vld [vmem:[%s962 + $0x6c] sm:$0xff]
      %v982 = vld [vmem:[%s962 + $0x74] sm:$0xf]
      %v983 = vld [vmem:[%s962 + $0x78] sm:$0xff]
      %v984 = vld [vmem:[%s962 + $0x80] sm:$0xf]
      %v985 = vld [vmem:[%s962 + $0x84] sm:$0xff]
      %v986 = vld [vmem:[%s962 + $0x8c] sm:$0xf]
      %v987 = vld [vmem:[%s962 + $0x90] sm:$0xff]
      %v988 = vld [vmem:[%s962 + $0x98] sm:$0xf]
      %v989 = vld [vmem:[%s962 + $0x9c] sm:$0xff]
      %v990 = vld [vmem:[%s962 + $0xa4] sm:$0xf]
      %v991 = vld [vmem:[%s962 + $0xa8] sm:$0xff]
      %v992 = vld [vmem:[%s962 + $0xb0] sm:$0xf]
      %v993 = vld [vmem:[%s962 + $0xb4] sm:$0xff]
      %v994 = vld [vmem:[%s962 + $0xbc] sm:$0xf]
      %s995 = smul.u32 %s907, 3
      %s996 = scalar_lea.vmem [#allocation18], %s995
      %v997 = vld [vmem:[%s996] sm:$0x7]
      %v998 = vpack.c.bf16 %v959, %v958
      %v1000 = vlaneseq
      %v1001 = vshrl.u32 %v1000, 7
      %v1002 = vsub.s32 0, %v1001
      %v1003 = vrot.slane %v997, %v1002
      %v1004 = vlaneseq
      %v1005 = vshrl.u32 %v1004, 7
      %v1006 = vsub.s32 1, %v1005
      %v1007 = vrot.slane %v997, %v1006
      %v1008 = vlaneseq
      %v1009 = vshrl.u32 %v1008, 7
      %v1010 = vsub.s32 2, %v1009
      %v1011 = vrot.slane %v997, %v1010
      %v1047 = vunpack.c.l.b16 %v963
      %v1048 = vunpack.c.h.b16 %v963
      %v1049 = vunpack.c.l.b16 %v964
      %v1050 = vunpack.c.l.b16 %v965
      %v1051 = vunpack.c.h.b16 %v965
      %v1052 = vunpack.c.l.b16 %v966
      %v1053 = vunpack.c.l.b16 %v967
      %v1054 = vunpack.c.h.b16 %v967
      %v1055 = vunpack.c.l.b16 %v968
      %v1056 = vunpack.c.l.b16 %v969
      %v1057 = vunpack.c.h.b16 %v969
      %v1058 = vunpack.c.l.b16 %v970
      %v1059 = vunpack.c.l.b16 %v971
      %v1060 = vunpack.c.h.b16 %v971
      %v1061 = vunpack.c.l.b16 %v972
      %v1062 = vunpack.c.l.b16 %v973
      %v1063 = vunpack.c.h.b16 %v973
      %v1064 = vunpack.c.l.b16 %v974
      %v1065 = vunpack.c.l.b16 %v975
      %v1066 = vunpack.c.h.b16 %v975
      %v1067 = vunpack.c.l.b16 %v976
      %v1068 = vunpack.c.l.b16 %v977
      %v1069 = vunpack.c.h.b16 %v977
      %v1070 = vunpack.c.l.b16 %v978
      %v1071 = vunpack.c.l.b16 %v979
      %v1072 = vunpack.c.h.b16 %v979
      %v1073 = vunpack.c.l.b16 %v980
      %v1074 = vunpack.c.l.b16 %v981
      %v1075 = vunpack.c.h.b16 %v981
      %v1076 = vunpack.c.l.b16 %v982
      %v1077 = vunpack.c.l.b16 %v983
      %v1078 = vunpack.c.h.b16 %v983
      %v1079 = vunpack.c.l.b16 %v984
      %v1080 = vunpack.c.l.b16 %v985
      %v1081 = vunpack.c.h.b16 %v985
      %v1082 = vunpack.c.l.b16 %v986
      %v1083 = vunpack.c.l.b16 %v987
      %v1084 = vunpack.c.h.b16 %v987
      %v1085 = vunpack.c.l.b16 %v988
      %v1086 = vunpack.c.l.b16 %v989
      %v1087 = vunpack.c.h.b16 %v989
      %v1088 = vunpack.c.l.b16 %v990
      %v1089 = vunpack.c.l.b16 %v991
      %v1090 = vunpack.c.h.b16 %v991
      %v1091 = vunpack.c.l.b16 %v992
      %v1092 = vunpack.c.l.b16 %v993
      %v1093 = vunpack.c.h.b16 %v993
      %v1094 = vunpack.c.l.b16 %v994
      %v1095 = vpack.c.b16 %v1050, %v1047
      %v1096 = vpack.c.b16 %v1051, %v1048
      %v1097 = vpack.c.b16 %v1052, %v1049
      %v1098 = vpack.c.b16 %v1056, %v1053
      %v1099 = vpack.c.b16 %v1057, %v1054
      %v1100 = vpack.c.b16 %v1058, %v1055
      %v1101 = vpack.c.b16 %v1062, %v1059
      %v1102 = vpack.c.b16 %v1063, %v1060
      %v1103 = vpack.c.b16 %v1064, %v1061
      %v1104 = vpack.c.b16 %v1068, %v1065
      %v1105 = vpack.c.b16 %v1069, %v1066
      %v1106 = vpack.c.b16 %v1070, %v1067
      %v1107 = vpack.c.b16 %v1074, %v1071
      %v1108 = vpack.c.b16 %v1075, %v1072
      %v1109 = vpack.c.b16 %v1076, %v1073
      %v1110 = vpack.c.b16 %v1080, %v1077
      %v1111 = vpack.c.b16 %v1081, %v1078
      %v1112 = vpack.c.b16 %v1082, %v1079
      %v1113 = vpack.c.b16 %v1086, %v1083
      %v1114 = vpack.c.b16 %v1087, %v1084
      %v1115 = vpack.c.b16 %v1088, %v1085
      %v1116 = vpack.c.b16 %v1092, %v1089
      %v1117 = vpack.c.b16 %v1093, %v1090
      %v1118 = vpack.c.b16 %v1094, %v1091
      %1143 = vmatprep.subr.bf16.mxu0 %v1096
      %1144 = vmatpush1.bf16.msra.mxu0 %v1095
      %1145 = vmatprep.subr.bf16.mxu0 %v1099
      %1146 = vmatpush1.bf16.msra.mxu0 %v1098
      %1147 = vmatprep.subr.bf16.mxu0 %v1102
      %1148 = vmatpush1.bf16.msra.mxu0 %v1101
      %1149 = vmatprep.subr.bf16.mxu0 %v1105
      %1150 = vmatpush1.bf16.msra.mxu0 %v1104
      %1151 = vmatprep.subr.bf16.mxu0 %v1108
      %1152 = vmatpush1.bf16.msra.mxu0 %v1107
      %1153 = vmatprep.subr.bf16.mxu0 %v1111
      %1154 = vmatpush1.bf16.msra.mxu0 %v1110
      %1155 = vmatprep.subr.bf16.mxu0 %v1114
      %1156 = vmatpush1.bf16.msra.mxu0 %v1113
      %1157 = vmatprep.subr.bf16.mxu0 %v1117
      %1158 = vmatpush1.bf16.msra.mxu0 %v1116
      %1159 = vmatprep.subr.bf16.mxu0 0
      %1160 = vmatpush1.bf16.msra.mxu0 0
      %1161 = vmatprep.subr.bf16.mxu0 0
      %1162 = vmatpush1.bf16.msra.mxu0 0
      %1163 = vmatprep.subr.bf16.mxu0 0
      %1164 = vmatpush1.bf16.msra.mxu0 0
      %1165 = vmatprep.subr.bf16.mxu0 0
      %1166 = vmatpush1.bf16.msra.mxu0 0
      %1167 = vmatprep.subr.bf16.mxu0 0
      %1168 = vmatpush1.bf16.msra.mxu0 0
      %1169 = vmatprep.subr.bf16.mxu0 0
      %1170 = vmatpush1.bf16.msra.mxu0 0
      %1171 = vmatprep.subr.bf16.mxu0 0
      %1172 = vmatpush1.bf16.msra.mxu0 0
      %1173 = vmatprep.subr.bf16.mxu0 0
      %1174 = vmatpush1.bf16.msra.mxu0 0
      %1175 = vmatprep.mubr.bf16.mxu0 0
      %1176 = vmatmul.mubr.bf16.gmra.mrb[0].mxu0 %v998
      %v1177 = vpop.f32.mrb[0].mxu0
      %v1178 = vadd.f32 %v1003, %v1177
      %v1179 = vpop.f32.mrb[0].mxu0
      %v1180 = vadd.f32 %v1007, %v1179
      %v1181 = vpop.f32.mrb[0].mxu0
      %v1182 = vadd.f32 %v1003, %v1181
      %v1183 = vpop.f32.mrb[0].mxu0
      %v1184 = vadd.f32 %v1007, %v1183
      %1185 = vdwg.mxu0
      %1186 = vmatprep.subr.bf16.mxu0 0
      %1187 = vmatpush1.bf16.msra.mxu0 %v1097
      %1188 = vmatprep.subr.bf16.mxu0 0
      %1189 = vmatpush1.bf16.msra.mxu0 %v1100
      %1190 = vmatprep.subr.bf16.mxu0 0
      %1191 = vmatpush1.bf16.msra.mxu0 %v1103
      %1192 = vmatprep.subr.bf16.mxu0 0
      %1193 = vmatpush1.bf16.msra.mxu0 %v1106
      %1194 = vmatprep.subr.bf16.mxu0 0
      %1195 = vmatpush1.bf16.msra.mxu0 %v1109
      %1196 = vmatprep.subr.bf16.mxu0 0
      %1197 = vmatpush1.bf16.msra.mxu0 %v1112
      %1198 = vmatprep.subr.bf16.mxu0 0
      %1199 = vmatpush1.bf16.msra.mxu0 %v1115
      %1200 = vmatprep.subr.bf16.mxu0 0
      %1201 = vmatpush1.bf16.msra.mxu0 %v1118
      %1202 = vmatprep.subr.bf16.mxu0 0
      %1203 = vmatpush1.bf16.msra.mxu0 0
      %1204 = vmatprep.subr.bf16.mxu0 0
      %1205 = vmatpush1.bf16.msra.mxu0 0
      %1206 = vmatprep.subr.bf16.mxu0 0
      %1207 = vmatpush1.bf16.msra.mxu0 0
      %1208 = vmatprep.subr.bf16.mxu0 0
      %1209 = vmatpush1.bf16.msra.mxu0 0
      %1210 = vmatprep.subr.bf16.mxu0 0
      %1211 = vmatpush1.bf16.msra.mxu0 0
      %1212 = vmatprep.subr.bf16.mxu0 0
      %1213 = vmatpush1.bf16.msra.mxu0 0
      %1214 = vmatprep.subr.bf16.mxu0 0
      %1215 = vmatpush1.bf16.msra.mxu0 0
      %1216 = vmatprep.subr.bf16.mxu0 0
      %1217 = vmatpush1.bf16.msra.mxu0 0
      %1218 = vmatprep.mubr.bf16.mxu0 0
      %1219 = vmatmul.mubr.bf16.gmra.mrb[0].mxu0 %v998
      %v1220 = vpop.f32.mrb[0].mxu0
      %v1221 = vadd.f32 %v1011, %v1220
      %v1222 = vpop.f32.mrb[0].mxu0
      %v1223 = vpop.f32.mrb[0].mxu0
      %v1224 = vadd.f32 %v1011, %v1223
      %v1225 = vpop.f32.mrb[0].mxu0
      %1226 = vdwg.mxu0
      %v1227 = vpack.c.bf16 %v1182, %v1178
      %v1228 = vpack.c.bf16 %v1184, %v1180
      %v1229 = vpack.c.bf16 %v1224, %v1221
      %vm1230 = vcmask 261120
      %v1232 = vsel %vm1230, %v1227, 0
      %v1235 = vsel %vm1230, %v1228, 0
      %1237 = vmatprep.subr.bf16.mxu0 0
      %1238 = vmatpush1.bf16.xpose.msra.mxu0 %v1235
      %1239 = vmatprep.subr.bf16.mxu0 0
      %1240 = vmatpush1.bf16.xpose.msra.mxu0 0
      %1241 = vmatprep.subr.bf16.mxu0 0
      %1242 = vmatpush1.bf16.xpose.msra.mxu0 0
      %1243 = vmatprep.subr.bf16.mxu0 0
      %1244 = vmatpush1.bf16.xpose.msra.mxu0 0
      %1245 = vmatprep.subr.bf16.mxu0 0
      %1246 = vmatpush1.bf16.xpose.msra.mxu0 0
      %1247 = vmatprep.subr.bf16.mxu0 0
      %1248 = vmatpush1.bf16.xpose.msra.mxu0 0
      %1249 = vmatprep.subr.bf16.mxu0 0
      %1250 = vmatpush1.bf16.xpose.msra.mxu0 0
      %1251 = vmatprep.subr.bf16.mxu0 0
      %1252 = vmatpush1.bf16.xpose.msra.mxu0 0
      %1253 = vmatprep.subr.bf16.mxu0 0
      %1254 = vmatpush1.bf16.xpose.msra.mxu0 0
      %1255 = vmatprep.subr.bf16.mxu0 0
      %1256 = vmatpush1.bf16.xpose.msra.mxu0 0
      %1257 = vmatprep.subr.bf16.mxu0 0
      %1258 = vmatpush1.bf16.xpose.msra.mxu0 0
      %1259 = vmatprep.subr.bf16.mxu0 0
      %1260 = vmatpush1.bf16.xpose.msra.mxu0 0
      %1261 = vmatprep.subr.bf16.mxu0 0
      %1262 = vmatpush1.bf16.xpose.msra.mxu0 0
      %1263 = vmatprep.subr.bf16.mxu0 0
      %1264 = vmatpush1.bf16.xpose.msra.mxu0 0
      %1265 = vmatprep.subr.bf16.mxu0 0
      %1266 = vmatpush1.bf16.xpose.msra.mxu0 0
      %1267 = vmatprep.subr.bf16.mxu0 0
      %1268 = vmatpush1.bf16.xpose.msra.mxu0 0
      %1269 = vmatprep.mubr.bf16.mxu0 0
      %1270 = vmatmul.mubr.bf16.gmra.mrb[0].mxu0 %v1232
      %v1271 = vpop.f32.mrb[0].mxu0
      %v1272 = vadd.f32 0.0, %v1271
      %v1273 = vpop.f32.mrb[0].mxu0
      %v1274 = vpop.f32.mrb[0].mxu0
      %v1275 = vadd.f32 0.0, %v1274
      %v1276 = vpop.f32.mrb[0].mxu0
      %1277 = vdwg.mxu0
      %v1278 = vmul.f32 %v1272, 0.17677669
      %v1279 = vmul.f32 %v1275, 0.17677669
      %v1280 = vadd.f32 %v1278, %v904
      %v1281 = vadd.f32 %v1279, %v905
      %vm1282 = vcmask 97280
      %v1283 = vsel %vm1282, %v1280, -inf
      %1284 = vmax.xlane.f32.xlu0 %v1283
      %v1285 = vpop.xlane.xlu0 %1284
      %vm1286 = vcmask 93184
      %v1287 = vsel %vm1286, %v1281, -inf
      %1288 = vmax.xlane.f32.xlu0 %v1287
      %v1289 = vpop.xlane.xlu0 %1288
      %v1290 = vsub.f32 %v1280, %v1285
      %v1291 = vsub.f32 %v1281, %v1289
      %v1292 = vmul.f32 %v1290, 1.442695
      %v1293 = vpow.pop %v1292
      %v1294 = vmul.f32 %v1291, 1.442695
      %v1295 = vpow.pop %v1294
      %v1296 = vsel %vm1282, %v1293, 0.0
      %1297 = vadd.xlane.f32.xlu0 %v1296
      %v1298 = vpop.xlane.xlu0 %1297
      %v1299 = vsel %vm1286, %v1295, 0.0
      %1300 = vadd.xlane.f32.xlu0 %v1299
      %v1301 = vpop.xlane.xlu0 %1300
      %v1302 = vrcp.pop %v1298
      %v1303 = vrcp.pop %v1301
      %v1304 = vmul.f32 %v1293, %v1302
      %v1305 = vmul.f32 %v1295, %v1303
      %v1306 = vpack.c.bf16 %v1305, %v1304
      %v1308 = vsel %vm1282, %v1306, 0
      %vm1310 = vcmask 1045504
      %v1312 = vsel %vm1310, %v1229, 0
      %1314 = vmatprep.subr.bf16.mxu0 0
      %1315 = vmatpush1.bf16.msra.mxu0 %v1312
      %1316 = vmatprep.subr.bf16.mxu0 0
      %1317 = vmatpush1.bf16.msra.mxu0 0
      %1318 = vmatprep.subr.bf16.mxu0 0
      %1319 = vmatpush1.bf16.msra.mxu0 0
      %1320 = vmatprep.subr.bf16.mxu0 0
      %1321 = vmatpush1.bf16.msra.mxu0 0
      %1322 = vmatprep.subr.bf16.mxu0 0
      %1323 = vmatpush1.bf16.msra.mxu0 0
      %1324 = vmatprep.subr.bf16.mxu0 0
      %1325 = vmatpush1.bf16.msra.mxu0 0
      %1326 = vmatprep.subr.bf16.mxu0 0
      %1327 = vmatpush1.bf16.msra.mxu0 0
      %1328 = vmatprep.subr.bf16.mxu0 0
      %1329 = vmatpush1.bf16.msra.mxu0 0
      %1330 = vmatprep.subr.bf16.mxu0 0
      %1331 = vmatpush1.bf16.msra.mxu0 0
      %1332 = vmatprep.subr.bf16.mxu0 0
      %1333 = vmatpush1.bf16.msra.mxu0 0
      %1334 = vmatprep.subr.bf16.mxu0 0
      %1335 = vmatpush1.bf16.msra.mxu0 0
      %1336 = vmatprep.subr.bf16.mxu0 0
      %1337 = vmatpush1.bf16.msra.mxu0 0
      %1338 = vmatprep.subr.bf16.mxu0 0
      %1339 = vmatpush1.bf16.msra.mxu0 0
      %1340 = vmatprep.subr.bf16.mxu0 0
      %1341 = vmatpush1.bf16.msra.mxu0 0
      %1342 = vmatprep.subr.bf16.mxu0 0
      %1343 = vmatpush1.bf16.msra.mxu0 0
      %1344 = vmatprep.subr.bf16.mxu0 0
      %1345 = vmatpush1.bf16.msra.mxu0 0
      %1346 = vmatprep.mubr.bf16.mxu0 0
      %1347 = vmatmul.mubr.bf16.gmra.mrb[0].mxu0 %v1308
      %v1348 = vpop.f32.mrb[0].mxu0
      %v1349 = vadd.f32 0.0, %v1348
      %v1350 = vpop.f32.mrb[0].mxu0
      %v1351 = vpop.f32.mrb[0].mxu0
      %v1352 = vadd.f32 0.0, %v1351
      %v1353 = vpop.f32.mrb[0].mxu0
      %1354 = vdwg.mxu0
      %1356 = vrot.lane.b32.xlu0 %v1227, 96
      %v1357 = vpop.permute.xlu0 %1356
      %1359 = vrot.lane.b32.xlu0 %v1228, 96
      %v1360 = vpop.permute.xlu0 %1359
      %v1362 = vsel %vm1230, %v1357, 0
      %v1365 = vsel %vm1230, %v1360, 0
      %1367 = vmatprep.subr.bf16.mxu0 0
      %1368 = vmatpush1.bf16.xpose.msra.mxu0 %v1365
      %1369 = vmatprep.subr.bf16.mxu0 0
      %1370 = vmatpush1.bf16.xpose.msra.mxu0 0
      %1371 = vmatprep.subr.bf16.mxu0 0
      %1372 = vmatpush1.bf16.xpose.msra.mxu0 0
      %1373 = vmatprep.subr.bf16.mxu0 0
      %1374 = vmatpush1.bf16.xpose.msra.mxu0 0
      %1375 = vmatprep.subr.bf16.mxu0 0
      %1376 = vmatpush1.bf16.xpose.msra.mxu0 0
      %1377 = vmatprep.subr.bf16.mxu0 0
      %1378 = vmatpush1.bf16.xpose.msra.mxu0 0
      %1379 = vmatprep.subr.bf16.mxu0 0
      %1380 = vmatpush1.bf16.xpose.msra.mxu0 0
      %1381 = vmatprep.subr.bf16.mxu0 0
      %1382 = vmatpush1.bf16.xpose.msra.mxu0 0
      %1383 = vmatprep.subr.bf16.mxu0 0
      %1384 = vmatpush1.bf16.xpose.msra.mxu0 0
      %1385 = vmatprep.subr.bf16.mxu0 0
      %1386 = vmatpush1.bf16.xpose.msra.mxu0 0
      %1387 = vmatprep.subr.bf16.mxu0 0
      %1388 = vmatpush1.bf16.xpose.msra.mxu0 0
      %1389 = vmatprep.subr.bf16.mxu0 0
      %1390 = vmatpush1.bf16.xpose.msra.mxu0 0
      %1391 = vmatprep.subr.bf16.mxu0 0
      %1392 = vmatpush1.bf16.xpose.msra.mxu0 0
      %1393 = vmatprep.subr.bf16.mxu0 0
      %1394 = vmatpush1.bf16.xpose.msra.mxu0 0
      %1395 = vmatprep.subr.bf16.mxu0 0
      %1396 = vmatpush1.bf16.xpose.msra.mxu0 0
      %1397 = vmatprep.subr.bf16.mxu0 0
      %1398 = vmatpush1.bf16.xpose.msra.mxu0 0
      %1399 = vmatprep.mubr.bf16.mxu0 0
      %1400 = vmatmul.mubr.bf16.gmra.mrb[0].mxu0 %v1362
      %v1401 = vpop.f32.mrb[0].mxu0
      %v1402 = vadd.f32 0.0, %v1401
      %v1403 = vpop.f32.mrb[0].mxu0
      %v1404 = vpop.f32.mrb[0].mxu0
      %v1405 = vadd.f32 0.0, %v1404
      %v1406 = vpop.f32.mrb[0].mxu0
      %1407 = vdwg.mxu0
      %v1408 = vmul.f32 %v1402, 0.17677669
      %v1409 = vmul.f32 %v1405, 0.17677669
      %v1410 = vadd.f32 %v1408, %v904
      %v1411 = vadd.f32 %v1409, %v905
      %v1412 = vsel %vm1282, %v1410, -inf
      %1413 = vmax.xlane.f32.xlu0 %v1412
      %v1414 = vpop.xlane.xlu0 %1413
      %v1415 = vsel %vm1286, %v1411, -inf
      %1416 = vmax.xlane.f32.xlu0 %v1415
      %v1417 = vpop.xlane.xlu0 %1416
      %v1418 = vsub.f32 %v1410, %v1414
      %v1419 = vsub.f32 %v1411, %v1417
      %v1420 = vmul.f32 %v1418, 1.442695
      %v1421 = vpow.pop %v1420
      %v1422 = vmul.f32 %v1419, 1.442695
      %v1423 = vpow.pop %v1422
      %v1424 = vsel %vm1282, %v1421, 0.0
      %1425 = vadd.xlane.f32.xlu0 %v1424
      %v1426 = vpop.xlane.xlu0 %1425
      %v1427 = vsel %vm1286, %v1423, 0.0
      %1428 = vadd.xlane.f32.xlu0 %v1427
      %v1429 = vpop.xlane.xlu0 %1428
      %v1430 = vrcp.pop %v1426
      %v1431 = vrcp.pop %v1429
      %v1432 = vmul.f32 %v1421, %v1430
      %v1433 = vmul.f32 %v1423, %v1431
      %v1434 = vpack.c.bf16 %v1433, %v1432
      %1436 = vrot.lane.b32.xlu0 %v1229, 96
      %v1437 = vpop.permute.xlu0 %1436
      %v1439 = vsel %vm1282, %v1434, 0
      %v1442 = vsel %vm1310, %v1437, 0
      %1444 = vmatprep.subr.bf16.mxu0 0
      %1445 = vmatpush1.bf16.msra.mxu0 %v1442
      %1446 = vmatprep.subr.bf16.mxu0 0
      %1447 = vmatpush1.bf16.msra.mxu0 0
      %1448 = vmatprep.subr.bf16.mxu0 0
      %1449 = vmatpush1.bf16.msra.mxu0 0
      %1450 = vmatprep.subr.bf16.mxu0 0
      %1451 = vmatpush1.bf16.msra.mxu0 0
      %1452 = vmatprep.subr.bf16.mxu0 0
      %1453 = vmatpush1.bf16.msra.mxu0 0
      %1454 = vmatprep.subr.bf16.mxu0 0
      %1455 = vmatpush1.bf16.msra.mxu0 0
      %1456 = vmatprep.subr.bf16.mxu0 0
      %1457 = vmatpush1.bf16.msra.mxu0 0
      %1458 = vmatprep.subr.bf16.mxu0 0
      %1459 = vmatpush1.bf16.msra.mxu0 0
      %1460 = vmatprep.subr.bf16.mxu0 0
      %1461 = vmatpush1.bf16.msra.mxu0 0
      %1462 = vmatprep.subr.bf16.mxu0 0
      %1463 = vmatpush1.bf16.msra.mxu0 0
      %1464 = vmatprep.subr.bf16.mxu0 0
      %1465 = vmatpush1.bf16.msra.mxu0 0
      %1466 = vmatprep.subr.bf16.mxu0 0
      %1467 = vmatpush1.bf16.msra.mxu0 0
      %1468 = vmatprep.subr.bf16.mxu0 0
      %1469 = vmatpush1.bf16.msra.mxu0 0
      %1470 = vmatprep.subr.bf16.mxu0 0
      %1471 = vmatpush1.bf16.msra.mxu0 0
      %1472 = vmatprep.subr.bf16.mxu0 0
      %1473 = vmatpush1.bf16.msra.mxu0 0
      %1474 = vmatprep.subr.bf16.mxu0 0
      %1475 = vmatpush1.bf16.msra.mxu0 0
      %1476 = vmatprep.mubr.bf16.mxu0 0
      %1477 = vmatmul.mubr.bf16.gmra.mrb[0].mxu0 %v1439
      %v1478 = vpop.f32.mrb[0].mxu0
      %v1479 = vadd.f32 0.0, %v1478
      %v1480 = vpop.f32.mrb[0].mxu0
      %v1481 = vpop.f32.mrb[0].mxu0
      %v1482 = vadd.f32 0.0, %v1481
      %v1483 = vpop.f32.mrb[0].mxu0
      %1484 = vdwg.mxu0
      %1485 = vrot.lane.b32.xlu0 %v1227, 64
      %v1486 = vpop.permute.xlu0 %1485
      %1487 = vrot.lane.b32.xlu0 %v1228, 64
      %v1488 = vpop.permute.xlu0 %1487
      %v1490 = vsel %vm1230, %v1486, 0
      %v1493 = vsel %vm1230, %v1488, 0
      %1495 = vmatprep.subr.bf16.mxu0 0
      %1496 = vmatpush1.bf16.xpose.msra.mxu0 %v1493
      %1497 = vmatprep.subr.bf16.mxu0 0
      %1498 = vmatpush1.bf16.xpose.msra.mxu0 0
      %1499 = vmatprep.subr.bf16.mxu0 0
      %1500 = vmatpush1.bf16.xpose.msra.mxu0 0
      %1501 = vmatprep.subr.bf16.mxu0 0
      %1502 = vmatpush1.bf16.xpose.msra.mxu0 0
      %1503 = vmatprep.subr.bf16.mxu0 0
      %1504 = vmatpush1.bf16.xpose.msra.mxu0 0
      %1505 = vmatprep.subr.bf16.mxu0 0
      %1506 = vmatpush1.bf16.xpose.msra.mxu0 0
      %1507 = vmatprep.subr.bf16.mxu0 0
      %1508 = vmatpush1.bf16.xpose.msra.mxu0 0
      %1509 = vmatprep.subr.bf16.mxu0 0
      %1510 = vmatpush1.bf16.xpose.msra.mxu0 0
      %1511 = vmatprep.subr.bf16.mxu0 0
      %1512 = vmatpush1.bf16.xpose.msra.mxu0 0
      %1513 = vmatprep.subr.bf16.mxu0 0
      %1514 = vmatpush1.bf16.xpose.msra.mxu0 0
      %1515 = vmatprep.subr.bf16.mxu0 0
      %1516 = vmatpush1.bf16.xpose.msra.mxu0 0
      %1517 = vmatprep.subr.bf16.mxu0 0
      %1518 = vmatpush1.bf16.xpose.msra.mxu0 0
      %1519 = vmatprep.subr.bf16.mxu0 0
      %1520 = vmatpush1.bf16.xpose.msra.mxu0 0
      %1521 = vmatprep.subr.bf16.mxu0 0
      %1522 = vmatpush1.bf16.xpose.msra.mxu0 0
      %1523 = vmatprep.subr.bf16.mxu0 0
      %1524 = vmatpush1.bf16.xpose.msra.mxu0 0
      %1525 = vmatprep.subr.bf16.mxu0 0
      %1526 = vmatpush1.bf16.xpose.msra.mxu0 0
      %1527 = vmatprep.mubr.bf16.mxu0 0
      %1528 = vmatmul.mubr.bf16.gmra.mrb[0].mxu0 %v1490
      %v1529 = vpop.f32.mrb[0].mxu0
      %v1530 = vadd.f32 0.0, %v1529
      %v1531 = vpop.f32.mrb[0].mxu0
      %v1532 = vpop.f32.mrb[0].mxu0
      %v1533 = vadd.f32 0.0, %v1532
      %v1534 = vpop.f32.mrb[0].mxu0
      %1535 = vdwg.mxu0
      %v1536 = vmul.f32 %v1530, 0.17677669
      %v1537 = vmul.f32 %v1533, 0.17677669
      %v1538 = vadd.f32 %v1536, %v904
      %v1539 = vadd.f32 %v1537, %v905
      %v1540 = vsel %vm1282, %v1538, -inf
      %1541 = vmax.xlane.f32.xlu0 %v1540
      %v1542 = vpop.xlane.xlu0 %1541
      %v1543 = vsel %vm1286, %v1539, -inf
      %1544 = vmax.xlane.f32.xlu0 %v1543
      %v1545 = vpop.xlane.xlu0 %1544
      %v1546 = vsub.f32 %v1538, %v1542
      %v1547 = vsub.f32 %v1539, %v1545
      %v1548 = vmul.f32 %v1546, 1.442695
      %v1549 = vpow.pop %v1548
      %v1550 = vmul.f32 %v1547, 1.442695
      %v1551 = vpow.pop %v1550
      %v1552 = vsel %vm1282, %v1549, 0.0
      %1553 = vadd.xlane.f32.xlu0 %v1552
      %v1554 = vpop.xlane.xlu0 %1553
      %v1555 = vsel %vm1286, %v1551, 0.0
      %1556 = vadd.xlane.f32.xlu0 %v1555
      %v1557 = vpop.xlane.xlu0 %1556
      %v1558 = vrcp.pop %v1554
      %v1559 = vrcp.pop %v1557
      %v1560 = vmul.f32 %v1549, %v1558
      %v1561 = vmul.f32 %v1551, %v1559
      %v1562 = vpack.c.bf16 %v1561, %v1560
      %1563 = vrot.lane.b32.xlu0 %v1229, 64
      %v1564 = vpop.permute.xlu0 %1563
      %v1566 = vsel %vm1282, %v1562, 0
      %v1569 = vsel %vm1310, %v1564, 0
      %1571 = vmatprep.subr.bf16.mxu0 0
      %1572 = vmatpush1.bf16.msra.mxu0 %v1569
      %1573 = vmatprep.subr.bf16.mxu0 0
      %1574 = vmatpush1.bf16.msra.mxu0 0
      %1575 = vmatprep.subr.bf16.mxu0 0
      %1576 = vmatpush1.bf16.msra.mxu0 0
      %1577 = vmatprep.subr.bf16.mxu0 0
      %1578 = vmatpush1.bf16.msra.mxu0 0
      %1579 = vmatprep.subr.bf16.mxu0 0
      %1580 = vmatpush1.bf16.msra.mxu0 0
      %1581 = vmatprep.subr.bf16.mxu0 0
      %1582 = vmatpush1.bf16.msra.mxu0 0
      %1583 = vmatprep.subr.bf16.mxu0 0
      %1584 = vmatpush1.bf16.msra.mxu0 0
      %1585 = vmatprep.subr.bf16.mxu0 0
      %1586 = vmatpush1.bf16.msra.mxu0 0
      %1587 = vmatprep.subr.bf16.mxu0 0
      %1588 = vmatpush1.bf16.msra.mxu0 0
      %1589 = vmatprep.subr.bf16.mxu0 0
      %1590 = vmatpush1.bf16.msra.mxu0 0
      %1591 = vmatprep.subr.bf16.mxu0 0
      %1592 = vmatpush1.bf16.msra.mxu0 0
      %1593 = vmatprep.subr.bf16.mxu0 0
      %1594 = vmatpush1.bf16.msra.mxu0 0
      %1595 = vmatprep.subr.bf16.mxu0 0
      %1596 = vmatpush1.bf16.msra.mxu0 0
      %1597 = vmatprep.subr.bf16.mxu0 0
      %1598 = vmatpush1.bf16.msra.mxu0 0
      %1599 = vmatprep.subr.bf16.mxu0 0
      %1600 = vmatpush1.bf16.msra.mxu0 0
      %1601 = vmatprep.subr.bf16.mxu0 0
      %1602 = vmatpush1.bf16.msra.mxu0 0
      %1603 = vmatprep.mubr.bf16.mxu0 0
      %1604 = vmatmul.mubr.bf16.gmra.mrb[0].mxu0 %v1566
      %v1605 = vpop.f32.mrb[0].mxu0
      %v1606 = vadd.f32 0.0, %v1605
      %v1607 = vpop.f32.mrb[0].mxu0
      %v1608 = vpop.f32.mrb[0].mxu0
      %v1609 = vadd.f32 0.0, %v1608
      %v1610 = vpop.f32.mrb[0].mxu0
      %1611 = vdwg.mxu0
      %1612 = vrot.lane.b32.xlu0 %v1227, 32
      %v1613 = vpop.permute.xlu0 %1612
      %1614 = vrot.lane.b32.xlu0 %v1228, 32
      %v1615 = vpop.permute.xlu0 %1614
      %v1617 = vsel %vm1230, %v1613, 0
      %v1620 = vsel %vm1230, %v1615, 0
      %1622 = vmatprep.subr.bf16.mxu0 0
      %1623 = vmatpush1.bf16.xpose.msra.mxu0 %v1620
      %1624 = vmatprep.subr.bf16.mxu0 0
      %1625 = vmatpush1.bf16.xpose.msra.mxu0 0
      %1626 = vmatprep.subr.bf16.mxu0 0
      %1627 = vmatpush1.bf16.xpose.msra.mxu0 0
      %1628 = vmatprep.subr.bf16.mxu0 0
      %1629 = vmatpush1.bf16.xpose.msra.mxu0 0
      %1630 = vmatprep.subr.bf16.mxu0 0
      %1631 = vmatpush1.bf16.xpose.msra.mxu0 0
      %1632 = vmatprep.subr.bf16.mxu0 0
      %1633 = vmatpush1.bf16.xpose.msra.mxu0 0
      %1634 = vmatprep.subr.bf16.mxu0 0
      %1635 = vmatpush1.bf16.xpose.msra.mxu0 0
      %1636 = vmatprep.subr.bf16.mxu0 0
      %1637 = vmatpush1.bf16.xpose.msra.mxu0 0
      %1638 = vmatprep.subr.bf16.mxu0 0
      %1639 = vmatpush1.bf16.xpose.msra.mxu0 0
      %1640 = vmatprep.subr.bf16.mxu0 0
      %1641 = vmatpush1.bf16.xpose.msra.mxu0 0
      %1642 = vmatprep.subr.bf16.mxu0 0
      %1643 = vmatpush1.bf16.xpose.msra.mxu0 0
      %1644 = vmatprep.subr.bf16.mxu0 0
      %1645 = vmatpush1.bf16.xpose.msra.mxu0 0
      %1646 = vmatprep.subr.bf16.mxu0 0
      %1647 = vmatpush1.bf16.xpose.msra.mxu0 0
      %1648 = vmatprep.subr.bf16.mxu0 0
      %1649 = vmatpush1.bf16.xpose.msra.mxu0 0
      %1650 = vmatprep.subr.bf16.mxu0 0
      %1651 = vmatpush1.bf16.xpose.msra.mxu0 0
      %1652 = vmatprep.subr.bf16.mxu0 0
      %1653 = vmatpush1.bf16.xpose.msra.mxu0 0
      %1654 = vmatprep.mubr.bf16.mxu0 0
      %1655 = vmatmul.mubr.bf16.gmra.mrb[0].mxu0 %v1617
      %v1656 = vpop.f32.mrb[0].mxu0
      %v1657 = vadd.f32 0.0, %v1656
      %v1658 = vpop.f32.mrb[0].mxu0
      %v1659 = vpop.f32.mrb[0].mxu0
      %v1660 = vadd.f32 0.0, %v1659
      %v1661 = vpop.f32.mrb[0].mxu0
      %1662 = vdwg.mxu0
      %v1663 = vmul.f32 %v1657, 0.17677669
      %v1664 = vmul.f32 %v1660, 0.17677669
      %v1665 = vadd.f32 %v1663, %v904
      %v1666 = vadd.f32 %v1664, %v905
      %v1667 = vsel %vm1282, %v1665, -inf
      %1668 = vmax.xlane.f32.xlu0 %v1667
      %v1669 = vpop.xlane.xlu0 %1668
      %v1670 = vsel %vm1286, %v1666, -inf
      %1671 = vmax.xlane.f32.xlu0 %v1670
      %v1672 = vpop.xlane.xlu0 %1671
      %v1673 = vsub.f32 %v1665, %v1669
      %v1674 = vsub.f32 %v1666, %v1672
      %v1675 = vmul.f32 %v1673, 1.442695
      %v1676 = vpow.pop %v1675
      %v1677 = vmul.f32 %v1674, 1.442695
      %v1678 = vpow.pop %v1677
      %v1679 = vsel %vm1282, %v1676, 0.0
      %1680 = vadd.xlane.f32.xlu0 %v1679
      %v1681 = vpop.xlane.xlu0 %1680
      %v1682 = vsel %vm1286, %v1678, 0.0
      %1683 = vadd.xlane.f32.xlu0 %v1682
      %v1684 = vpop.xlane.xlu0 %1683
      %v1685 = vrcp.pop %v1681
      %v1686 = vrcp.pop %v1684
      %v1687 = vmul.f32 %v1676, %v1685
      %v1688 = vmul.f32 %v1678, %v1686
      %v1689 = vpack.c.bf16 %v1688, %v1687
      %1690 = vrot.lane.b32.xlu0 %v1229, 32
      %v1691 = vpop.permute.xlu0 %1690
      %v1693 = vsel %vm1282, %v1689, 0
      %v1696 = vsel %vm1310, %v1691, 0
      %1698 = vmatprep.subr.bf16.mxu0 0
      %1699 = vmatpush1.bf16.msra.mxu0 %v1696
      %1700 = vmatprep.subr.bf16.mxu0 0
      %1701 = vmatpush1.bf16.msra.mxu0 0
      %1702 = vmatprep.subr.bf16.mxu0 0
      %1703 = vmatpush1.bf16.msra.mxu0 0
      %1704 = vmatprep.subr.bf16.mxu0 0
      %1705 = vmatpush1.bf16.msra.mxu0 0
      %1706 = vmatprep.subr.bf16.mxu0 0
      %1707 = vmatpush1.bf16.msra.mxu0 0
      %1708 = vmatprep.subr.bf16.mxu0 0
      %1709 = vmatpush1.bf16.msra.mxu0 0
      %1710 = vmatprep.subr.bf16.mxu0 0
      %1711 = vmatpush1.bf16.msra.mxu0 0
      %1712 = vmatprep.subr.bf16.mxu0 0
      %1713 = vmatpush1.bf16.msra.mxu0 0
      %1714 = vmatprep.subr.bf16.mxu0 0
      %1715 = vmatpush1.bf16.msra.mxu0 0
      %1716 = vmatprep.subr.bf16.mxu0 0
      %1717 = vmatpush1.bf16.msra.mxu0 0
      %1718 = vmatprep.subr.bf16.mxu0 0
      %1719 = vmatpush1.bf16.msra.mxu0 0
      %1720 = vmatprep.subr.bf16.mxu0 0
      %1721 = vmatpush1.bf16.msra.mxu0 0
      %1722 = vmatprep.subr.bf16.mxu0 0
      %1723 = vmatpush1.bf16.msra.mxu0 0
      %1724 = vmatprep.subr.bf16.mxu0 0
      %1725 = vmatpush1.bf16.msra.mxu0 0
      %1726 = vmatprep.subr.bf16.mxu0 0
      %1727 = vmatpush1.bf16.msra.mxu0 0
      %1728 = vmatprep.subr.bf16.mxu0 0
      %1729 = vmatpush1.bf16.msra.mxu0 0
      %1730 = vmatprep.mubr.bf16.mxu0 0
      %1731 = vmatmul.mubr.bf16.gmra.mrb[0].mxu0 %v1693
      %v1732 = vpop.f32.mrb[0].mxu0
      %v1733 = vadd.f32 0.0, %v1732
      %v1734 = vpop.f32.mrb[0].mxu0
      %v1735 = vpop.f32.mrb[0].mxu0
      %v1736 = vadd.f32 0.0, %v1735
      %v1737 = vpop.f32.mrb[0].mxu0
      %1738 = vdwg.mxu0
      %1741 = vrot.lane.b32.xlu0 %v1479, 32
      %v1742 = vpop.permute.xlu0 %1741
      %1743 = vrot.lane.b32.xlu0 %v1482, 32
      %v1744 = vpop.permute.xlu0 %1743
      %1749 = vrot.lane.b32.xlu0 %v1606, 64
      %v1750 = vpop.permute.xlu0 %1749
      %1751 = vrot.lane.b32.xlu0 %v1609, 64
      %v1752 = vpop.permute.xlu0 %1751
      %1757 = vrot.lane.b32.xlu0 %v1733, 96
      %v1758 = vpop.permute.xlu0 %1757
      %1759 = vrot.lane.b32.xlu0 %v1736, 96
      %v1760 = vpop.permute.xlu0 %1759
      %v1763 = vsel %vm1230, %v1349, %v1742
      %v1764 = vsel %vm1230, %v1352, %v1744
      %vm1765 = vcmask 523264
      %v1766 = vsel %vm1765, %v1763, %v1750
      %v1767 = vsel %vm1765, %v1764, %v1752
      %vm1768 = vcmask 785408
      %v1769 = vsel %vm1768, %v1766, %v1758
      %v1770 = vsel %vm1768, %v1767, %v1760
      %s1771 = smul.u32 %s907, 16
      %s1772 = smul.addr %s1771, 4
      %s1773 = scalar_lea.vmem [#allocation20], %s1772
      %v1774 = vld [vmem:[%s1773] sm:$0xf]
      %v1775 = vld [vmem:[%s1773 + $0x4] sm:$0xf]
      %v1776 = vld [vmem:[%s1773 + $0x8] sm:$0xf]
      %v1777 = vld [vmem:[%s1773 + $0xc] sm:$0xf]
      %v1778 = vld [vmem:[%s1773 + $0x10] sm:$0xf]
      %v1779 = vld [vmem:[%s1773 + $0x14] sm:$0xf]
      %v1780 = vld [vmem:[%s1773 + $0x18] sm:$0xf]
      %v1781 = vld [vmem:[%s1773 + $0x1c] sm:$0xf]
      %v1782 = vld [vmem:[%s1773 + $0x20] sm:$0xf]
      %v1783 = vld [vmem:[%s1773 + $0x24] sm:$0xf]
      %v1784 = vld [vmem:[%s1773 + $0x28] sm:$0xf]
      %v1785 = vld [vmem:[%s1773 + $0x2c] sm:$0xf]
      %v1786 = vld [vmem:[%s1773 + $0x30] sm:$0xf]
      %v1787 = vld [vmem:[%s1773 + $0x34] sm:$0xf]
      %v1788 = vld [vmem:[%s1773 + $0x38] sm:$0xf]
      %v1789 = vld [vmem:[%s1773 + $0x3c] sm:$0xf]
      %s1790 = scalar_lea.vmem [#allocation21], %s907
      %v1791 = vld [vmem:[%s1790] sm:$0x1]
      %v1792 = vpack.c.bf16 %v1770, %v1769
      %v1794 = vlaneseq
      %v1795 = vshrl.u32 %v1794, 7
      %v1796 = vsub.s32 0, %v1795
      %v1797 = vrot.slane %v1791, %v1796
      %v1815 = vunpack.c.l.b16 %v1774
      %v1816 = vunpack.c.l.b16 %v1775
      %v1817 = vunpack.c.l.b16 %v1776
      %v1818 = vunpack.c.l.b16 %v1777
      %v1819 = vunpack.c.l.b16 %v1778
      %v1820 = vunpack.c.l.b16 %v1779
      %v1821 = vunpack.c.l.b16 %v1780
      %v1822 = vunpack.c.l.b16 %v1781
      %v1823 = vunpack.c.l.b16 %v1782
      %v1824 = vunpack.c.l.b16 %v1783
      %v1825 = vunpack.c.l.b16 %v1784
      %v1826 = vunpack.c.l.b16 %v1785
      %v1827 = vunpack.c.l.b16 %v1786
      %v1828 = vunpack.c.l.b16 %v1787
      %v1829 = vunpack.c.l.b16 %v1788
      %v1830 = vunpack.c.l.b16 %v1789
      %v1831 = vpack.c.b16 %v1816, %v1815
      %v1832 = vpack.c.b16 %v1818, %v1817
      %v1833 = vpack.c.b16 %v1820, %v1819
      %v1834 = vpack.c.b16 %v1822, %v1821
      %v1835 = vpack.c.b16 %v1824, %v1823
      %v1836 = vpack.c.b16 %v1826, %v1825
      %v1837 = vpack.c.b16 %v1828, %v1827
      %v1838 = vpack.c.b16 %v1830, %v1829
      %1847 = vmatprep.subr.bf16.mxu0 0
      %1848 = vmatpush1.bf16.msra.mxu0 %v1831
      %1849 = vmatprep.subr.bf16.mxu0 0
      %1850 = vmatpush1.bf16.msra.mxu0 %v1832
      %1851 = vmatprep.subr.bf16.mxu0 0
      %1852 = vmatpush1.bf16.msra.mxu0 %v1833
      %1853 = vmatprep.subr.bf16.mxu0 0
      %1854 = vmatpush1.bf16.msra.mxu0 %v1834
      %1855 = vmatprep.subr.bf16.mxu0 0
      %1856 = vmatpush1.bf16.msra.mxu0 %v1835
      %1857 = vmatprep.subr.bf16.mxu0 0
      %1858 = vmatpush1.bf16.msra.mxu0 %v1836
      %1859 = vmatprep.subr.bf16.mxu0 0
      %1860 = vmatpush1.bf16.msra.mxu0 %v1837
      %1861 = vmatprep.subr.bf16.mxu0 0
      %1862 = vmatpush1.bf16.msra.mxu0 %v1838
      %1863 = vmatprep.subr.bf16.mxu0 0
      %1864 = vmatpush1.bf16.msra.mxu0 0
      %1865 = vmatprep.subr.bf16.mxu0 0
      %1866 = vmatpush1.bf16.msra.mxu0 0
      %1867 = vmatprep.subr.bf16.mxu0 0
      %1868 = vmatpush1.bf16.msra.mxu0 0
      %1869 = vmatprep.subr.bf16.mxu0 0
      %1870 = vmatpush1.bf16.msra.mxu0 0
      %1871 = vmatprep.subr.bf16.mxu0 0
      %1872 = vmatpush1.bf16.msra.mxu0 0
      %1873 = vmatprep.subr.bf16.mxu0 0
      %1874 = vmatpush1.bf16.msra.mxu0 0
      %1875 = vmatprep.subr.bf16.mxu0 0
      %1876 = vmatpush1.bf16.msra.mxu0 0
      %1877 = vmatprep.subr.bf16.mxu0 0
      %1878 = vmatpush1.bf16.msra.mxu0 0
      %1879 = vmatprep.mubr.bf16.mxu0 0
      %1880 = vmatmul.mubr.bf16.gmra.mrb[0].mxu0 %v1792
      %v1881 = vpop.f32.mrb[0].mxu0
      %v1882 = vadd.f32 %v1797, %v1881
      %v1883 = vpop.f32.mrb[0].mxu0
      %v1884 = vpop.f32.mrb[0].mxu0
      %v1885 = vadd.f32 %v1797, %v1884
      %v1886 = vpop.f32.mrb[0].mxu0
      %1887 = vdwg.mxu0
      %v1888 = vadd.f32 %v912, %v1882
      %v1889 = vadd.f32 %v913, %v1885
      %s1890 = scalar_lea.vmem [#allocation23], %s907
      %v1891 = vld [vmem:[%s1890] sm:$0x1]
      %s1892 = scalar_lea.vmem [#allocation24], %s907
      %v1893 = vld [vmem:[%s1892] sm:$0x1]
      %1894 = vadd.xlane.f32.xlu0 %v1888
      %v1895 = vpop.xlane.xlu0 %1894
      %v1896 = vsel %vm920, %v1889, 0.0
      %1897 = vadd.xlane.f32.xlu0 %v1896
      %v1898 = vpop.xlane.xlu0 %1897
      %v1899 = vmul.f32 %v1895, %v924
      %v1900 = vmul.f32 %v1898, %v924
      %v1901 = vsub.f32 %v1888, %v1899
      %v1902 = vsub.f32 %v1889, %v1900
      %v1903 = vmul.f32 %v1901, %v1901
      %v1904 = vmul.f32 %v1902, %v1902
      %1905 = vadd.xlane.f32.xlu0 %v1903
      %v1906 = vpop.xlane.xlu0 %1905
      %v1907 = vsel %vm920, %v1904, 0.0
      %1908 = vadd.xlane.f32.xlu0 %v1907
      %v1909 = vpop.xlane.xlu0 %1908
      %v1910 = vmul.f32 %v1906, %v924
      %v1911 = vmul.f32 %v1909, %v924
      %v1912 = vadd.f32 %v1910, 1e-06
      %v1913 = vadd.f32 %v1911, 1e-06
      %v1914 = vrsqrt.pop %v1912
      %v1915 = vrsqrt.pop %v1913
      %v1916 = vmul.f32 %v1901, %v1914
      %v1917 = vmul.f32 %v1902, %v1915
      %v1919 = vlaneseq
      %v1920 = vshrl.u32 %v1919, 7
      %v1921 = vsub.s32 0, %v1920
      %v1922 = vrot.slane %v1891, %v1921
      %v1924 = vmul.f32 %v1916, %v1922
      %v1925 = vmul.f32 %v1917, %v1922
      %v1927 = vlaneseq
      %v1928 = vshrl.u32 %v1927, 7
      %v1929 = vsub.s32 0, %v1928
      %v1930 = vrot.slane %v1893, %v1929
      %v1932 = vadd.f32 %v1924, %v1930
      %v1933 = vadd.f32 %v1925, %v1930
      %s1934 = smul.u32 %s907, 64
      %s1935 = smul.addr %s1934, 4
      %s1936 = scalar_lea.vmem [#allocation26], %s1935
      %v1937 = vld [vmem:[%s1936] sm:$0xff]
      %v1938 = vld [vmem:[%s1936 + $0x8] sm:$0xff]
      %v1939 = vld [vmem:[%s1936 + $0x10] sm:$0xff]
      %v1940 = vld [vmem:[%s1936 + $0x18] sm:$0xff]
      %v1941 = vld [vmem:[%s1936 + $0x20] sm:$0xff]
      %v1942 = vld [vmem:[%s1936 + $0x28] sm:$0xff]
      %v1943 = vld [vmem:[%s1936 + $0x30] sm:$0xff]
      %v1944 = vld [vmem:[%s1936 + $0x38] sm:$0xff]
      %v1945 = vld [vmem:[%s1936 + $0x40] sm:$0xff]
      %v1946 = vld [vmem:[%s1936 + $0x48] sm:$0xff]
      %v1947 = vld [vmem:[%s1936 + $0x50] sm:$0xff]
      %v1948 = vld [vmem:[%s1936 + $0x58] sm:$0xff]
      %v1949 = vld [vmem:[%s1936 + $0x60] sm:$0xff]
      %v1950 = vld [vmem:[%s1936 + $0x68] sm:$0xff]
      %v1951 = vld [vmem:[%s1936 + $0x70] sm:$0xff]
      %v1952 = vld [vmem:[%s1936 + $0x78] sm:$0xff]
      %v1953 = vld [vmem:[%s1936 + $0x80] sm:$0xff]
      %v1954 = vld [vmem:[%s1936 + $0x88] sm:$0xff]
      %v1955 = vld [vmem:[%s1936 + $0x90] sm:$0xff]
      %v1956 = vld [vmem:[%s1936 + $0x98] sm:$0xff]
      %v1957 = vld [vmem:[%s1936 + $0xa0] sm:$0xff]
      %v1958 = vld [vmem:[%s1936 + $0xa8] sm:$0xff]
      %v1959 = vld [vmem:[%s1936 + $0xb0] sm:$0xff]
      %v1960 = vld [vmem:[%s1936 + $0xb8] sm:$0xff]
      %v1961 = vld [vmem:[%s1936 + $0xc0] sm:$0xff]
      %v1962 = vld [vmem:[%s1936 + $0xc8] sm:$0xff]
      %v1963 = vld [vmem:[%s1936 + $0xd0] sm:$0xff]
      %v1964 = vld [vmem:[%s1936 + $0xd8] sm:$0xff]
      %v1965 = vld [vmem:[%s1936 + $0xe0] sm:$0xff]
      %v1966 = vld [vmem:[%s1936 + $0xe8] sm:$0xff]
      %v1967 = vld [vmem:[%s1936 + $0xf0] sm:$0xff]
      %v1968 = vld [vmem:[%s1936 + $0xf8] sm:$0xff]
      %s1969 = smul.u32 %s907, 4
      %s1970 = scalar_lea.vmem [#allocation27], %s1969
      %v1971 = vld [vmem:[%s1970] sm:$0xf]
      %v1972 = vpack.c.bf16 %v1933, %v1932
      %v1974 = vlaneseq
      %v1975 = vshrl.u32 %v1974, 7
      %v1976 = vsub.s32 0, %v1975
      %v1977 = vrot.slane %v1971, %v1976
      %v1978 = vlaneseq
      %v1979 = vshrl.u32 %v1978, 7
      %v1980 = vsub.s32 1, %v1979
      %v1981 = vrot.slane %v1971, %v1980
      %v1982 = vlaneseq
      %v1983 = vshrl.u32 %v1982, 7
      %v1984 = vsub.s32 2, %v1983
      %v1985 = vrot.slane %v1971, %v1984
      %v1986 = vlaneseq
      %v1987 = vshrl.u32 %v1986, 7
      %v1988 = vsub.s32 3, %v1987
      %v1989 = vrot.slane %v1971, %v1988
      %v2026 = vunpack.c.l.b16 %v1937
      %v2027 = vunpack.c.h.b16 %v1937
      %v2028 = vunpack.c.l.b16 %v1938
      %v2029 = vunpack.c.h.b16 %v1938
      %v2030 = vunpack.c.l.b16 %v1939
      %v2031 = vunpack.c.h.b16 %v1939
      %v2032 = vunpack.c.l.b16 %v1940
      %v2033 = vunpack.c.h.b16 %v1940
      %v2034 = vunpack.c.l.b16 %v1941
      %v2035 = vunpack.c.h.b16 %v1941
      %v2036 = vunpack.c.l.b16 %v1942
      %v2037 = vunpack.c.h.b16 %v1942
      %v2038 = vunpack.c.l.b16 %v1943
      %v2039 = vunpack.c.h.b16 %v1943
      %v2040 = vunpack.c.l.b16 %v1944
      %v2041 = vunpack.c.h.b16 %v1944
      %v2042 = vunpack.c.l.b16 %v1945
      %v2043 = vunpack.c.h.b16 %v1945
      %v2044 = vunpack.c.l.b16 %v1946
      %v2045 = vunpack.c.h.b16 %v1946
      %v2046 = vunpack.c.l.b16 %v1947
      %v2047 = vunpack.c.h.b16 %v1947
      %v2048 = vunpack.c.l.b16 %v1948
      %v2049 = vunpack.c.h.b16 %v1948
      %v2050 = vunpack.c.l.b16 %v1949
      %v2051 = vunpack.c.h.b16 %v1949
      %v2052 = vunpack.c.l.b16 %v1950
      %v2053 = vunpack.c.h.b16 %v1950
      %v2054 = vunpack.c.l.b16 %v1951
      %v2055 = vunpack.c.h.b16 %v1951
      %v2056 = vunpack.c.l.b16 %v1952
      %v2057 = vunpack.c.h.b16 %v1952
      %v2058 = vunpack.c.l.b16 %v1953
      %v2059 = vunpack.c.h.b16 %v1953
      %v2060 = vunpack.c.l.b16 %v1954
      %v2061 = vunpack.c.h.b16 %v1954
      %v2062 = vunpack.c.l.b16 %v1955
      %v2063 = vunpack.c.h.b16 %v1955
      %v2064 = vunpack.c.l.b16 %v1956
      %v2065 = vunpack.c.h.b16 %v1956
      %v2066 = vunpack.c.l.b16 %v1957
      %v2067 = vunpack.c.h.b16 %v1957
      %v2068 = vunpack.c.l.b16 %v1958
      %v2069 = vunpack.c.h.b16 %v1958
      %v2070 = vunpack.c.l.b16 %v1959
      %v2071 = vunpack.c.h.b16 %v1959
      %v2072 = vunpack.c.l.b16 %v1960
      %v2073 = vunpack.c.h.b16 %v1960
      %v2074 = vunpack.c.l.b16 %v1961
      %v2075 = vunpack.c.h.b16 %v1961
      %v2076 = vunpack.c.l.b16 %v1962
      %v2077 = vunpack.c.h.b16 %v1962
      %v2078 = vunpack.c.l.b16 %v1963
      %v2079 = vunpack.c.h.b16 %v1963
      %v2080 = vunpack.c.l.b16 %v1964
      %v2081 = vunpack.c.h.b16 %v1964
      %v2082 = vunpack.c.l.b16 %v1965
      %v2083 = vunpack.c.h.b16 %v1965
      %v2084 = vunpack.c.l.b16 %v1966
      %v2085 = vunpack.c.h.b16 %v1966
      %v2086 = vunpack.c.l.b16 %v1967
      %v2087 = vunpack.c.h.b16 %v1967
      %v2088 = vunpack.c.l.b16 %v1968
      %v2089 = vunpack.c.h.b16 %v1968
      %v2090 = vpack.c.b16 %v2030, %v2026
      %v2091 = vpack.c.b16 %v2031, %v2027
      %v2092 = vpack.c.b16 %v2032, %v2028
      %v2093 = vpack.c.b16 %v2033, %v2029
      %v2094 = vpack.c.b16 %v2038, %v2034
      %v2095 = vpack.c.b16 %v2039, %v2035
      %v2096 = vpack.c.b16 %v2040, %v2036
      %v2097 = vpack.c.b16 %v2041, %v2037
      %v2098 = vpack.c.b16 %v2046, %v2042
      %v2099 = vpack.c.b16 %v2047, %v2043
      %v2100 = vpack.c.b16 %v2048, %v2044
      %v2101 = vpack.c.b16 %v2049, %v2045
      %v2102 = vpack.c.b16 %v2054, %v2050
      %v2103 = vpack.c.b16 %v2055, %v2051
      %v2104 = vpack.c.b16 %v2056, %v2052
      %v2105 = vpack.c.b16 %v2057, %v2053
      %v2106 = vpack.c.b16 %v2062, %v2058
      %v2107 = vpack.c.b16 %v2063, %v2059
      %v2108 = vpack.c.b16 %v2064, %v2060
      %v2109 = vpack.c.b16 %v2065, %v2061
      %v2110 = vpack.c.b16 %v2070, %v2066
      %v2111 = vpack.c.b16 %v2071, %v2067
      %v2112 = vpack.c.b16 %v2072, %v2068
      %v2113 = vpack.c.b16 %v2073, %v2069
      %v2114 = vpack.c.b16 %v2078, %v2074
      %v2115 = vpack.c.b16 %v2079, %v2075
      %v2116 = vpack.c.b16 %v2080, %v2076
      %v2117 = vpack.c.b16 %v2081, %v2077
      %v2118 = vpack.c.b16 %v2086, %v2082
      %v2119 = vpack.c.b16 %v2087, %v2083
      %v2120 = vpack.c.b16 %v2088, %v2084
      %v2121 = vpack.c.b16 %v2089, %v2085
      %2154 = vmatprep.subr.bf16.mxu0 %v2091
      %2155 = vmatpush1.bf16.msra.mxu0 %v2090
      %2156 = vmatprep.subr.bf16.mxu0 %v2095
      %2157 = vmatpush1.bf16.msra.mxu0 %v2094
      %2158 = vmatprep.subr.bf16.mxu0 %v2099
      %2159 = vmatpush1.bf16.msra.mxu0 %v2098
      %2160 = vmatprep.subr.bf16.mxu0 %v2103
      %2161 = vmatpush1.bf16.msra.mxu0 %v2102
      %2162 = vmatprep.subr.bf16.mxu0 %v2107
      %2163 = vmatpush1.bf16.msra.mxu0 %v2106
      %2164 = vmatprep.subr.bf16.mxu0 %v2111
      %2165 = vmatpush1.bf16.msra.mxu0 %v2110
      %2166 = vmatprep.subr.bf16.mxu0 %v2115
      %2167 = vmatpush1.bf16.msra.mxu0 %v2114
      %2168 = vmatprep.subr.bf16.mxu0 %v2119
      %2169 = vmatpush1.bf16.msra.mxu0 %v2118
      %2170 = vmatprep.subr.bf16.mxu0 0
      %2171 = vmatpush1.bf16.msra.mxu0 0
      %2172 = vmatprep.subr.bf16.mxu0 0
      %2173 = vmatpush1.bf16.msra.mxu0 0
      %2174 = vmatprep.subr.bf16.mxu0 0
      %2175 = vmatpush1.bf16.msra.mxu0 0
      %2176 = vmatprep.subr.bf16.mxu0 0
      %2177 = vmatpush1.bf16.msra.mxu0 0
      %2178 = vmatprep.subr.bf16.mxu0 0
      %2179 = vmatpush1.bf16.msra.mxu0 0
      %2180 = vmatprep.subr.bf16.mxu0 0
      %2181 = vmatpush1.bf16.msra.mxu0 0
      %2182 = vmatprep.subr.bf16.mxu0 0
      %2183 = vmatpush1.bf16.msra.mxu0 0
      %2184 = vmatprep.subr.bf16.mxu0 0
      %2185 = vmatpush1.bf16.msra.mxu0 0
      %2186 = vmatprep.mubr.bf16.mxu0 0
      %2187 = vmatmul.mubr.bf16.gmra.mrb[0].mxu0 %v1972
      %v2188 = vpop.f32.mrb[0].mxu0
      %v2189 = vadd.f32 %v1977, %v2188
      %v2190 = vpop.f32.mrb[0].mxu0
      %v2191 = vadd.f32 %v1981, %v2190
      %v2192 = vpop.f32.mrb[0].mxu0
      %v2193 = vadd.f32 %v1977, %v2192
      %v2194 = vpop.f32.mrb[0].mxu0
      %v2195 = vadd.f32 %v1981, %v2194
      %2196 = vdwg.mxu0
      %2197 = vmatprep.subr.bf16.mxu0 %v2093
      %2198 = vmatpush1.bf16.msra.mxu0 %v2092
      %2199 = vmatprep.subr.bf16.mxu0 %v2097
      %2200 = vmatpush1.bf16.msra.mxu0 %v2096
      %2201 = vmatprep.subr.bf16.mxu0 %v2101
      %2202 = vmatpush1.bf16.msra.mxu0 %v2100
      %2203 = vmatprep.subr.bf16.mxu0 %v2105
      %2204 = vmatpush1.bf16.msra.mxu0 %v2104
      %2205 = vmatprep.subr.bf16.mxu0 %v2109
      %2206 = vmatpush1.bf16.msra.mxu0 %v2108
      %2207 = vmatprep.subr.bf16.mxu0 %v2113
      %2208 = vmatpush1.bf16.msra.mxu0 %v2112
      %2209 = vmatprep.subr.bf16.mxu0 %v2117
      %2210 = vmatpush1.bf16.msra.mxu0 %v2116
      %2211 = vmatprep.subr.bf16.mxu0 %v2121
      %2212 = vmatpush1.bf16.msra.mxu0 %v2120
      %2213 = vmatprep.subr.bf16.mxu0 0
      %2214 = vmatpush1.bf16.msra.mxu0 0
      %2215 = vmatprep.subr.bf16.mxu0 0
      %2216 = vmatpush1.bf16.msra.mxu0 0
      %2217 = vmatprep.subr.bf16.mxu0 0
      %2218 = vmatpush1.bf16.msra.mxu0 0
      %2219 = vmatprep.subr.bf16.mxu0 0
      %2220 = vmatpush1.bf16.msra.mxu0 0
      %2221 = vmatprep.subr.bf16.mxu0 0
      %2222 = vmatpush1.bf16.msra.mxu0 0
      %2223 = vmatprep.subr.bf16.mxu0 0
      %2224 = vmatpush1.bf16.msra.mxu0 0
      %2225 = vmatprep.subr.bf16.mxu0 0
      %2226 = vmatpush1.bf16.msra.mxu0 0
      %2227 = vmatprep.subr.bf16.mxu0 0
      %2228 = vmatpush1.bf16.msra.mxu0 0
      %2229 = vmatprep.mubr.bf16.mxu0 0
      %2230 = vmatmul.mubr.bf16.gmra.mrb[0].mxu0 %v1972
      %v2231 = vpop.f32.mrb[0].mxu0
      %v2232 = vadd.f32 %v1985, %v2231
      %v2233 = vpop.f32.mrb[0].mxu0
      %v2234 = vadd.f32 %v1989, %v2233
      %v2235 = vpop.f32.mrb[0].mxu0
      %v2236 = vadd.f32 %v1985, %v2235
      %v2237 = vpop.f32.mrb[0].mxu0
      %v2238 = vadd.f32 %v1989, %v2237
      %2239 = vdwg.mxu0
      %v2240 = vmul.f32 %v2189, %v2189
      %v2241 = vmul.f32 %v2191, %v2191
      %v2242 = vmul.f32 %v2232, %v2232
      %v2243 = vmul.f32 %v2234, %v2234
      %v2244 = vmul.f32 %v2193, %v2193
      %v2245 = vmul.f32 %v2195, %v2195
      %v2246 = vmul.f32 %v2236, %v2236
      %v2247 = vmul.f32 %v2238, %v2238
      %v2248 = vmul.f32 %v2189, %v2240
      %v2249 = vmul.f32 %v2191, %v2241
      %v2250 = vmul.f32 %v2232, %v2242
      %v2251 = vmul.f32 %v2234, %v2243
      %v2252 = vmul.f32 %v2193, %v2244
      %v2253 = vmul.f32 %v2195, %v2245
      %v2254 = vmul.f32 %v2236, %v2246
      %v2255 = vmul.f32 %v2238, %v2247
      %v2256 = vmul.f32 %v2248, 0.044715
      %v2257 = vmul.f32 %v2249, 0.044715
      %v2258 = vmul.f32 %v2250, 0.044715
      %v2259 = vmul.f32 %v2251, 0.044715
      %v2260 = vmul.f32 %v2252, 0.044715
      %v2261 = vmul.f32 %v2253, 0.044715
      %v2262 = vmul.f32 %v2254, 0.044715
      %v2263 = vmul.f32 %v2255, 0.044715
      %v2264 = vadd.f32 %v2189, %v2256
      %v2265 = vadd.f32 %v2191, %v2257
      %v2266 = vadd.f32 %v2232, %v2258
      %v2267 = vadd.f32 %v2234, %v2259
      %v2268 = vadd.f32 %v2193, %v2260
      %v2269 = vadd.f32 %v2195, %v2261
      %v2270 = vadd.f32 %v2236, %v2262
      %v2271 = vadd.f32 %v2238, %v2263
      %v2272 = vmul.f32 %v2264, 0.7978846
      %v2273 = vmul.f32 %v2265, 0.7978846
      %v2274 = vmul.f32 %v2266, 0.7978846
      %v2275 = vmul.f32 %v2267, 0.7978846
      %v2276 = vmul.f32 %v2268, 0.7978846
      %v2277 = vmul.f32 %v2269, 0.7978846
      %v2278 = vmul.f32 %v2270, 0.7978846
      %v2279 = vmul.f32 %v2271, 0.7978846
      %v2280 = vtanh.pop %v2272
      %v2281 = vtanh.pop %v2273
      %v2282 = vtanh.pop %v2274
      %v2283 = vtanh.pop %v2275
      %v2284 = vtanh.pop %v2276
      %v2285 = vtanh.pop %v2277
      %v2286 = vtanh.pop %v2278
      %v2287 = vtanh.pop %v2279
      %v2288 = vadd.f32 %v2280, 1.0
      %v2289 = vadd.f32 %v2281, 1.0
      %v2290 = vadd.f32 %v2282, 1.0
      %v2291 = vadd.f32 %v2283, 1.0
      %v2292 = vadd.f32 %v2284, 1.0
      %v2293 = vadd.f32 %v2285, 1.0
      %v2294 = vadd.f32 %v2286, 1.0
      %v2295 = vadd.f32 %v2287, 1.0
      %v2296 = vmul.f32 %v2288, 0.5
      %v2297 = vmul.f32 %v2289, 0.5
      %v2298 = vmul.f32 %v2290, 0.5
      %v2299 = vmul.f32 %v2291, 0.5
      %v2300 = vmul.f32 %v2292, 0.5
      %v2301 = vmul.f32 %v2293, 0.5
      %v2302 = vmul.f32 %v2294, 0.5
      %v2303 = vmul.f32 %v2295, 0.5
      %v2304 = vmul.f32 %v2189, %v2296
      %v2305 = vmul.f32 %v2191, %v2297
      %v2306 = vmul.f32 %v2232, %v2298
      %v2307 = vmul.f32 %v2234, %v2299
      %v2308 = vmul.f32 %v2193, %v2300
      %v2309 = vmul.f32 %v2195, %v2301
      %v2310 = vmul.f32 %v2236, %v2302
      %v2311 = vmul.f32 %v2238, %v2303
      %s2312 = smul.addr %s1934, 4
      %s2313 = scalar_lea.vmem [#allocation29], %s2312
      %v2314 = vld [vmem:[%s2313] sm:$0xf]
      %v2315 = vld [vmem:[%s2313 + $0x4] sm:$0xf]
      %v2316 = vld [vmem:[%s2313 + $0x8] sm:$0xf]
      %v2317 = vld [vmem:[%s2313 + $0xc] sm:$0xf]
      %v2318 = vld [vmem:[%s2313 + $0x10] sm:$0xf]
      %v2319 = vld [vmem:[%s2313 + $0x14] sm:$0xf]
      %v2320 = vld [vmem:[%s2313 + $0x18] sm:$0xf]
      %v2321 = vld [vmem:[%s2313 + $0x1c] sm:$0xf]
      %v2322 = vld [vmem:[%s2313 + $0x20] sm:$0xf]
      %v2323 = vld [vmem:[%s2313 + $0x24] sm:$0xf]
      %v2324 = vld [vmem:[%s2313 + $0x28] sm:$0xf]
      %v2325 = vld [vmem:[%s2313 + $0x2c] sm:$0xf]
      %v2326 = vld [vmem:[%s2313 + $0x30] sm:$0xf]
      %v2327 = vld [vmem:[%s2313 + $0x34] sm:$0xf]
      %v2328 = vld [vmem:[%s2313 + $0x38] sm:$0xf]
      %v2329 = vld [vmem:[%s2313 + $0x3c] sm:$0xf]
      %v2330 = vld [vmem:[%s2313 + $0x40] sm:$0xf]
      %v2331 = vld [vmem:[%s2313 + $0x44] sm:$0xf]
      %v2332 = vld [vmem:[%s2313 + $0x48] sm:$0xf]
      %v2333 = vld [vmem:[%s2313 + $0x4c] sm:$0xf]
      %v2334 = vld [vmem:[%s2313 + $0x50] sm:$0xf]
      %v2335 = vld [vmem:[%s2313 + $0x54] sm:$0xf]
      %v2336 = vld [vmem:[%s2313 + $0x58] sm:$0xf]
      %v2337 = vld [vmem:[%s2313 + $0x5c] sm:$0xf]
      %v2338 = vld [vmem:[%s2313 + $0x60] sm:$0xf]
      %v2339 = vld [vmem:[%s2313 + $0x64] sm:$0xf]
      %v2340 = vld [vmem:[%s2313 + $0x68] sm:$0xf]
      %v2341 = vld [vmem:[%s2313 + $0x6c] sm:$0xf]
      %v2342 = vld [vmem:[%s2313 + $0x70] sm:$0xf]
      %v2343 = vld [vmem:[%s2313 + $0x74] sm:$0xf]
      %v2344 = vld [vmem:[%s2313 + $0x78] sm:$0xf]
      %v2345 = vld [vmem:[%s2313 + $0x7c] sm:$0xf]
      %v2346 = vld [vmem:[%s2313 + $0x80] sm:$0xf]
      %v2347 = vld [vmem:[%s2313 + $0x84] sm:$0xf]
      %v2348 = vld [vmem:[%s2313 + $0x88] sm:$0xf]
      %v2349 = vld [vmem:[%s2313 + $0x8c] sm:$0xf]
      %v2350 = vld [vmem:[%s2313 + $0x90] sm:$0xf]
      %v2351 = vld [vmem:[%s2313 + $0x94] sm:$0xf]
      %v2352 = vld [vmem:[%s2313 + $0x98] sm:$0xf]
      %v2353 = vld [vmem:[%s2313 + $0x9c] sm:$0xf]
      %v2354 = vld [vmem:[%s2313 + $0xa0] sm:$0xf]
      %v2355 = vld [vmem:[%s2313 + $0xa4] sm:$0xf]
      %v2356 = vld [vmem:[%s2313 + $0xa8] sm:$0xf]
      %v2357 = vld [vmem:[%s2313 + $0xac] sm:$0xf]
      %v2358 = vld [vmem:[%s2313 + $0xb0] sm:$0xf]
      %v2359 = vld [vmem:[%s2313 + $0xb4] sm:$0xf]
      %v2360 = vld [vmem:[%s2313 + $0xb8] sm:$0xf]
      %v2361 = vld [vmem:[%s2313 + $0xbc] sm:$0xf]
      %v2362 = vld [vmem:[%s2313 + $0xc0] sm:$0xf]
      %v2363 = vld [vmem:[%s2313 + $0xc4] sm:$0xf]
      %v2364 = vld [vmem:[%s2313 + $0xc8] sm:$0xf]
      %v2365 = vld [vmem:[%s2313 + $0xcc] sm:$0xf]
      %v2366 = vld [vmem:[%s2313 + $0xd0] sm:$0xf]
      %v2367 = vld [vmem:[%s2313 + $0xd4] sm:$0xf]
      %v2368 = vld [vmem:[%s2313 + $0xd8] sm:$0xf]
      %v2369 = vld [vmem:[%s2313 + $0xdc] sm:$0xf]
      %v2370 = vld [vmem:[%s2313 + $0xe0] sm:$0xf]
      %v2371 = vld [vmem:[%s2313 + $0xe4] sm:$0xf]
      %v2372 = vld [vmem:[%s2313 + $0xe8] sm:$0xf]
      %v2373 = vld [vmem:[%s2313 + $0xec] sm:$0xf]
      %v2374 = vld [vmem:[%s2313 + $0xf0] sm:$0xf]
      %v2375 = vld [vmem:[%s2313 + $0xf4] sm:$0xf]
      %v2376 = vld [vmem:[%s2313 + $0xf8] sm:$0xf]
      %v2377 = vld [vmem:[%s2313 + $0xfc] sm:$0xf]
      %s2378 = scalar_lea.vmem [#allocation30], %s907
      %v2379 = vld [vmem:[%s2378] sm:$0x1]
      %v2380 = vpack.c.bf16 %v2308, %v2304
      %v2381 = vpack.c.bf16 %v2309, %v2305
      %v2382 = vpack.c.bf16 %v2310, %v2306
      %v2383 = vpack.c.bf16 %v2311, %v2307
      %v2385 = vlaneseq
      %v2386 = vshrl.u32 %v2385, 7
      %v2387 = vsub.s32 0, %v2386
      %v2388 = vrot.slane %v2379, %v2387
      %v2454 = vunpack.c.l.b16 %v2314
      %v2455 = vunpack.c.l.b16 %v2315
      %v2456 = vunpack.c.l.b16 %v2316
      %v2457 = vunpack.c.l.b16 %v2317
      %v2458 = vunpack.c.l.b16 %v2318
      %v2459 = vunpack.c.l.b16 %v2319
      %v2460 = vunpack.c.l.b16 %v2320
      %v2461 = vunpack.c.l.b16 %v2321
      %v2462 = vunpack.c.l.b16 %v2322
      %v2463 = vunpack.c.l.b16 %v2323
      %v2464 = vunpack.c.l.b16 %v2324
      %v2465 = vunpack.c.l.b16 %v2325
      %v2466 = vunpack.c.l.b16 %v2326
      %v2467 = vunpack.c.l.b16 %v2327
      %v2468 = vunpack.c.l.b16 %v2328
      %v2469 = vunpack.c.l.b16 %v2329
      %v2470 = vunpack.c.l.b16 %v2330
      %v2471 = vunpack.c.l.b16 %v2331
      %v2472 = vunpack.c.l.b16 %v2332
      %v2473 = vunpack.c.l.b16 %v2333
      %v2474 = vunpack.c.l.b16 %v2334
      %v2475 = vunpack.c.l.b16 %v2335
      %v2476 = vunpack.c.l.b16 %v2336
      %v2477 = vunpack.c.l.b16 %v2337
      %v2478 = vunpack.c.l.b16 %v2338
      %v2479 = vunpack.c.l.b16 %v2339
      %v2480 = vunpack.c.l.b16 %v2340
      %v2481 = vunpack.c.l.b16 %v2341
      %v2482 = vunpack.c.l.b16 %v2342
      %v2483 = vunpack.c.l.b16 %v2343
      %v2484 = vunpack.c.l.b16 %v2344
      %v2485 = vunpack.c.l.b16 %v2345
      %v2486 = vunpack.c.l.b16 %v2346
      %v2487 = vunpack.c.l.b16 %v2347
      %v2488 = vunpack.c.l.b16 %v2348
      %v2489 = vunpack.c.l.b16 %v2349
      %v2490 = vunpack.c.l.b16 %v2350
      %v2491 = vunpack.c.l.b16 %v2351
      %v2492 = vunpack.c.l.b16 %v2352
      %v2493 = vunpack.c.l.b16 %v2353
      %v2494 = vunpack.c.l.b16 %v2354
      %v2495 = vunpack.c.l.b16 %v2355
      %v2496 = vunpack.c.l.b16 %v2356
      %v2497 = vunpack.c.l.b16 %v2357
      %v2498 = vunpack.c.l.b16 %v2358
      %v2499 = vunpack.c.l.b16 %v2359
      %v2500 = vunpack.c.l.b16 %v2360
      %v2501 = vunpack.c.l.b16 %v2361
      %v2502 = vunpack.c.l.b16 %v2362
      %v2503 = vunpack.c.l.b16 %v2363
      %v2504 = vunpack.c.l.b16 %v2364
      %v2505 = vunpack.c.l.b16 %v2365
      %v2506 = vunpack.c.l.b16 %v2366
      %v2507 = vunpack.c.l.b16 %v2367
      %v2508 = vunpack.c.l.b16 %v2368
      %v2509 = vunpack.c.l.b16 %v2369
      %v2510 = vunpack.c.l.b16 %v2370
      %v2511 = vunpack.c.l.b16 %v2371
      %v2512 = vunpack.c.l.b16 %v2372
      %v2513 = vunpack.c.l.b16 %v2373
      %v2514 = vunpack.c.l.b16 %v2374
      %v2515 = vunpack.c.l.b16 %v2375
      %v2516 = vunpack.c.l.b16 %v2376
      %v2517 = vunpack.c.l.b16 %v2377
      %v2518 = vpack.c.b16 %v2455, %v2454
      %v2519 = vpack.c.b16 %v2457, %v2456
      %v2520 = vpack.c.b16 %v2459, %v2458
      %v2521 = vpack.c.b16 %v2461, %v2460
      %v2522 = vpack.c.b16 %v2463, %v2462
      %v2523 = vpack.c.b16 %v2465, %v2464
      %v2524 = vpack.c.b16 %v2467, %v2466
      %v2525 = vpack.c.b16 %v2469, %v2468
      %v2526 = vpack.c.b16 %v2471, %v2470
      %v2527 = vpack.c.b16 %v2473, %v2472
      %v2528 = vpack.c.b16 %v2475, %v2474
      %v2529 = vpack.c.b16 %v2477, %v2476
      %v2530 = vpack.c.b16 %v2479, %v2478
      %v2531 = vpack.c.b16 %v2481, %v2480
      %v2532 = vpack.c.b16 %v2483, %v2482
      %v2533 = vpack.c.b16 %v2485, %v2484
      %v2534 = vpack.c.b16 %v2487, %v2486
      %v2535 = vpack.c.b16 %v2489, %v2488
      %v2536 = vpack.c.b16 %v2491, %v2490
      %v2537 = vpack.c.b16 %v2493, %v2492
      %v2538 = vpack.c.b16 %v2495, %v2494
      %v2539 = vpack.c.b16 %v2497, %v2496
      %v2540 = vpack.c.b16 %v2499, %v2498
      %v2541 = vpack.c.b16 %v2501, %v2500
      %v2542 = vpack.c.b16 %v2503, %v2502
      %v2543 = vpack.c.b16 %v2505, %v2504
      %v2544 = vpack.c.b16 %v2507, %v2506
      %v2545 = vpack.c.b16 %v2509, %v2508
      %v2546 = vpack.c.b16 %v2511, %v2510
      %v2547 = vpack.c.b16 %v2513, %v2512
      %v2548 = vpack.c.b16 %v2515, %v2514
      %v2549 = vpack.c.b16 %v2517, %v2516
      %2582 = vmatprep.subr.bf16.mxu0 0
      %2583 = vmatpush1.bf16.msra.mxu0 %v2518
      %2584 = vmatprep.subr.bf16.mxu0 0
      %2585 = vmatpush1.bf16.msra.mxu0 %v2519
      %2586 = vmatprep.subr.bf16.mxu0 0
      %2587 = vmatpush1.bf16.msra.mxu0 %v2520
      %2588 = vmatprep.subr.bf16.mxu0 0
      %2589 = vmatpush1.bf16.msra.mxu0 %v2521
      %2590 = vmatprep.subr.bf16.mxu0 0
      %2591 = vmatpush1.bf16.msra.mxu0 %v2522
      %2592 = vmatprep.subr.bf16.mxu0 0
      %2593 = vmatpush1.bf16.msra.mxu0 %v2523
      %2594 = vmatprep.subr.bf16.mxu0 0
      %2595 = vmatpush1.bf16.msra.mxu0 %v2524
      %2596 = vmatprep.subr.bf16.mxu0 0
      %2597 = vmatpush1.bf16.msra.mxu0 %v2525
      %2598 = vmatprep.subr.bf16.mxu0 0
      %2599 = vmatpush1.bf16.msra.mxu0 %v2526
      %2600 = vmatprep.subr.bf16.mxu0 0
      %2601 = vmatpush1.bf16.msra.mxu0 %v2527
      %2602 = vmatprep.subr.bf16.mxu0 0
      %2603 = vmatpush1.bf16.msra.mxu0 %v2528
      %2604 = vmatprep.subr.bf16.mxu0 0
      %2605 = vmatpush1.bf16.msra.mxu0 %v2529
      %2606 = vmatprep.subr.bf16.mxu0 0
      %2607 = vmatpush1.bf16.msra.mxu0 %v2530
      %2608 = vmatprep.subr.bf16.mxu0 0
      %2609 = vmatpush1.bf16.msra.mxu0 %v2531
      %2610 = vmatprep.subr.bf16.mxu0 0
      %2611 = vmatpush1.bf16.msra.mxu0 %v2532
      %2612 = vmatprep.subr.bf16.mxu0 0
      %2613 = vmatpush1.bf16.msra.mxu0 %v2533
      %2614 = vmatprep.mubr.bf16.mxu0 %v2381
      %2615 = vmatmul.mubr.bf16.gmra.mrb[0].mxu0 %v2380
      %v2616 = vpop.f32.mrb[0].mxu0
      %v2617 = vadd.f32 %v2388, %v2616
      %v2618 = vpop.f32.mrb[0].mxu0
      %v2619 = vpop.f32.mrb[0].mxu0
      %v2620 = vadd.f32 %v2388, %v2619
      %v2621 = vpop.f32.mrb[0].mxu0
      %2622 = vdwg.mxu0
      %2623 = vmatprep.subr.bf16.mxu0 0
      %2624 = vmatpush1.bf16.msra.mxu0 %v2534
      %2625 = vmatprep.subr.bf16.mxu0 0
      %2626 = vmatpush1.bf16.msra.mxu0 %v2535
      %2627 = vmatprep.subr.bf16.mxu0 0
      %2628 = vmatpush1.bf16.msra.mxu0 %v2536
      %2629 = vmatprep.subr.bf16.mxu0 0
      %2630 = vmatpush1.bf16.msra.mxu0 %v2537
      %2631 = vmatprep.subr.bf16.mxu0 0
      %2632 = vmatpush1.bf16.msra.mxu0 %v2538
      %2633 = vmatprep.subr.bf16.mxu0 0
      %2634 = vmatpush1.bf16.msra.mxu0 %v2539
      %2635 = vmatprep.subr.bf16.mxu0 0
      %2636 = vmatpush1.bf16.msra.mxu0 %v2540
      %2637 = vmatprep.subr.bf16.mxu0 0
      %2638 = vmatpush1.bf16.msra.mxu0 %v2541
      %2639 = vmatprep.subr.bf16.mxu0 0
      %2640 = vmatpush1.bf16.msra.mxu0 %v2542
      %2641 = vmatprep.subr.bf16.mxu0 0
      %2642 = vmatpush1.bf16.msra.mxu0 %v2543
      %2643 = vmatprep.subr.bf16.mxu0 0
      %2644 = vmatpush1.bf16.msra.mxu0 %v2544
      %2645 = vmatprep.subr.bf16.mxu0 0
      %2646 = vmatpush1.bf16.msra.mxu0 %v2545
      %2647 = vmatprep.subr.bf16.mxu0 0
      %2648 = vmatpush1.bf16.msra.mxu0 %v2546
      %2649 = vmatprep.subr.bf16.mxu0 0
      %2650 = vmatpush1.bf16.msra.mxu0 %v2547
      %2651 = vmatprep.subr.bf16.mxu0 0
      %2652 = vmatpush1.bf16.msra.mxu0 %v2548
      %2653 = vmatprep.subr.bf16.mxu0 0
      %2654 = vmatpush1.bf16.msra.mxu0 %v2549
      %2655 = vmatprep.mubr.bf16.mxu0 %v2383
      %2656 = vmatmul.mubr.bf16.gmra.mrb[0].mxu0 %v2382
      %v2657 = vpop.f32.mrb[0].mxu0
      %v2658 = vadd.f32 %v2617, %v2657
      %v2659 = vpop.f32.mrb[0].mxu0
      %v2660 = vpop.f32.mrb[0].mxu0
      %v2661 = vadd.f32 %v2620, %v2660
      %v2662 = vpop.f32.mrb[0].mxu0
      %2663 = vdwg.mxu0
      %v2664 = vadd.f32 %v1888, %v2658
      %v2665 = vadd.f32 %v1889, %v2661
    $region186: #{_lambda_.1} parent=1 // loop_footer
      %s911 = sadd.s32 1, %s907
    $region187: #{_lambda_.1} parent=1 // loop_footer_branch
      %906 = sbr.rel target = $region183
    $region188: #{_lambda_.1} parent=1 // loop_exit
      _
    %v2666 = vld [vmem:[#allocation32] sm:$0x1]
    %v2667 = vld [vmem:[#allocation33] sm:$0x1]
    %2668 = vadd.xlane.f32.xlu0 %v912
    %v2669 = vpop.xlane.xlu0 %2668
    %vm2670 = vcmask 1043456
    %v2671 = vsel %vm2670, %v913, 0.0
    %2672 = vadd.xlane.f32.xlu0 %v2671
    %v2673 = vpop.xlane.xlu0 %2672
    %v2674 = vrcp.pop 128.0
    %v2675 = vmul.f32 %v2669, %v2674
    %v2676 = vmul.f32 %v2673, %v2674
    %v2677 = vsub.f32 %v912, %v2675
    %v2678 = vsub.f32 %v913, %v2676
    %v2679 = vmul.f32 %v2677, %v2677
    %v2680 = vmul.f32 %v2678, %v2678
    %2681 = vadd.xlane.f32.xlu0 %v2679
    %v2682 = vpop.xlane.xlu0 %2681
    %v2683 = vsel %vm2670, %v2680, 0.0
    %2684 = vadd.xlane.f32.xlu0 %v2683
    %v2685 = vpop.xlane.xlu0 %2684
    %v2686 = vmul.f32 %v2682, %v2674
    %v2687 = vmul.f32 %v2685, %v2674
    %v2688 = vadd.f32 %v2686, 1e-06
    %v2689 = vadd.f32 %v2687, 1e-06
    %v2690 = vrsqrt.pop %v2688
    %v2691 = vrsqrt.pop %v2689
    %v2692 = vmul.f32 %v2677, %v2690
    %v2693 = vmul.f32 %v2678, %v2691
    %v2695 = vlaneseq
    %v2696 = vshrl.u32 %v2695, 7
    %v2697 = vsub.s32 0, %v2696
    %v2698 = vrot.slane %v2666, %v2697
    %v2700 = vmul.f32 %v2692, %v2698
    %v2701 = vmul.f32 %v2693, %v2698
    %v2703 = vlaneseq
    %v2704 = vshrl.u32 %v2703, 7
    %v2705 = vsub.s32 0, %v2704
    %v2706 = vrot.slane %v2667, %v2705
    %v2708 = vadd.f32 %v2700, %v2706
    %v2709 = vadd.f32 %v2701, %v2706
    %2710 = vst [vmem:[#allocation39] sm:$0xff] %v2708
    %2711 = vst [vmem:[#allocation39 + $0x8] sm:$0xf] %v2709
    %v2712 = vld [vmem:[#allocation35] sm:$0xf]
    %v2713 = vld [vmem:[#allocation35 + $0x4] sm:$0xf]
    %v2714 = vld [vmem:[#allocation35 + $0x8] sm:$0xf]
    %v2715 = vld [vmem:[#allocation35 + $0xc] sm:$0xf]
    %v2716 = vld [vmem:[#allocation35 + $0x10] sm:$0xf]
    %v2717 = vld [vmem:[#allocation35 + $0x14] sm:$0xf]
    %v2718 = vld [vmem:[#allocation35 + $0x18] sm:$0xf]
    %v2719 = vld [vmem:[#allocation35 + $0x1c] sm:$0xf]
    %v2720 = vld [vmem:[#allocation35 + $0x20] sm:$0xf]
    %v2721 = vld [vmem:[#allocation35 + $0x24] sm:$0xf]
    %v2722 = vld [vmem:[#allocation35 + $0x28] sm:$0xf]
    %v2723 = vld [vmem:[#allocation35 + $0x2c] sm:$0xf]
    %v2724 = vld [vmem:[#allocation35 + $0x30] sm:$0xf]
    %v2725 = vld [vmem:[#allocation35 + $0x34] sm:$0xf]
    %v2726 = vld [vmem:[#allocation35 + $0x38] sm:$0xf]
    %v2727 = vld [vmem:[#allocation35 + $0x3c] sm:$0xf]
    %v2728 = vld [vmem:[#allocation36] sm:$0x1]
    %v2729 = vpack.c.bf16 %v2709, %v2708
    %v2731 = vlaneseq
    %v2732 = vshrl.u32 %v2731, 7
    %v2733 = vsub.s32 0, %v2732
    %v2734 = vrot.slane %v2728, %v2733
    %v2752 = vunpack.c.l.b16 %v2712
    %v2753 = vunpack.c.l.b16 %v2713
    %v2754 = vunpack.c.l.b16 %v2714
    %v2755 = vunpack.c.l.b16 %v2715
    %v2756 = vunpack.c.l.b16 %v2716
    %v2757 = vunpack.c.l.b16 %v2717
    %v2758 = vunpack.c.l.b16 %v2718
    %v2759 = vunpack.c.l.b16 %v2719
    %v2760 = vunpack.c.l.b16 %v2720
    %v2761 = vunpack.c.l.b16 %v2721
    %v2762 = vunpack.c.l.b16 %v2722
    %v2763 = vunpack.c.l.b16 %v2723
    %v2764 = vunpack.c.l.b16 %v2724
    %v2765 = vunpack.c.l.b16 %v2725
    %v2766 = vunpack.c.l.b16 %v2726
    %v2767 = vunpack.c.l.b16 %v2727
    %v2768 = vpack.c.b16 %v2753, %v2752
    %v2769 = vpack.c.b16 %v2755, %v2754
    %v2770 = vpack.c.b16 %v2757, %v2756
    %v2771 = vpack.c.b16 %v2759, %v2758
    %v2772 = vpack.c.b16 %v2761, %v2760
    %v2773 = vpack.c.b16 %v2763, %v2762
    %v2774 = vpack.c.b16 %v2765, %v2764
    %v2775 = vpack.c.b16 %v2767, %v2766
    %2784 = vmatprep.subr.bf16.mxu0 0
    %2785 = vmatpush1.bf16.msra.mxu0 %v2768
    %2786 = vmatprep.subr.bf16.mxu0 0
    %2787 = vmatpush1.bf16.msra.mxu0 %v2769
    %2788 = vmatprep.subr.bf16.mxu0 0
    %2789 = vmatpush1.bf16.msra.mxu0 %v2770
    %2790 = vmatprep.subr.bf16.mxu0 0
    %2791 = vmatpush1.bf16.msra.mxu0 %v2771
    %2792 = vmatprep.subr.bf16.mxu0 0
    %2793 = vmatpush1.bf16.msra.mxu0 %v2772
    %2794 = vmatprep.subr.bf16.mxu0 0
    %2795 = vmatpush1.bf16.msra.mxu0 %v2773
    %2796 = vmatprep.subr.bf16.mxu0 0
    %2797 = vmatpush1.bf16.msra.mxu0 %v2774
    %2798 = vmatprep.subr.bf16.mxu0 0
    %2799 = vmatpush1.bf16.msra.mxu0 %v2775
    %2800 = vmatprep.subr.bf16.mxu0 0
    %2801 = vmatpush1.bf16.msra.mxu0 0
    %2802 = vmatprep.subr.bf16.mxu0 0
    %2803 = vmatpush1.bf16.msra.mxu0 0
    %2804 = vmatprep.subr.bf16.mxu0 0
    %2805 = vmatpush1.bf16.msra.mxu0 0
    %2806 = vmatprep.subr.bf16.mxu0 0
    %2807 = vmatpush1.bf16.msra.mxu0 0
    %2808 = vmatprep.subr.bf16.mxu0 0
    %2809 = vmatpush1.bf16.msra.mxu0 0
    %2810 = vmatprep.subr.bf16.mxu0 0
    %2811 = vmatpush1.bf16.msra.mxu0 0
    %2812 = vmatprep.subr.bf16.mxu0 0
    %2813 = vmatpush1.bf16.msra.mxu0 0
    %2814 = vmatprep.subr.bf16.mxu0 0
    %2815 = vmatpush1.bf16.msra.mxu0 0
    %2816 = vmatprep.mubr.bf16.mxu0 0
    %2817 = vmatmul.mubr.bf16.gmra.mrb[0].mxu0 %v2729
    %v2818 = vpop.f32.mrb[0].mxu0
    %v2819 = vadd.f32 %v2734, %v2818
    %v2820 = vpop.f32.mrb[0].mxu0
    %v2821 = vpop.f32.mrb[0].mxu0
    %v2822 = vpop.f32.mrb[0].mxu0
    %2823 = vdwg.mxu0
    %2824 = vst [vmem:[#allocation38] sm:$0x1] %v2819
    %2825 = vst [vmem:[#allocation38 - $0x5] sm:$0x40] %v2819
    // Predicated region
    $region189: #{_lambda_.1} parent=1 // pred_check
      _
    $region190: #{_lambda_.1} parent=1 // pred_check_branch
      %2827 = sbr.rel (0) target = $region192
    $region191: #{_lambda_.1} parent=1 // pred_region
      %s2829 = ssub.s32 32, 32
      %2830 = vsyncadd [#allocation5], %s2829
      %s2832 = sshll.u32 [#allocation38], 4
      %s2833 = int_to_ptr.vmem [resolvable:$true] %s2832
      %2835 = dma.vmem_to_hbm [thread:$0]  %s2833, 32, %s23, [#allocation5]
    $region192: #{_lambda_.1} parent=1 // pred_fallthru
      _
    // Predicated region
    $region193: #{_lambda_.1} parent=1 // pred_check
      _
    $region194: #{_lambda_.1} parent=1 // pred_check_branch
      %2837 = sbr.rel (0) target = $region196
    $region195: #{_lambda_.1} parent=1 // pred_region
      %s2839 = ssub.s32 256, 256
      %2840 = vsyncadd [#allocation40], %s2839
      %s2841 = sshll.u32 [#allocation39], 4
      %s2842 = int_to_ptr.vmem [resolvable:$true] %s2841
      %2847 = dma.vmem_to_hbm [thread:$0]  %s2842, 256, %s24, [#allocation40], 128, 128, 8
    $region196: #{_lambda_.1} parent=1 // pred_fallthru
      _
    // Predicated region
    $region197: #{_lambda_.1} parent=1 // pred_check
      _
    $region198: #{_lambda_.1} parent=1 // pred_check_branch
      %2849 = sbr.rel (0) target = $region200
    $region199: #{_lambda_.1} parent=1 // pred_region
      %2850 = dma.done [#allocation5], 32
    $region200: #{_lambda_.1} parent=1 // pred_fallthru
      _
    // Predicated region
    $region201: #{_lambda_.1} parent=1 // pred_check
      _
    $region202: #{_lambda_.1} parent=1 // pred_check_branch
      %2852 = sbr.rel (0) target = $region204
    $region203: #{_lambda_.1} parent=1 // pred_region
      %2853 = dma.done [#allocation40], 256
    $region204: #{_lambda_.1} parent=1 // pred_fallthru
      _
    %2854 = vsyncpa [#allocation4], 1
    %2855 = vsyncpa [#allocation7], 1
    %2856 = vsyncpa [#allocation10], 1
    %2857 = vsyncpa [#allocation13], 1
    %2858 = vsyncpa [#allocation16], 1
    %2859 = vsyncpa [#allocation19], 1
    %2860 = vsyncpa [#allocation22], 1
    %2861 = vsyncpa [#allocation25], 1
    %2862 = vsyncpa [#allocation28], 1
    %2863 = vsyncpa [#allocation31], 1
    %2864 = vsyncpa [#allocation34], 1
    %2865 = vsyncpa [#allocation37], 1
    %2866 = vsyncpa [#allocation5], 1
    %2867 = vsyncpa [#allocation40], 1

</llo_original>
